<compile_context>
chip_gen: v7x
topology: tpu7x:2x2x1
jax: 0.10.0
libtpu: 0.0.40
codegen_flags: <defaults>
</compile_context>

<pallas_src>
import numpy as np

import jax
import jax.numpy as jnp
from jax import lax
from jax.experimental import pallas as pl
from jax.experimental.pallas import tpu as pltpu


def _make_divisible(v, divisor, min_value=None):
    if min_value is None:
        min_value = divisor
    new_v = max(min_value, int(v + divisor / 2) // divisor * divisor)
    if new_v < 0.9 * v:
        new_v += divisor
    return new_v


# ---------------------------------------------------------------------------
# The single fused kernel.
# All activations inside the kernel are laid out channel-major: (C, Bt*L),
# samples packed as contiguous L-chunks along the lane dim.
# ---------------------------------------------------------------------------
def _conv_embedding_kernel(
        x_ref,                                        # (Cin, Bt*L)
        t1_ref, w1_ref, sh1_ref,                      # conv1 taps / folded W / BN shift
        avg_ref, exp_ref,                             # SE pool / un-pool matrices
        se1w1_ref, se1b1_ref, se1w2_ref, se1b2_ref,   # SE 1 MLP
        p1_ref, sh2_ref,                              # pointwise 1 (BN folded) + shift
        t2_ref, w2_ref, sh3_ref,                      # conv2 shifts / folded W / BN shift
        se2w1_ref, se2b1_ref, se2w2_ref, se2b2_ref,   # SE 2 MLP
        p2_ref, sh4_ref,                              # pointwise 2 (BN folded) + shift
        proj_ref, lng_ref, lnb_ref,                   # 1x1 proj + LayerNorm affine
        o_ref):                                       # (Cout, Bt*Lout)
    f32 = jnp.float32
    x = x_ref[...].astype(f32)                        # single load of the tile

    def silu(v):
        return v * jax.nn.sigmoid(v)

    def se(h, w1r, b1r, w2r, b2r):
        # squeeze: per-sample mean over L = one matmul with the pooling matrix
        pooled = jnp.dot(h, avg_ref[...], preferred_element_type=f32)      # (C, Bt)
        u = silu(jnp.dot(w1r[...], pooled, preferred_element_type=f32) + b1r[...])
        gate = jax.nn.sigmoid(
            jnp.dot(w2r[...], u, preferred_element_type=f32) + b2r[...])   # (C, Bt)
        # excite: broadcast the per-sample gate back over L, all in f32
        return h * jnp.dot(gate, exp_ref[...], preferred_element_type=f32)

    # ---- MBConv 1: Conv1d(k=3, s=2, p=1) + BN + SiLU (BN scale pre-folded) --
    z1 = sh1_ref[...]                                                       # (H1, 1)
    for k in range(3):
        tap = jnp.dot(x, t1_ref[k], preferred_element_type=f32)            # (Cin, N1)
        z1 = z1 + jnp.dot(w1_ref[k], tap, preferred_element_type=f32)      # (H1,  N1)
    h1 = silu(z1)

    # ---- SE 1 + pointwise 1x1 + BN ----
    h1 = se(h1, se1w1_ref, se1b1_ref, se1w2_ref, se1b2_ref)
    x1 = jnp.dot(p1_ref[...], h1, preferred_element_type=f32) + sh2_ref[...]  # (Cout, N1)

    # ---- MBConv 2: Conv1d(k=3, s=1, p=1) + BN + SiLU ----
    prv = jnp.dot(x1, t2_ref[0], preferred_element_type=f32)               # x1[:, j-1]
    nxt = jnp.dot(x1, t2_ref[1], preferred_element_type=f32)               # x1[:, j+1]
    z2 = (jnp.dot(w2_ref[0], prv, preferred_element_type=f32)
          + jnp.dot(w2_ref[1], x1, preferred_element_type=f32)
          + jnp.dot(w2_ref[2], nxt, preferred_element_type=f32)
          + sh3_ref[...])
    h2 = silu(z2)                                                           # (H2, N1)

    # ---- SE 2 + pointwise 1x1 + BN + identity skip ----
    h2 = se(h2, se2w1_ref, se2b1_ref, se2w2_ref, se2b2_ref)
    x2 = jnp.dot(p2_ref[...], h2, preferred_element_type=f32) + sh4_ref[...] + x1

    # ---- 1x1 proj + LayerNorm over the channel (sublane) dim ----
    z = jnp.dot(proj_ref[...], x2, preferred_element_type=f32)              # (Cout, N1)
    mu = jnp.mean(z, axis=0, keepdims=True)
    var = jnp.mean(jnp.square(z - mu), axis=0, keepdims=True)
    zn = (z - mu) * lax.rsqrt(var + 1e-5)
    o_ref[...] = (zn * lng_ref[...] + lnb_ref[...]).astype(o_ref.dtype)


# ---------------------------------------------------------------------------
# Wrapper: BN folding, constant tap / pool matrices, lane-dense layout, call.
# ---------------------------------------------------------------------------
def fold_bn(gamma, beta, mean, var, eps=1e-5):
    scale = gamma / jnp.sqrt(var + eps)
    return scale, beta - mean * scale


def _conv_tap_mats(l_in, l_out, stride, taps, bt):
    """Per-tap selection matrices (bt*l_in, bt*l_out) for a pad=1 Conv1d.

    (x_block @ T[k]) gathers x[:, stride*j + k - 1] (0 where out of range),
    block-diagonal over the bt samples packed along the lane dim."""
    t = np.zeros((len(taps), bt * l_in, bt * l_out), np.float32)
    for tk, k in enumerate(taps):
        for j in range(l_out):
            src = stride * j + k - 1
            if 0 <= src < l_in:
                for s in range(bt):
                    t[tk, s * l_in + src, s * l_out + j] = 1.0
    return jnp.asarray(t)


def _pool_mats(l_seg, bt):
    """avg: (bt*l_seg, bt) per-sample mean;  unpool: (bt, bt*l_seg) broadcast."""
    avg = np.zeros((bt * l_seg, bt), np.float32)
    unpool = np.zeros((bt, bt * l_seg), np.float32)
    for s in range(bt):
        avg[s * l_seg:(s + 1) * l_seg, s] = 1.0 / l_seg
        unpool[s, s * l_seg:(s + 1) * l_seg] = 1.0
    return jnp.asarray(avg), jnp.asarray(unpool)


def _pick_block_batch(batch, length, target_lanes=512):
    """Largest Bt dividing batch with Bt*length <= target_lanes lanes, keeping
    >= 2 grid steps when batch >= 2 (so both v7x TensorCores get work)."""
    best = 1
    for bt in range(1, batch + 1):
        if batch % bt:
            continue
        if bt * length > max(target_lanes, length):
            continue
        if batch >= 2 and batch // bt < 2:
            continue
        best = bt
    return best


def conv_embedding_pallas(x, p):
    B, Cin, L = x.shape
    f32 = jnp.float32
    Lout = (L + 2 - 3) // 2 + 1                       # after the stride-2 conv
    Bt = _pick_block_batch(B, L)
    nb = B // Bt
    Nin, N1 = Bt * L, Bt * Lout

    H1 = p["c1_w"].shape[0]
    Cout = p["p1_w"].shape[0]
    H2 = p["c2_w"].shape[0]
    HS1 = p["se1_w1"].shape[0]
    HS2 = p["se2_w1"].shape[0]

    # --- fold BatchNorm (inference) scales into the preceding weights -------
    s1, b1 = fold_bn(*p["bn1"])
    s2, b2 = fold_bn(*p["bn2"])
    s3, b3 = fold_bn(*p["bn3"])
    s4, b4 = fold_bn(*p["bn4"])
    w1f = jnp.transpose(p["c1_w"], (2, 0, 1)).astype(f32) * s1[None, :, None]  # (3,H1,Cin)
    w2f = jnp.transpose(p["c2_w"], (2, 0, 1)).astype(f32) * s3[None, :, None]  # (3,H2,Cout)
    p1f = p["p1_w"].astype(f32) * s2[:, None]
    p2f = p["p2_w"].astype(f32) * s4[:, None]

    # --- small constant matrices: conv taps, SE pool / un-pool --------------
    t1 = _conv_tap_mats(L, Lout, 2, (0, 1, 2), Bt)     # (3, Nin, N1)
    t2 = _conv_tap_mats(Lout, Lout, 1, (0, 2), Bt)     # (2, N1, N1)  mid tap = identity
    pool_m, unpool_m = _pool_mats(Lout, Bt)

    col = lambda v: v.reshape(-1, 1).astype(f32)
    consts = [
        t1, w1f, col(b1), pool_m, unpool_m,
        p["se1_w1"].astype(f32), col(p["se1_b1"]),
        p["se1_w2"].astype(f32), col(p["se1_b2"]),
        p1f, col(b2),
        t2, w2f, col(b3),
        p["se2_w1"].astype(f32), col(p["se2_b1"]),
        p["se2_w2"].astype(f32), col(p["se2_b2"]),
        p2f, col(b4),
        p["proj_w"].astype(f32), col(p["ln_g"]), col(p["ln_b"]),
    ]

    # --- lane-dense layout: pack Bt samples along the lane dim --------------
    x_blk = x.reshape(nb, Bt, Cin, L).transpose(0, 2, 1, 3).reshape(nb, Cin, Nin)

    in_specs = [pl.BlockSpec((None, Cin, Nin), lambda i: (i, 0, 0))]
    # Weights / constants use constant index maps -> one DMA, VMEM-resident.
    in_specs += [pl.BlockSpec(c.shape, lambda i, n=c.ndim: (0,) * n) for c in consts]
    out_specs = pl.BlockSpec((None, Cout, N1), lambda i: (i, 0, 0))

    itemsize = x.dtype.itemsize
    mm = (3 * Cin * Nin * N1 + 3 * H1 * Cin * N1              # conv1 (taps + conv)
          + H1 * N1 * Bt + 2 * HS1 * H1 * Bt + H1 * Bt * N1   # SE 1
          + Cout * H1 * N1                                    # pointwise 1
          + 2 * Cout * N1 * N1 + 3 * H2 * Cout * N1           # conv2 (shifts + conv)
          + H2 * N1 * Bt + 2 * HS2 * H2 * Bt + H2 * Bt * N1   # SE 2
          + Cout * H2 * N1 + Cout * Cout * N1)                # pointwise 2 + proj
    cost = pl.CostEstimate(
        flops=int(nb * (2 * mm + 10 * (H1 + H2 + 3 * Cout) * N1)),
        transcendentals=int(nb * N1 * (2 * (H1 + H2) + 1)),
        bytes_accessed=int((B * Cin * L + B * Cout * Lout) * itemsize
                           + sum(int(np.prod(c.shape)) * c.dtype.itemsize
                                 for c in consts)))

    out_blk = pl.pallas_call(
        _conv_embedding_kernel,
        grid=(nb,),
        in_specs=in_specs,
        out_specs=out_specs,
        out_shape=jax.ShapeDtypeStruct((nb, Cout, N1), x.dtype),
        compiler_params=pltpu.CompilerParams(
            dimension_semantics=("parallel",)),
        cost_estimate=cost,
    )(x_blk, *consts)

    # un-pack the lane dim back to (B, Cout, Lout)
    return (out_blk.reshape(nb, Cout, Bt, Lout)
            .transpose(0, 2, 1, 3).reshape(B, Cout, Lout))


# ---------------------------------------------------------------------------
# Pure-JAX reference (mirrors the PyTorch forward, eval-mode BatchNorm).
# ---------------------------------------------------------------------------
def conv_embedding_ref(x, p):
    eps = 1e-5

    def bn(h, g, b, m, v):
        return ((h - m[None, :, None]) / jnp.sqrt(v[None, :, None] + eps)
                * g[None, :, None] + b[None, :, None])

    def silu(h):
        return h * jax.nn.sigmoid(h)

    def conv3(h, w, stride):
        Bb, Cin, Lin = h.shape
        Lo = (Lin + 2 - 3) // stride + 1
        hp = jnp.pad(h, ((0, 0), (0, 0), (1, 1)))
        out = jnp.zeros((Bb, w.shape[0], Lo), jnp.float32)
        for k in range(3):
            hk = hp[:, :, k: k + stride * (Lo - 1) + 1: stride]
            out = out + jnp.einsum("oi,bil->bol", w[:, :, k], hk)
        return out

    def pconv(h, w):
        return jnp.einsum("oi,bil->bol", w, h)

    def se(h, w1, b1, w2, b2):
        y = jnp.mean(h, axis=-1)
        u = silu(y @ w1.T + b1)
        s = jax.nn.sigmoid(u @ w2.T + b2)
        return h * s[:, :, None]

    h = silu(bn(conv3(x, p["c1_w"], 2), *p["bn1"]))
    h = se(h, p["se1_w1"], p["se1_b1"], p["se1_w2"], p["se1_b2"])
    x1 = bn(pconv(h, p["p1_w"]), *p["bn2"])
    h = silu(bn(conv3(x1, p["c2_w"], 1), *p["bn3"]))
    h = se(h, p["se2_w1"], p["se2_b1"], p["se2_w2"], p["se2_b2"])
    x2 = x1 + bn(pconv(h, p["p2_w"]), *p["bn4"])
    z = jnp.transpose(pconv(x2, p["proj_w"]), (0, 2, 1))        # (B, L, C)
    mu = jnp.mean(z, axis=-1, keepdims=True)
    var = jnp.mean((z - mu) ** 2, axis=-1, keepdims=True)
    zn = (z - mu) / jnp.sqrt(var + eps) * p["ln_g"] + p["ln_b"]
    return jnp.transpose(zn, (0, 2, 1))


if __name__ == "__main__":
    # ConvEmbedding(in_channels=4, out_channels=8, depths=2, stage=1)
    B, C_IN, L = 2, 4, 16
    C_OUT = 8
    hidden1 = round(C_IN * 2)                       # 8
    hidden2 = round(C_OUT * 2)                      # 16
    se1_h = _make_divisible(C_IN // 4, 8)           # 8
    se2_h = _make_divisible(C_OUT // 4, 8)          # 8

    keys = iter(jax.random.split(jax.random.PRNGKey(0), 40))
    nrm = lambda shape, s=0.3: s * jax.random.normal(next(keys), shape,
                                                     dtype=jnp.float32)
    uni = lambda shape: jax.random.uniform(next(keys), shape, dtype=jnp.float32,
                                           minval=0.5, maxval=1.5)

    p = dict(
        c1_w=nrm((hidden1, C_IN, 3)),
        bn1=(uni((hidden1,)), nrm((hidden1,), 0.1),
             nrm((hidden1,), 0.1), uni((hidden1,))),
        se1_w1=nrm((se1_h, hidden1)), se1_b1=nrm((se1_h,), 0.1),
        se1_w2=nrm((hidden1, se1_h)), se1_b2=nrm((hidden1,), 0.1),
        p1_w=nrm((C_OUT, hidden1)),
        bn2=(uni((C_OUT,)), nrm((C_OUT,), 0.1),
             nrm((C_OUT,), 0.1), uni((C_OUT,))),
        c2_w=nrm((hidden2, C_OUT, 3)),
        bn3=(uni((hidden2,)), nrm((hidden2,), 0.1),
             nrm((hidden2,), 0.1), uni((hidden2,))),
        se2_w1=nrm((se2_h, hidden2)), se2_b1=nrm((se2_h,), 0.1),
        se2_w2=nrm((hidden2, se2_h)), se2_b2=nrm((hidden2,), 0.1),
        p2_w=nrm((C_OUT, hidden2)),
        bn4=(uni((C_OUT,)), nrm((C_OUT,), 0.1),
             nrm((C_OUT,), 0.1), uni((C_OUT,))),
        proj_w=nrm((C_OUT, C_OUT)),
        ln_g=uni((C_OUT,)),
        ln_b=nrm((C_OUT,), 0.1),
    )
    x = jax.random.normal(next(keys), (B, C_IN, L), dtype=jnp.float32)

    out = jax.jit(conv_embedding_pallas)(x, p)
    out = jax.block_until_ready(out)
    ref = conv_embedding_ref(x, p)

    L_OUT = (L + 2 - 3) // 2 + 1                    # 8 after the stride-2 conv
    assert out.shape == (B, C_OUT, L_OUT), out.shape
    err = float(jnp.max(jnp.abs(out - ref)))
    assert jnp.allclose(out, ref, atol=2e-3, rtol=2e-3), \
        f"mismatch vs reference, max abs err {err}"

    print("KERNEL_OK")
</pallas_src>

<mosaic_0001>
module attributes {stable_mosaic.version = 11 : i64} {
  func.func @_conv_embedding_kernel(%arg0: i32, %arg1: memref<1x4x16xf32, #tpu.memory_space<vmem>>, %arg2: memref<3x16x8xf32, #tpu.memory_space<vmem>>, %arg3: memref<3x8x4xf32, #tpu.memory_space<vmem>>, %arg4: memref<8x1xf32, #tpu.memory_space<vmem>>, %arg5: memref<8x1xf32, #tpu.memory_space<vmem>>, %arg6: memref<1x8xf32, #tpu.memory_space<vmem>>, %arg7: memref<8x8xf32, #tpu.memory_space<vmem>>, %arg8: memref<8x1xf32, #tpu.memory_space<vmem>>, %arg9: memref<8x8xf32, #tpu.memory_space<vmem>>, %arg10: memref<8x1xf32, #tpu.memory_space<vmem>>, %arg11: memref<8x8xf32, #tpu.memory_space<vmem>>, %arg12: memref<8x1xf32, #tpu.memory_space<vmem>>, %arg13: memref<2x8x8xf32, #tpu.memory_space<vmem>>, %arg14: memref<3x16x8xf32, #tpu.memory_space<vmem>>, %arg15: memref<16x1xf32, #tpu.memory_space<vmem>>, %arg16: memref<8x16xf32, #tpu.memory_space<vmem>>, %arg17: memref<8x1xf32, #tpu.memory_space<vmem>>, %arg18: memref<16x8xf32, #tpu.memory_space<vmem>>, %arg19: memref<16x1xf32, #tpu.memory_space<vmem>>, %arg20: memref<8x16xf32, #tpu.memory_space<vmem>>, %arg21: memref<8x1xf32, #tpu.memory_space<vmem>>, %arg22: memref<8x8xf32, #tpu.memory_space<vmem>>, %arg23: memref<8x1xf32, #tpu.memory_space<vmem>>, %arg24: memref<8x1xf32, #tpu.memory_space<vmem>>, %arg25: memref<1x8x8xf32, #tpu.memory_space<vmem>>) attributes {dimension_semantics = [#tpu.dimension_semantics<parallel>], iteration_bounds = array<i64: 2>, scalar_prefetch = 0 : i64, scratch_operands = 0 : i64, tpu.core_type = #tpu.core_type<tc>, window_params = [{transform_indices = @transform_0, window_bounds = array<i64: 1, 4, 16>}, {pipeline_mode = #tpu.pipeline_mode<synchronous>, transform_indices = @transform_1, window_bounds = array<i64: 3, 16, 8>}, {pipeline_mode = #tpu.pipeline_mode<synchronous>, transform_indices = @transform_2, window_bounds = array<i64: 3, 8, 4>}, {pipeline_mode = #tpu.pipeline_mode<synchronous>, transform_indices = @transform_3, window_bounds = array<i64: 8, 1>}, {pipeline_mode = #tpu.pipeline_mode<synchronous>, transform_indices = @transform_4, window_bounds = array<i64: 8, 1>}, {pipeline_mode = #tpu.pipeline_mode<synchronous>, transform_indices = @transform_5, window_bounds = array<i64: 1, 8>}, {pipeline_mode = #tpu.pipeline_mode<synchronous>, transform_indices = @transform_6, window_bounds = array<i64: 8, 8>}, {pipeline_mode = #tpu.pipeline_mode<synchronous>, transform_indices = @transform_7, window_bounds = array<i64: 8, 1>}, {pipeline_mode = #tpu.pipeline_mode<synchronous>, transform_indices = @transform_8, window_bounds = array<i64: 8, 8>}, {pipeline_mode = #tpu.pipeline_mode<synchronous>, transform_indices = @transform_9, window_bounds = array<i64: 8, 1>}, {pipeline_mode = #tpu.pipeline_mode<synchronous>, transform_indices = @transform_10, window_bounds = array<i64: 8, 8>}, {pipeline_mode = #tpu.pipeline_mode<synchronous>, transform_indices = @transform_11, window_bounds = array<i64: 8, 1>}, {pipeline_mode = #tpu.pipeline_mode<synchronous>, transform_indices = @transform_12, window_bounds = array<i64: 2, 8, 8>}, {pipeline_mode = #tpu.pipeline_mode<synchronous>, transform_indices = @transform_13, window_bounds = array<i64: 3, 16, 8>}, {pipeline_mode = #tpu.pipeline_mode<synchronous>, transform_indices = @transform_14, window_bounds = array<i64: 16, 1>}, {pipeline_mode = #tpu.pipeline_mode<synchronous>, transform_indices = @transform_15, window_bounds = array<i64: 8, 16>}, {pipeline_mode = #tpu.pipeline_mode<synchronous>, transform_indices = @transform_16, window_bounds = array<i64: 8, 1>}, {pipeline_mode = #tpu.pipeline_mode<synchronous>, transform_indices = @transform_17, window_bounds = array<i64: 16, 8>}, {pipeline_mode = #tpu.pipeline_mode<synchronous>, transform_indices = @transform_18, window_bounds = array<i64: 16, 1>}, {pipeline_mode = #tpu.pipeline_mode<synchronous>, transform_indices = @transform_19, window_bounds = array<i64: 8, 16>}, {pipeline_mode = #tpu.pipeline_mode<synchronous>, transform_indices = @transform_20, window_bounds = array<i64: 8, 1>}, {pipeline_mode = #tpu.pipeline_mode<synchronous>, transform_indices = @transform_21, window_bounds = array<i64: 8, 8>}, {pipeline_mode = #tpu.pipeline_mode<synchronous>, transform_indices = @transform_22, window_bounds = array<i64: 8, 1>}, {pipeline_mode = #tpu.pipeline_mode<synchronous>, transform_indices = @transform_23, window_bounds = array<i64: 8, 1>}, {transform_indices = @transform_24, window_bounds = array<i64: 1, 8, 8>}]} {
    %c0 = arith.constant 0 : index
    %c0_0 = arith.constant 0 : index
    %c0_1 = arith.constant 0 : index
    %0 = vector.load %arg1[%c0, %c0_0, %c0_1] : memref<1x4x16xf32, #tpu.memory_space<vmem>>, vector<1x4x16xf32>
    %1 = vector.shape_cast %0 : vector<1x4x16xf32> to vector<4x16xf32>
    %c0_2 = arith.constant 0 : index
    %c0_3 = arith.constant 0 : index
    %2 = vector.load %arg4[%c0_2, %c0_3] : memref<8x1xf32, #tpu.memory_space<vmem>>, vector<8x1xf32>
    %c0_4 = arith.constant 0 : index
    %c0_5 = arith.constant 0 : index
    %c0_6 = arith.constant 0 : index
    %3 = vector.load %arg2[%c0_4, %c0_5, %c0_6] : memref<3x16x8xf32, #tpu.memory_space<vmem>>, vector<1x16x8xf32>
    %4 = vector.shape_cast %3 : vector<1x16x8xf32> to vector<16x8xf32>
    %cst = arith.constant dense<0.000000e+00> : vector<4x8xf32>
    %5 = tpu.matmul %1, %4, %cst {dimension_numbers = #tpu.dot_dimension_numbers<[1], [0], [0], [1], [0, 0, 1, 1], [], []>} : vector<4x16xf32>, vector<16x8xf32>, vector<4x8xf32> -> vector<4x8xf32>
    %c0_7 = arith.constant 0 : index
    %c0_8 = arith.constant 0 : index
    %c0_9 = arith.constant 0 : index
    %6 = vector.load %arg3[%c0_7, %c0_8, %c0_9] : memref<3x8x4xf32, #tpu.memory_space<vmem>>, vector<1x8x4xf32>
    %7 = vector.shape_cast %6 : vector<1x8x4xf32> to vector<8x4xf32>
    %cst_10 = arith.constant dense<0.000000e+00> : vector<8x8xf32>
    %8 = tpu.matmul %7, %5, %cst_10 {dimension_numbers = #tpu.dot_dimension_numbers<[1], [0], [0], [1], [0, 0, 1, 1], [], []>} : vector<8x4xf32>, vector<4x8xf32>, vector<8x8xf32> -> vector<8x8xf32>
    %9 = vector.broadcast %2 : vector<8x1xf32> to vector<8x8xf32>
    %10 = arith.addf %9, %8 : vector<8x8xf32>
    %c1 = arith.constant 1 : index
    %c0_11 = arith.constant 0 : index
    %c0_12 = arith.constant 0 : index
    %11 = vector.load %arg2[%c1, %c0_11, %c0_12] : memref<3x16x8xf32, #tpu.memory_space<vmem>>, vector<1x16x8xf32>
    %12 = vector.shape_cast %11 : vector<1x16x8xf32> to vector<16x8xf32>
    %cst_13 = arith.constant dense<0.000000e+00> : vector<4x8xf32>
    %13 = tpu.matmul %1, %12, %cst_13 {dimension_numbers = #tpu.dot_dimension_numbers<[1], [0], [0], [1], [0, 0, 1, 1], [], []>} : vector<4x16xf32>, vector<16x8xf32>, vector<4x8xf32> -> vector<4x8xf32>
    %c1_14 = arith.constant 1 : index
    %c0_15 = arith.constant 0 : index
    %c0_16 = arith.constant 0 : index
    %14 = vector.load %arg3[%c1_14, %c0_15, %c0_16] : memref<3x8x4xf32, #tpu.memory_space<vmem>>, vector<1x8x4xf32>
    %15 = vector.shape_cast %14 : vector<1x8x4xf32> to vector<8x4xf32>
    %cst_17 = arith.constant dense<0.000000e+00> : vector<8x8xf32>
    %16 = tpu.matmul %15, %13, %cst_17 {dimension_numbers = #tpu.dot_dimension_numbers<[1], [0], [0], [1], [0, 0, 1, 1], [], []>} : vector<8x4xf32>, vector<4x8xf32>, vector<8x8xf32> -> vector<8x8xf32>
    %17 = arith.addf %10, %16 : vector<8x8xf32>
    %c2 = arith.constant 2 : index
    %c0_18 = arith.constant 0 : index
    %c0_19 = arith.constant 0 : index
    %18 = vector.load %arg2[%c2, %c0_18, %c0_19] : memref<3x16x8xf32, #tpu.memory_space<vmem>>, vector<1x16x8xf32>
    %19 = vector.shape_cast %18 : vector<1x16x8xf32> to vector<16x8xf32>
    %cst_20 = arith.constant dense<0.000000e+00> : vector<4x8xf32>
    %20 = tpu.matmul %1, %19, %cst_20 {dimension_numbers = #tpu.dot_dimension_numbers<[1], [0], [0], [1], [0, 0, 1, 1], [], []>} : vector<4x16xf32>, vector<16x8xf32>, vector<4x8xf32> -> vector<4x8xf32>
    %c2_21 = arith.constant 2 : index
    %c0_22 = arith.constant 0 : index
    %c0_23 = arith.constant 0 : index
    %21 = vector.load %arg3[%c2_21, %c0_22, %c0_23] : memref<3x8x4xf32, #tpu.memory_space<vmem>>, vector<1x8x4xf32>
    %22 = vector.shape_cast %21 : vector<1x8x4xf32> to vector<8x4xf32>
    %cst_24 = arith.constant dense<0.000000e+00> : vector<8x8xf32>
    %23 = tpu.matmul %22, %20, %cst_24 {dimension_numbers = #tpu.dot_dimension_numbers<[1], [0], [0], [1], [0, 0, 1, 1], [], []>} : vector<8x4xf32>, vector<4x8xf32>, vector<8x8xf32> -> vector<8x8xf32>
    %24 = arith.addf %17, %23 : vector<8x8xf32>
    %25 = arith.negf %24 : vector<8x8xf32>
    %26 = math.exp %25 : vector<8x8xf32>
    %cst_25 = arith.constant 1.000000e+00 : f32
    %27 = vector.broadcast %cst_25 : f32 to vector<8x8xf32>
    %28 = arith.addf %27, %26 : vector<8x8xf32>
    %29 = arith.divf %27, %28 : vector<8x8xf32>
    %30 = arith.mulf %24, %29 : vector<8x8xf32>
    %c0_26 = arith.constant 0 : index
    %c0_27 = arith.constant 0 : index
    %31 = vector.load %arg5[%c0_26, %c0_27] : memref<8x1xf32, #tpu.memory_space<vmem>>, vector<8x1xf32>
    %cst_28 = arith.constant dense<0.000000e+00> : vector<8x1xf32>
    %32 = tpu.matmul %30, %31, %cst_28 {dimension_numbers = #tpu.dot_dimension_numbers<[1], [0], [0], [1], [0, 0, 1, 1], [], []>} : vector<8x8xf32>, vector<8x1xf32>, vector<8x1xf32> -> vector<8x1xf32>
    %c0_29 = arith.constant 0 : index
    %c0_30 = arith.constant 0 : index
    %33 = vector.load %arg7[%c0_29, %c0_30] : memref<8x8xf32, #tpu.memory_space<vmem>>, vector<8x8xf32>
    %cst_31 = arith.constant dense<0.000000e+00> : vector<8x1xf32>
    %34 = tpu.matmul %33, %32, %cst_31 {dimension_numbers = #tpu.dot_dimension_numbers<[1], [0], [0], [1], [0, 0, 1, 1], [], []>} : vector<8x8xf32>, vector<8x1xf32>, vector<8x1xf32> -> vector<8x1xf32>
    %c0_32 = arith.constant 0 : index
    %c0_33 = arith.constant 0 : index
    %35 = vector.load %arg8[%c0_32, %c0_33] : memref<8x1xf32, #tpu.memory_space<vmem>>, vector<8x1xf32>
    %36 = arith.addf %34, %35 : vector<8x1xf32>
    %37 = arith.negf %36 : vector<8x1xf32>
    %38 = math.exp %37 : vector<8x1xf32>
    %cst_34 = arith.constant 1.000000e+00 : f32
    %39 = vector.broadcast %cst_34 : f32 to vector<8x1xf32>
    %40 = arith.addf %39, %38 : vector<8x1xf32>
    %41 = arith.divf %39, %40 : vector<8x1xf32>
    %42 = arith.mulf %36, %41 : vector<8x1xf32>
    %c0_35 = arith.constant 0 : index
    %c0_36 = arith.constant 0 : index
    %43 = vector.load %arg9[%c0_35, %c0_36] : memref<8x8xf32, #tpu.memory_space<vmem>>, vector<8x8xf32>
    %cst_37 = arith.constant dense<0.000000e+00> : vector<8x1xf32>
    %44 = tpu.matmul %43, %42, %cst_37 {dimension_numbers = #tpu.dot_dimension_numbers<[1], [0], [0], [1], [0, 0, 1, 1], [], []>} : vector<8x8xf32>, vector<8x1xf32>, vector<8x1xf32> -> vector<8x1xf32>
    %c0_38 = arith.constant 0 : index
    %c0_39 = arith.constant 0 : index
    %45 = vector.load %arg10[%c0_38, %c0_39] : memref<8x1xf32, #tpu.memory_space<vmem>>, vector<8x1xf32>
    %46 = arith.addf %44, %45 : vector<8x1xf32>
    %47 = arith.negf %46 : vector<8x1xf32>
    %48 = math.exp %47 : vector<8x1xf32>
    %cst_40 = arith.constant 1.000000e+00 : f32
    %49 = vector.broadcast %cst_40 : f32 to vector<8x1xf32>
    %50 = arith.addf %49, %48 : vector<8x1xf32>
    %51 = arith.divf %49, %50 : vector<8x1xf32>
    %c0_41 = arith.constant 0 : index
    %c0_42 = arith.constant 0 : index
    %52 = vector.load %arg6[%c0_41, %c0_42] : memref<1x8xf32, #tpu.memory_space<vmem>>, vector<1x8xf32>
    %cst_43 = arith.constant dense<0.000000e+00> : vector<8x8xf32>
    %53 = tpu.matmul %51, %52, %cst_43 {dimension_numbers = #tpu.dot_dimension_numbers<[1], [0], [0], [1], [0, 0, 1, 1], [], []>} : vector<8x1xf32>, vector<1x8xf32>, vector<8x8xf32> -> vector<8x8xf32>
    %54 = arith.mulf %30, %53 : vector<8x8xf32>
    %c0_44 = arith.constant 0 : index
    %c0_45 = arith.constant 0 : index
    %55 = vector.load %arg11[%c0_44, %c0_45] : memref<8x8xf32, #tpu.memory_space<vmem>>, vector<8x8xf32>
    %cst_46 = arith.constant dense<0.000000e+00> : vector<8x8xf32>
    %56 = tpu.matmul %55, %54, %cst_46 {dimension_numbers = #tpu.dot_dimension_numbers<[1], [0], [0], [1], [0, 0, 1, 1], [], []>} : vector<8x8xf32>, vector<8x8xf32>, vector<8x8xf32> -> vector<8x8xf32>
    %c0_47 = arith.constant 0 : index
    %c0_48 = arith.constant 0 : index
    %57 = vector.load %arg12[%c0_47, %c0_48] : memref<8x1xf32, #tpu.memory_space<vmem>>, vector<8x1xf32>
    %58 = vector.broadcast %57 : vector<8x1xf32> to vector<8x8xf32>
    %59 = arith.addf %56, %58 : vector<8x8xf32>
    %c0_49 = arith.constant 0 : index
    %c0_50 = arith.constant 0 : index
    %c0_51 = arith.constant 0 : index
    %60 = vector.load %arg13[%c0_49, %c0_50, %c0_51] : memref<2x8x8xf32, #tpu.memory_space<vmem>>, vector<1x8x8xf32>
    %61 = vector.shape_cast %60 : vector<1x8x8xf32> to vector<8x8xf32>
    %cst_52 = arith.constant dense<0.000000e+00> : vector<8x8xf32>
    %62 = tpu.matmul %59, %61, %cst_52 {dimension_numbers = #tpu.dot_dimension_numbers<[1], [0], [0], [1], [0, 0, 1, 1], [], []>} : vector<8x8xf32>, vector<8x8xf32>, vector<8x8xf32> -> vector<8x8xf32>
    %c1_53 = arith.constant 1 : index
    %c0_54 = arith.constant 0 : index
    %c0_55 = arith.constant 0 : index
    %63 = vector.load %arg13[%c1_53, %c0_54, %c0_55] : memref<2x8x8xf32, #tpu.memory_space<vmem>>, vector<1x8x8xf32>
    %64 = vector.shape_cast %63 : vector<1x8x8xf32> to vector<8x8xf32>
    %cst_56 = arith.constant dense<0.000000e+00> : vector<8x8xf32>
    %65 = tpu.matmul %59, %64, %cst_56 {dimension_numbers = #tpu.dot_dimension_numbers<[1], [0], [0], [1], [0, 0, 1, 1], [], []>} : vector<8x8xf32>, vector<8x8xf32>, vector<8x8xf32> -> vector<8x8xf32>
    %c0_57 = arith.constant 0 : index
    %c0_58 = arith.constant 0 : index
    %c0_59 = arith.constant 0 : index
    %66 = vector.load %arg14[%c0_57, %c0_58, %c0_59] : memref<3x16x8xf32, #tpu.memory_space<vmem>>, vector<1x16x8xf32>
    %67 = vector.shape_cast %66 : vector<1x16x8xf32> to vector<16x8xf32>
    %cst_60 = arith.constant dense<0.000000e+00> : vector<16x8xf32>
    %68 = tpu.matmul %67, %62, %cst_60 {dimension_numbers = #tpu.dot_dimension_numbers<[1], [0], [0], [1], [0, 0, 1, 1], [], []>} : vector<16x8xf32>, vector<8x8xf32>, vector<16x8xf32> -> vector<16x8xf32>
    %c1_61 = arith.constant 1 : index
    %c0_62 = arith.constant 0 : index
    %c0_63 = arith.constant 0 : index
    %69 = vector.load %arg14[%c1_61, %c0_62, %c0_63] : memref<3x16x8xf32, #tpu.memory_space<vmem>>, vector<1x16x8xf32>
    %70 = vector.shape_cast %69 : vector<1x16x8xf32> to vector<16x8xf32>
    %cst_64 = arith.constant dense<0.000000e+00> : vector<16x8xf32>
    %71 = tpu.matmul %70, %59, %cst_64 {dimension_numbers = #tpu.dot_dimension_numbers<[1], [0], [0], [1], [0, 0, 1, 1], [], []>} : vector<16x8xf32>, vector<8x8xf32>, vector<16x8xf32> -> vector<16x8xf32>
    %72 = arith.addf %68, %71 : vector<16x8xf32>
    %c2_65 = arith.constant 2 : index
    %c0_66 = arith.constant 0 : index
    %c0_67 = arith.constant 0 : index
    %73 = vector.load %arg14[%c2_65, %c0_66, %c0_67] : memref<3x16x8xf32, #tpu.memory_space<vmem>>, vector<1x16x8xf32>
    %74 = vector.shape_cast %73 : vector<1x16x8xf32> to vector<16x8xf32>
    %cst_68 = arith.constant dense<0.000000e+00> : vector<16x8xf32>
    %75 = tpu.matmul %74, %65, %cst_68 {dimension_numbers = #tpu.dot_dimension_numbers<[1], [0], [0], [1], [0, 0, 1, 1], [], []>} : vector<16x8xf32>, vector<8x8xf32>, vector<16x8xf32> -> vector<16x8xf32>
    %76 = arith.addf %72, %75 : vector<16x8xf32>
    %c0_69 = arith.constant 0 : index
    %c0_70 = arith.constant 0 : index
    %77 = vector.load %arg15[%c0_69, %c0_70] : memref<16x1xf32, #tpu.memory_space<vmem>>, vector<16x1xf32>
    %78 = vector.broadcast %77 : vector<16x1xf32> to vector<16x8xf32>
    %79 = arith.addf %76, %78 : vector<16x8xf32>
    %80 = arith.negf %79 : vector<16x8xf32>
    %81 = math.exp %80 : vector<16x8xf32>
    %cst_71 = arith.constant 1.000000e+00 : f32
    %82 = vector.broadcast %cst_71 : f32 to vector<16x8xf32>
    %83 = arith.addf %82, %81 : vector<16x8xf32>
    %84 = arith.divf %82, %83 : vector<16x8xf32>
    %85 = arith.mulf %79, %84 : vector<16x8xf32>
    %c0_72 = arith.constant 0 : index
    %c0_73 = arith.constant 0 : index
    %86 = vector.load %arg5[%c0_72, %c0_73] : memref<8x1xf32, #tpu.memory_space<vmem>>, vector<8x1xf32>
    %cst_74 = arith.constant dense<0.000000e+00> : vector<16x1xf32>
    %87 = tpu.matmul %85, %86, %cst_74 {dimension_numbers = #tpu.dot_dimension_numbers<[1], [0], [0], [1], [0, 0, 1, 1], [], []>} : vector<16x8xf32>, vector<8x1xf32>, vector<16x1xf32> -> vector<16x1xf32>
    %c0_75 = arith.constant 0 : index
    %c0_76 = arith.constant 0 : index
    %88 = vector.load %arg16[%c0_75, %c0_76] : memref<8x16xf32, #tpu.memory_space<vmem>>, vector<8x16xf32>
    %cst_77 = arith.constant dense<0.000000e+00> : vector<8x1xf32>
    %89 = tpu.matmul %88, %87, %cst_77 {dimension_numbers = #tpu.dot_dimension_numbers<[1], [0], [0], [1], [0, 0, 1, 1], [], []>} : vector<8x16xf32>, vector<16x1xf32>, vector<8x1xf32> -> vector<8x1xf32>
    %c0_78 = arith.constant 0 : index
    %c0_79 = arith.constant 0 : index
    %90 = vector.load %arg17[%c0_78, %c0_79] : memref<8x1xf32, #tpu.memory_space<vmem>>, vector<8x1xf32>
    %91 = arith.addf %89, %90 : vector<8x1xf32>
    %92 = arith.negf %91 : vector<8x1xf32>
    %93 = math.exp %92 : vector<8x1xf32>
    %cst_80 = arith.constant 1.000000e+00 : f32
    %94 = vector.broadcast %cst_80 : f32 to vector<8x1xf32>
    %95 = arith.addf %94, %93 : vector<8x1xf32>
    %96 = arith.divf %94, %95 : vector<8x1xf32>
    %97 = arith.mulf %91, %96 : vector<8x1xf32>
    %c0_81 = arith.constant 0 : index
    %c0_82 = arith.constant 0 : index
    %98 = vector.load %arg18[%c0_81, %c0_82] : memref<16x8xf32, #tpu.memory_space<vmem>>, vector<16x8xf32>
    %cst_83 = arith.constant dense<0.000000e+00> : vector<16x1xf32>
    %99 = tpu.matmul %98, %97, %cst_83 {dimension_numbers = #tpu.dot_dimension_numbers<[1], [0], [0], [1], [0, 0, 1, 1], [], []>} : vector<16x8xf32>, vector<8x1xf32>, vector<16x1xf32> -> vector<16x1xf32>
    %c0_84 = arith.constant 0 : index
    %c0_85 = arith.constant 0 : index
    %100 = vector.load %arg19[%c0_84, %c0_85] : memref<16x1xf32, #tpu.memory_space<vmem>>, vector<16x1xf32>
    %101 = arith.addf %99, %100 : vector<16x1xf32>
    %102 = arith.negf %101 : vector<16x1xf32>
    %103 = math.exp %102 : vector<16x1xf32>
    %cst_86 = arith.constant 1.000000e+00 : f32
    %104 = vector.broadcast %cst_86 : f32 to vector<16x1xf32>
    %105 = arith.addf %104, %103 : vector<16x1xf32>
    %106 = arith.divf %104, %105 : vector<16x1xf32>
    %c0_87 = arith.constant 0 : index
    %c0_88 = arith.constant 0 : index
    %107 = vector.load %arg6[%c0_87, %c0_88] : memref<1x8xf32, #tpu.memory_space<vmem>>, vector<1x8xf32>
    %cst_89 = arith.constant dense<0.000000e+00> : vector<16x8xf32>
    %108 = tpu.matmul %106, %107, %cst_89 {dimension_numbers = #tpu.dot_dimension_numbers<[1], [0], [0], [1], [0, 0, 1, 1], [], []>} : vector<16x1xf32>, vector<1x8xf32>, vector<16x8xf32> -> vector<16x8xf32>
    %109 = arith.mulf %85, %108 : vector<16x8xf32>
    %c0_90 = arith.constant 0 : index
    %c0_91 = arith.constant 0 : index
    %110 = vector.load %arg20[%c0_90, %c0_91] : memref<8x16xf32, #tpu.memory_space<vmem>>, vector<8x16xf32>
    %cst_92 = arith.constant dense<0.000000e+00> : vector<8x8xf32>
    %111 = tpu.matmul %110, %109, %cst_92 {dimension_numbers = #tpu.dot_dimension_numbers<[1], [0], [0], [1], [0, 0, 1, 1], [], []>} : vector<8x16xf32>, vector<16x8xf32>, vector<8x8xf32> -> vector<8x8xf32>
    %c0_93 = arith.constant 0 : index
    %c0_94 = arith.constant 0 : index
    %112 = vector.load %arg21[%c0_93, %c0_94] : memref<8x1xf32, #tpu.memory_space<vmem>>, vector<8x1xf32>
    %113 = vector.broadcast %112 : vector<8x1xf32> to vector<8x8xf32>
    %114 = arith.addf %111, %113 : vector<8x8xf32>
    %115 = arith.addf %114, %59 : vector<8x8xf32>
    %c0_95 = arith.constant 0 : index
    %c0_96 = arith.constant 0 : index
    %116 = vector.load %arg22[%c0_95, %c0_96] : memref<8x8xf32, #tpu.memory_space<vmem>>, vector<8x8xf32>
    %cst_97 = arith.constant dense<0.000000e+00> : vector<8x8xf32>
    %117 = tpu.matmul %116, %115, %cst_97 {dimension_numbers = #tpu.dot_dimension_numbers<[1], [0], [0], [1], [0, 0, 1, 1], [], []>} : vector<8x8xf32>, vector<8x8xf32>, vector<8x8xf32> -> vector<8x8xf32>
    %cst_98 = arith.constant dense<0.000000e+00> : vector<8xf32>
    %118 = vector.multi_reduction <add>, %117, %cst_98 [0] : vector<8x8xf32> to vector<8xf32>
    %119 = vector.shape_cast %118 : vector<8xf32> to vector<1x8xf32>
    %cst_99 = arith.constant 8.000000e+00 : f32
    %120 = vector.broadcast %cst_99 : f32 to vector<1x8xf32>
    %121 = arith.divf %119, %120 : vector<1x8xf32>
    %122 = vector.broadcast %121 : vector<1x8xf32> to vector<8x8xf32>
    %123 = arith.subf %117, %122 : vector<8x8xf32>
    %124 = arith.mulf %123, %123 : vector<8x8xf32>
    %cst_100 = arith.constant dense<0.000000e+00> : vector<8xf32>
    %125 = vector.multi_reduction <add>, %124, %cst_100 [0] : vector<8x8xf32> to vector<8xf32>
    %126 = vector.shape_cast %125 : vector<8xf32> to vector<1x8xf32>
    %cst_101 = arith.constant 8.000000e+00 : f32
    %127 = vector.broadcast %cst_101 : f32 to vector<1x8xf32>
    %128 = arith.divf %126, %127 : vector<1x8xf32>
    %129 = vector.broadcast %121 : vector<1x8xf32> to vector<8x8xf32>
    %130 = arith.subf %117, %129 : vector<8x8xf32>
    %cst_102 = arith.constant 9.99999974E-6 : f32
    %131 = vector.broadcast %cst_102 : f32 to vector<1x8xf32>
    %132 = arith.addf %128, %131 : vector<1x8xf32>
    %133 = math.rsqrt %132 : vector<1x8xf32>
    %134 = vector.broadcast %133 : vector<1x8xf32> to vector<8x8xf32>
    %135 = arith.mulf %130, %134 : vector<8x8xf32>
    %c0_103 = arith.constant 0 : index
    %c0_104 = arith.constant 0 : index
    %136 = vector.load %arg23[%c0_103, %c0_104] : memref<8x1xf32, #tpu.memory_space<vmem>>, vector<8x1xf32>
    %137 = vector.broadcast %136 : vector<8x1xf32> to vector<8x8xf32>
    %138 = arith.mulf %135, %137 : vector<8x8xf32>
    %c0_105 = arith.constant 0 : index
    %c0_106 = arith.constant 0 : index
    %139 = vector.load %arg24[%c0_105, %c0_106] : memref<8x1xf32, #tpu.memory_space<vmem>>, vector<8x1xf32>
    %140 = vector.broadcast %139 : vector<8x1xf32> to vector<8x8xf32>
    %141 = arith.addf %138, %140 : vector<8x8xf32>
    %c0_107 = arith.constant 0 : index
    %c0_108 = arith.constant 0 : index
    %c0_109 = arith.constant 0 : index
    %142 = vector.load %arg25[%c0_107, %c0_108, %c0_109] : memref<1x8x8xf32, #tpu.memory_space<vmem>>, vector<1x8x8xf32>
    %143 = vector.shape_cast %142 : vector<1x8x8xf32> to vector<8x8xf32>
    %144 = vector.shape_cast %141 : vector<8x8xf32> to vector<1x8x8xf32>
    tpu.vector_store %arg25[%c0_107, %c0_108, %c0_109], %144 {strides = array<i32>} : memref<1x8x8xf32, #tpu.memory_space<vmem>>, vector<1x8x8xf32>,
    return
  }
  func.func @transform_0(%arg0: i32) -> (i32, i32, i32) {
    %c0_i32 = arith.constant 0 : i32
    %c0_i32_0 = arith.constant 0 : i32
    %c0_i32_1 = arith.constant 0 : i32
    return %arg0, %c0_i32, %c0_i32_0 : i32, i32, i32
  }
  func.func @transform_1(%arg0: i32) -> (i32, i32, i32) {
    %c0_i32 = arith.constant 0 : i32
    %c0_i32_0 = arith.constant 0 : i32
    %c0_i32_1 = arith.constant 0 : i32
    %c0_i32_2 = arith.constant 0 : i32
    return %c0_i32, %c0_i32_0, %c0_i32_1 : i32, i32, i32
  }
  func.func @transform_2(%arg0: i32) -> (i32, i32, i32) {
    %c0_i32 = arith.constant 0 : i32
    %c0_i32_0 = arith.constant 0 : i32
    %c0_i32_1 = arith.constant 0 : i32
    %c0_i32_2 = arith.constant 0 : i32
    return %c0_i32, %c0_i32_0, %c0_i32_1 : i32, i32, i32
  }
  func.func @transform_3(%arg0: i32) -> (i32, i32) {
    %c0_i32 = arith.constant 0 : i32
    %c0_i32_0 = arith.constant 0 : i32
    %c0_i32_1 = arith.constant 0 : i32
    return %c0_i32, %c0_i32_0 : i32, i32
  }
  func.func @transform_4(%arg0: i32) -> (i32, i32) {
    %c0_i32 = arith.constant 0 : i32
    %c0_i32_0 = arith.constant 0 : i32
    %c0_i32_1 = arith.constant 0 : i32
    return %c0_i32, %c0_i32_0 : i32, i32
  }
  func.func @transform_5(%arg0: i32) -> (i32, i32) {
    %c0_i32 = arith.constant 0 : i32
    %c0_i32_0 = arith.constant 0 : i32
    %c0_i32_1 = arith.constant 0 : i32
    return %c0_i32, %c0_i32_0 : i32, i32
  }
  func.func @transform_6(%arg0: i32) -> (i32, i32) {
    %c0_i32 = arith.constant 0 : i32
    %c0_i32_0 = arith.constant 0 : i32
    %c0_i32_1 = arith.constant 0 : i32
    return %c0_i32, %c0_i32_0 : i32, i32
  }
  func.func @transform_7(%arg0: i32) -> (i32, i32) {
    %c0_i32 = arith.constant 0 : i32
    %c0_i32_0 = arith.constant 0 : i32
    %c0_i32_1 = arith.constant 0 : i32
    return %c0_i32, %c0_i32_0 : i32, i32
  }
  func.func @transform_8(%arg0: i32) -> (i32, i32) {
    %c0_i32 = arith.constant 0 : i32
    %c0_i32_0 = arith.constant 0 : i32
    %c0_i32_1 = arith.constant 0 : i32
    return %c0_i32, %c0_i32_0 : i32, i32
  }
  func.func @transform_9(%arg0: i32) -> (i32, i32) {
    %c0_i32 = arith.constant 0 : i32
    %c0_i32_0 = arith.constant 0 : i32
    %c0_i32_1 = arith.constant 0 : i32
    return %c0_i32, %c0_i32_0 : i32, i32
  }
  func.func @transform_10(%arg0: i32) -> (i32, i32) {
    %c0_i32 = arith.constant 0 : i32
    %c0_i32_0 = arith.constant 0 : i32
    %c0_i32_1 = arith.constant 0 : i32
    return %c0_i32, %c0_i32_0 : i32, i32
  }
  func.func @transform_11(%arg0: i32) -> (i32, i32) {
    %c0_i32 = arith.constant 0 : i32
    %c0_i32_0 = arith.constant 0 : i32
    %c0_i32_1 = arith.constant 0 : i32
    return %c0_i32, %c0_i32_0 : i32, i32
  }
  func.func @transform_12(%arg0: i32) -> (i32, i32, i32) {
    %c0_i32 = arith.constant 0 : i32
    %c0_i32_0 = arith.constant 0 : i32
    %c0_i32_1 = arith.constant 0 : i32
    %c0_i32_2 = arith.constant 0 : i32
    return %c0_i32, %c0_i32_0, %c0_i32_1 : i32, i32, i32
  }
  func.func @transform_13(%arg0: i32) -> (i32, i32, i32) {
    %c0_i32 = arith.constant 0 : i32
    %c0_i32_0 = arith.constant 0 : i32
    %c0_i32_1 = arith.constant 0 : i32
    %c0_i32_2 = arith.constant 0 : i32
    return %c0_i32, %c0_i32_0, %c0_i32_1 : i32, i32, i32
  }
  func.func @transform_14(%arg0: i32) -> (i32, i32) {
    %c0_i32 = arith.constant 0 : i32
    %c0_i32_0 = arith.constant 0 : i32
    %c0_i32_1 = arith.constant 0 : i32
    return %c0_i32, %c0_i32_0 : i32, i32
  }
  func.func @transform_15(%arg0: i32) -> (i32, i32) {
    %c0_i32 = arith.constant 0 : i32
    %c0_i32_0 = arith.constant 0 : i32
    %c0_i32_1 = arith.constant 0 : i32
    return %c0_i32, %c0_i32_0 : i32, i32
  }
  func.func @transform_16(%arg0: i32) -> (i32, i32) {
    %c0_i32 = arith.constant 0 : i32
    %c0_i32_0 = arith.constant 0 : i32
    %c0_i32_1 = arith.constant 0 : i32
    return %c0_i32, %c0_i32_0 : i32, i32
  }
  func.func @transform_17(%arg0: i32) -> (i32, i32) {
    %c0_i32 = arith.constant 0 : i32
    %c0_i32_0 = arith.constant 0 : i32
    %c0_i32_1 = arith.constant 0 : i32
    return %c0_i32, %c0_i32_0 : i32, i32
  }
  func.func @transform_18(%arg0: i32) -> (i32, i32) {
    %c0_i32 = arith.constant 0 : i32
    %c0_i32_0 = arith.constant 0 : i32
    %c0_i32_1 = arith.constant 0 : i32
    return %c0_i32, %c0_i32_0 : i32, i32
  }
  func.func @transform_19(%arg0: i32) -> (i32, i32) {
    %c0_i32 = arith.constant 0 : i32
    %c0_i32_0 = arith.constant 0 : i32
    %c0_i32_1 = arith.constant 0 : i32
    return %c0_i32, %c0_i32_0 : i32, i32
  }
  func.func @transform_20(%arg0: i32) -> (i32, i32) {
    %c0_i32 = arith.constant 0 : i32
    %c0_i32_0 = arith.constant 0 : i32
    %c0_i32_1 = arith.constant 0 : i32
    return %c0_i32, %c0_i32_0 : i32, i32
  }
  func.func @transform_21(%arg0: i32) -> (i32, i32) {
    %c0_i32 = arith.constant 0 : i32
    %c0_i32_0 = arith.constant 0 : i32
    %c0_i32_1 = arith.constant 0 : i32
    return %c0_i32, %c0_i32_0 : i32, i32
  }
  func.func @transform_22(%arg0: i32) -> (i32, i32) {
    %c0_i32 = arith.constant 0 : i32
    %c0_i32_0 = arith.constant 0 : i32
    %c0_i32_1 = arith.constant 0 : i32
    return %c0_i32, %c0_i32_0 : i32, i32
  }
  func.func @transform_23(%arg0: i32) -> (i32, i32) {
    %c0_i32 = arith.constant 0 : i32
    %c0_i32_0 = arith.constant 0 : i32
    %c0_i32_1 = arith.constant 0 : i32
    return %c0_i32, %c0_i32_0 : i32, i32
  }
  func.func @transform_24(%arg0: i32) -> (i32, i32, i32) {
    %c0_i32 = arith.constant 0 : i32
    %c0_i32_0 = arith.constant 0 : i32
    %c0_i32_1 = arith.constant 0 : i32
    return %arg0, %c0_i32, %c0_i32_0 : i32, i32, i32
  }
}

</mosaic_0001>

<llo_original>
// kernel: conv_embedding_pallas.1
$region0: #{conv_embedding_pallas.1}
  #allocation0 [shape = 'u32[]', space=smem, size = 0x4, offset = 0x4, fixed_abs, tag = 'smem constant byte address 0x4 - core index']
  #allocation1 [shape = 'u32[144,128]{1,0:T(1,128)}', space=vmem, size = 0x12000, scoped, tag = 'internal scratch']
  %s0 = inlined_call_operand.vmem [shape: f32[2,4,16], index: 0, kind: input, shape index: {}]
  %s1 = inlined_call_operand.vmem [shape: f32[3,16,8], index: 1, kind: input, shape index: {}]
  %s2 = inlined_call_operand.vmem [shape: f32[3,8,4], index: 2, kind: input, shape index: {}]
  %s3 = inlined_call_operand.vmem [shape: f32[8,1], index: 3, kind: input, shape index: {}]
  %s4 = inlined_call_operand.vmem [shape: f32[8,1], index: 4, kind: input, shape index: {}]
  %s5 = inlined_call_operand.vmem [shape: f32[1,8], index: 5, kind: input, shape index: {}]
  %s6 = inlined_call_operand.vmem [shape: f32[8,8], index: 6, kind: input, shape index: {}]
  %s7 = inlined_call_operand.vmem [shape: f32[8,1], index: 7, kind: input, shape index: {}]
  %s8 = inlined_call_operand.vmem [shape: f32[8,8], index: 8, kind: input, shape index: {}]
  %s9 = inlined_call_operand.vmem [shape: f32[8,1], index: 9, kind: input, shape index: {}]
  %s10 = inlined_call_operand.vmem [shape: f32[8,8], index: 10, kind: input, shape index: {}]
  %s11 = inlined_call_operand.vmem [shape: f32[8,1], index: 11, kind: input, shape index: {}]
  %s12 = inlined_call_operand.vmem [shape: f32[2,8,8], index: 12, kind: input, shape index: {}]
  %s13 = inlined_call_operand.vmem [shape: f32[3,16,8], index: 13, kind: input, shape index: {}]
  %s14 = inlined_call_operand.vmem [shape: f32[16,1], index: 14, kind: input, shape index: {}]
  %s15 = inlined_call_operand.vmem [shape: f32[8,16], index: 15, kind: input, shape index: {}]
  %s16 = inlined_call_operand.vmem [shape: f32[8,1], index: 16, kind: input, shape index: {}]
  %s17 = inlined_call_operand.vmem [shape: f32[16,8], index: 17, kind: input, shape index: {}]
  %s18 = inlined_call_operand.vmem [shape: f32[16,1], index: 18, kind: input, shape index: {}]
  %s19 = inlined_call_operand.vmem [shape: f32[8,16], index: 19, kind: input, shape index: {}]
  %s20 = inlined_call_operand.vmem [shape: f32[8,1], index: 20, kind: input, shape index: {}]
  %s21 = inlined_call_operand.vmem [shape: f32[8,8], index: 21, kind: input, shape index: {}]
  %s22 = inlined_call_operand.vmem [shape: f32[8,1], index: 22, kind: input, shape index: {}]
  %s23 = inlined_call_operand.vmem [shape: f32[8,1], index: 23, kind: input, shape index: {}]
  %s24 = inlined_call_operand.hbm [shape: f32[2,8,8], index: 24, kind: output, shape index: {}]
  %s25 = sld [smem:[#allocation0]]
  $region129: #{conv_embedding_pallas.1} parent=0
    _
  %s27 = ssub.s32 1, %s25
  %s28 = scalar_select 0, %s27, %s25
  $region1: #{conv_embedding_pallas.1} parent=0
    #allocation2 [shape = 'u8[8192]{0}', space=vmem, size = 0x2000, scoped, tag = 'output window, operand 0']
    #allocation3 [shape = 's32[2]{0}', space=sflag, size = 0x8, scoped, tag = 'scoped memory for conv_embedding_pallas.1']
    %29 = vsyncpa [#allocation3], 0
    %s30 = scalar_lea.sflag [#allocation3], 1
    %31 = vsyncpa %s30, 0
    loop: start=0, step=1, limit=4
    $region2: #{conv_embedding_pallas.1} parent=1 // loop_pre_header
      _
    $region3: #{conv_embedding_pallas.1} parent=1 // loop_header
      %s33 = sphi 0, %s37
      %p34 = scmp.ge.s32.totalorder %s33, 4
      %s43 = sphi 0, %s45
      %s46 = sphi 0, %s43
      %s47 = sphi 0, %s46
      %s63 = sphi 0, %s47
      %s67 = sphi 0, %s67
      %s69 = sphi 0, %s67
      %s70 = sphi 0, %s69
      %s84 = sphi 0, %s70
      %s88 = sphi 0, %s88
      %s90 = sphi 0, %s88
      %s91 = sphi 0, %s90
      %s105 = sphi 0, %s91
      %s109 = sphi 0, %s109
      %s111 = sphi 0, %s109
      %s112 = sphi 0, %s111
      %s126 = sphi 0, %s112
      %s130 = sphi 0, %s130
      %s132 = sphi 0, %s130
      %s133 = sphi 0, %s132
      %s147 = sphi 0, %s133
      %s151 = sphi 0, %s151
      %s153 = sphi 0, %s151
      %s154 = sphi 0, %s153
      %s168 = sphi 0, %s154
      %s172 = sphi 0, %s172
      %s174 = sphi 0, %s172
      %s175 = sphi 0, %s174
      %s189 = sphi 0, %s175
      %s193 = sphi 0, %s193
      %s195 = sphi 0, %s193
      %s196 = sphi 0, %s195
      %s210 = sphi 0, %s196
      %s214 = sphi 0, %s214
      %s216 = sphi 0, %s214
      %s217 = sphi 0, %s216
      %s231 = sphi 0, %s217
      %s235 = sphi 0, %s235
      %s237 = sphi 0, %s235
      %s238 = sphi 0, %s237
      %s252 = sphi 0, %s238
      %s256 = sphi 0, %s256
      %s258 = sphi 0, %s256
      %s259 = sphi 0, %s258
      %s273 = sphi 0, %s259
      %s277 = sphi 0, %s277
      %s279 = sphi 0, %s277
      %s280 = sphi 0, %s279
      %s294 = sphi 0, %s280
      %s298 = sphi 0, %s298
      %s300 = sphi 0, %s298
      %s301 = sphi 0, %s300
      %s315 = sphi 0, %s301
      %s319 = sphi 0, %s319
      %s321 = sphi 0, %s319
      %s322 = sphi 0, %s321
      %s336 = sphi 0, %s322
      %s340 = sphi 0, %s340
      %s342 = sphi 0, %s340
      %s343 = sphi 0, %s342
      %s357 = sphi 0, %s343
      %s361 = sphi 0, %s361
      %s363 = sphi 0, %s361
      %s364 = sphi 0, %s363
      %s378 = sphi 0, %s364
      %s382 = sphi 0, %s382
      %s384 = sphi 0, %s382
      %s385 = sphi 0, %s384
      %s399 = sphi 0, %s385
      %s403 = sphi 0, %s403
      %s405 = sphi 0, %s403
      %s406 = sphi 0, %s405
      %s420 = sphi 0, %s406
      %s424 = sphi 0, %s424
      %s426 = sphi 0, %s424
      %s427 = sphi 0, %s426
      %s441 = sphi 0, %s427
      %s445 = sphi 0, %s445
      %s447 = sphi 0, %s445
      %s448 = sphi 0, %s447
      %s462 = sphi 0, %s448
      %s466 = sphi 0, %s466
      %s468 = sphi 0, %s466
      %s469 = sphi 0, %s468
      %s483 = sphi 0, %s469
      %s487 = sphi 0, %s487
      %s489 = sphi 0, %s487
      %s490 = sphi 0, %s489
      %s504 = sphi 0, %s490
      %s508 = sphi 0, %s508
      %s510 = sphi 0, %s508
      %s511 = sphi 0, %s510
      %s525 = sphi 0, %s511
      %s529 = sphi 0, %s529
      %s531 = sphi 0, %s529
      %s532 = sphi 0, %s531
      %s546 = sphi 0, %s532
      %s552 = sphi 0, %s554
      %s555 = sphi 0, %s552
      %s556 = sphi 0, %s555
      %s572 = sphi 0, %s556
    $region4: #{conv_embedding_pallas.1} parent=1 // loop_header_branch
      %36 = sbr.rel (%p34) target = $region8
    $region5: #{conv_embedding_pallas.1} parent=1 // loop_body
      %s38 = ssub.s32 %s33, 1
      %s39 = ssub.s32 %s33, 2
      %s40 = sadd.s32 %s33, 1
      %s41 = ssub.s32 %s33, %s40
      %p42 = scmp.eq.s32.totalorder %s41, 0
      %s44 = sadd.s32 %s43, 1
      %s45 = scalar_select %p42, %s43, %s44
      %p48 = pneg %p42
      %p49 = scmp.eq.s32.totalorder %s33, 1
      %p50 = por %p48, %p49
      %p51 = scmp.ne.s32.totalorder %s43, %s46
      %p52 = scmp.eq.s32.totalorder %s33, 0
      %p53 = por %p51, %p52
      %p54 = scmp.ne.s32.totalorder %s43, %s46
      %p55 = scmp.eq.s32.totalorder %s38, 1
      %p56 = por %p54, %p55
      %p57 = scmp.ne.s32.totalorder %s46, %s47
      %p58 = scmp.eq.s32.totalorder %s38, 0
      %p59 = por %p57, %p58
      %p60 = scmp.ne.s32.totalorder %s46, %s47
      %p61 = scmp.eq.s32.totalorder %s39, 1
      %p62 = por %p60, %p61
      %p64 = scmp.ne.s32.totalorder %s47, %s63
      %p65 = scmp.eq.s32.totalorder %s39, 0
      %p66 = por %p64, %p65
      %s68 = sadd.s32 %s67, 1
      %p71 = scmp.eq.s32.totalorder %s33, 1
      %p72 = scmp.ne.s32.totalorder %s67, %s69
      %p73 = scmp.eq.s32.totalorder %s33, 0
      %p74 = por %p72, %p73
      %p75 = scmp.ne.s32.totalorder %s67, %s69
      %p76 = scmp.eq.s32.totalorder %s38, 1
      %p77 = por %p75, %p76
      %p78 = scmp.ne.s32.totalorder %s69, %s70
      %p79 = scmp.eq.s32.totalorder %s38, 0
      %p80 = por %p78, %p79
      %p81 = scmp.ne.s32.totalorder %s69, %s70
      %p82 = scmp.eq.s32.totalorder %s39, 1
      %p83 = por %p81, %p82
      %p85 = scmp.ne.s32.totalorder %s70, %s84
      %p86 = scmp.eq.s32.totalorder %s39, 0
      %p87 = por %p85, %p86
      %s89 = sadd.s32 %s88, 1
      %p92 = scmp.eq.s32.totalorder %s33, 1
      %p93 = scmp.ne.s32.totalorder %s88, %s90
      %p94 = scmp.eq.s32.totalorder %s33, 0
      %p95 = por %p93, %p94
      %p96 = scmp.ne.s32.totalorder %s88, %s90
      %p97 = scmp.eq.s32.totalorder %s38, 1
      %p98 = por %p96, %p97
      %p99 = scmp.ne.s32.totalorder %s90, %s91
      %p100 = scmp.eq.s32.totalorder %s38, 0
      %p101 = por %p99, %p100
      %p102 = scmp.ne.s32.totalorder %s90, %s91
      %p103 = scmp.eq.s32.totalorder %s39, 1
      %p104 = por %p102, %p103
      %p106 = scmp.ne.s32.totalorder %s91, %s105
      %p107 = scmp.eq.s32.totalorder %s39, 0
      %p108 = por %p106, %p107
      %s110 = sadd.s32 %s109, 1
      %p113 = scmp.eq.s32.totalorder %s33, 1
      %p114 = scmp.ne.s32.totalorder %s109, %s111
      %p115 = scmp.eq.s32.totalorder %s33, 0
      %p116 = por %p114, %p115
      %p117 = scmp.ne.s32.totalorder %s109, %s111
      %p118 = scmp.eq.s32.totalorder %s38, 1
      %p119 = por %p117, %p118
      %p120 = scmp.ne.s32.totalorder %s111, %s112
      %p121 = scmp.eq.s32.totalorder %s38, 0
      %p122 = por %p120, %p121
      %p123 = scmp.ne.s32.totalorder %s111, %s112
      %p124 = scmp.eq.s32.totalorder %s39, 1
      %p125 = por %p123, %p124
      %p127 = scmp.ne.s32.totalorder %s112, %s126
      %p128 = scmp.eq.s32.totalorder %s39, 0
      %p129 = por %p127, %p128
      %s131 = sadd.s32 %s130, 1
      %p134 = scmp.eq.s32.totalorder %s33, 1
      %p135 = scmp.ne.s32.totalorder %s130, %s132
      %p136 = scmp.eq.s32.totalorder %s33, 0
      %p137 = por %p135, %p136
      %p138 = scmp.ne.s32.totalorder %s130, %s132
      %p139 = scmp.eq.s32.totalorder %s38, 1
      %p140 = por %p138, %p139
      %p141 = scmp.ne.s32.totalorder %s132, %s133
      %p142 = scmp.eq.s32.totalorder %s38, 0
      %p143 = por %p141, %p142
      %p144 = scmp.ne.s32.totalorder %s132, %s133
      %p145 = scmp.eq.s32.totalorder %s39, 1
      %p146 = por %p144, %p145
      %p148 = scmp.ne.s32.totalorder %s133, %s147
      %p149 = scmp.eq.s32.totalorder %s39, 0
      %p150 = por %p148, %p149
      %s152 = sadd.s32 %s151, 1
      %p155 = scmp.eq.s32.totalorder %s33, 1
      %p156 = scmp.ne.s32.totalorder %s151, %s153
      %p157 = scmp.eq.s32.totalorder %s33, 0
      %p158 = por %p156, %p157
      %p159 = scmp.ne.s32.totalorder %s151, %s153
      %p160 = scmp.eq.s32.totalorder %s38, 1
      %p161 = por %p159, %p160
      %p162 = scmp.ne.s32.totalorder %s153, %s154
      %p163 = scmp.eq.s32.totalorder %s38, 0
      %p164 = por %p162, %p163
      %p165 = scmp.ne.s32.totalorder %s153, %s154
      %p166 = scmp.eq.s32.totalorder %s39, 1
      %p167 = por %p165, %p166
      %p169 = scmp.ne.s32.totalorder %s154, %s168
      %p170 = scmp.eq.s32.totalorder %s39, 0
      %p171 = por %p169, %p170
      %s173 = sadd.s32 %s172, 1
      %p176 = scmp.eq.s32.totalorder %s33, 1
      %p177 = scmp.ne.s32.totalorder %s172, %s174
      %p178 = scmp.eq.s32.totalorder %s33, 0
      %p179 = por %p177, %p178
      %p180 = scmp.ne.s32.totalorder %s172, %s174
      %p181 = scmp.eq.s32.totalorder %s38, 1
      %p182 = por %p180, %p181
      %p183 = scmp.ne.s32.totalorder %s174, %s175
      %p184 = scmp.eq.s32.totalorder %s38, 0
      %p185 = por %p183, %p184
      %p186 = scmp.ne.s32.totalorder %s174, %s175
      %p187 = scmp.eq.s32.totalorder %s39, 1
      %p188 = por %p186, %p187
      %p190 = scmp.ne.s32.totalorder %s175, %s189
      %p191 = scmp.eq.s32.totalorder %s39, 0
      %p192 = por %p190, %p191
      %s194 = sadd.s32 %s193, 1
      %p197 = scmp.eq.s32.totalorder %s33, 1
      %p198 = scmp.ne.s32.totalorder %s193, %s195
      %p199 = scmp.eq.s32.totalorder %s33, 0
      %p200 = por %p198, %p199
      %p201 = scmp.ne.s32.totalorder %s193, %s195
      %p202 = scmp.eq.s32.totalorder %s38, 1
      %p203 = por %p201, %p202
      %p204 = scmp.ne.s32.totalorder %s195, %s196
      %p205 = scmp.eq.s32.totalorder %s38, 0
      %p206 = por %p204, %p205
      %p207 = scmp.ne.s32.totalorder %s195, %s196
      %p208 = scmp.eq.s32.totalorder %s39, 1
      %p209 = por %p207, %p208
      %p211 = scmp.ne.s32.totalorder %s196, %s210
      %p212 = scmp.eq.s32.totalorder %s39, 0
      %p213 = por %p211, %p212
      %s215 = sadd.s32 %s214, 1
      %p218 = scmp.eq.s32.totalorder %s33, 1
      %p219 = scmp.ne.s32.totalorder %s214, %s216
      %p220 = scmp.eq.s32.totalorder %s33, 0
      %p221 = por %p219, %p220
      %p222 = scmp.ne.s32.totalorder %s214, %s216
      %p223 = scmp.eq.s32.totalorder %s38, 1
      %p224 = por %p222, %p223
      %p225 = scmp.ne.s32.totalorder %s216, %s217
      %p226 = scmp.eq.s32.totalorder %s38, 0
      %p227 = por %p225, %p226
      %p228 = scmp.ne.s32.totalorder %s216, %s217
      %p229 = scmp.eq.s32.totalorder %s39, 1
      %p230 = por %p228, %p229
      %p232 = scmp.ne.s32.totalorder %s217, %s231
      %p233 = scmp.eq.s32.totalorder %s39, 0
      %p234 = por %p232, %p233
      %s236 = sadd.s32 %s235, 1
      %p239 = scmp.eq.s32.totalorder %s33, 1
      %p240 = scmp.ne.s32.totalorder %s235, %s237
      %p241 = scmp.eq.s32.totalorder %s33, 0
      %p242 = por %p240, %p241
      %p243 = scmp.ne.s32.totalorder %s235, %s237
      %p244 = scmp.eq.s32.totalorder %s38, 1
      %p245 = por %p243, %p244
      %p246 = scmp.ne.s32.totalorder %s237, %s238
      %p247 = scmp.eq.s32.totalorder %s38, 0
      %p248 = por %p246, %p247
      %p249 = scmp.ne.s32.totalorder %s237, %s238
      %p250 = scmp.eq.s32.totalorder %s39, 1
      %p251 = por %p249, %p250
      %p253 = scmp.ne.s32.totalorder %s238, %s252
      %p254 = scmp.eq.s32.totalorder %s39, 0
      %p255 = por %p253, %p254
      %s257 = sadd.s32 %s256, 1
      %p260 = scmp.eq.s32.totalorder %s33, 1
      %p261 = scmp.ne.s32.totalorder %s256, %s258
      %p262 = scmp.eq.s32.totalorder %s33, 0
      %p263 = por %p261, %p262
      %p264 = scmp.ne.s32.totalorder %s256, %s258
      %p265 = scmp.eq.s32.totalorder %s38, 1
      %p266 = por %p264, %p265
      %p267 = scmp.ne.s32.totalorder %s258, %s259
      %p268 = scmp.eq.s32.totalorder %s38, 0
      %p269 = por %p267, %p268
      %p270 = scmp.ne.s32.totalorder %s258, %s259
      %p271 = scmp.eq.s32.totalorder %s39, 1
      %p272 = por %p270, %p271
      %p274 = scmp.ne.s32.totalorder %s259, %s273
      %p275 = scmp.eq.s32.totalorder %s39, 0
      %p276 = por %p274, %p275
      %s278 = sadd.s32 %s277, 1
      %p281 = scmp.eq.s32.totalorder %s33, 1
      %p282 = scmp.ne.s32.totalorder %s277, %s279
      %p283 = scmp.eq.s32.totalorder %s33, 0
      %p284 = por %p282, %p283
      %p285 = scmp.ne.s32.totalorder %s277, %s279
      %p286 = scmp.eq.s32.totalorder %s38, 1
      %p287 = por %p285, %p286
      %p288 = scmp.ne.s32.totalorder %s279, %s280
      %p289 = scmp.eq.s32.totalorder %s38, 0
      %p290 = por %p288, %p289
      %p291 = scmp.ne.s32.totalorder %s279, %s280
      %p292 = scmp.eq.s32.totalorder %s39, 1
      %p293 = por %p291, %p292
      %p295 = scmp.ne.s32.totalorder %s280, %s294
      %p296 = scmp.eq.s32.totalorder %s39, 0
      %p297 = por %p295, %p296
      %s299 = sadd.s32 %s298, 1
      %p302 = scmp.eq.s32.totalorder %s33, 1
      %p303 = scmp.ne.s32.totalorder %s298, %s300
      %p304 = scmp.eq.s32.totalorder %s33, 0
      %p305 = por %p303, %p304
      %p306 = scmp.ne.s32.totalorder %s298, %s300
      %p307 = scmp.eq.s32.totalorder %s38, 1
      %p308 = por %p306, %p307
      %p309 = scmp.ne.s32.totalorder %s300, %s301
      %p310 = scmp.eq.s32.totalorder %s38, 0
      %p311 = por %p309, %p310
      %p312 = scmp.ne.s32.totalorder %s300, %s301
      %p313 = scmp.eq.s32.totalorder %s39, 1
      %p314 = por %p312, %p313
      %p316 = scmp.ne.s32.totalorder %s301, %s315
      %p317 = scmp.eq.s32.totalorder %s39, 0
      %p318 = por %p316, %p317
      %s320 = sadd.s32 %s319, 1
      %p323 = scmp.eq.s32.totalorder %s33, 1
      %p324 = scmp.ne.s32.totalorder %s319, %s321
      %p325 = scmp.eq.s32.totalorder %s33, 0
      %p326 = por %p324, %p325
      %p327 = scmp.ne.s32.totalorder %s319, %s321
      %p328 = scmp.eq.s32.totalorder %s38, 1
      %p329 = por %p327, %p328
      %p330 = scmp.ne.s32.totalorder %s321, %s322
      %p331 = scmp.eq.s32.totalorder %s38, 0
      %p332 = por %p330, %p331
      %p333 = scmp.ne.s32.totalorder %s321, %s322
      %p334 = scmp.eq.s32.totalorder %s39, 1
      %p335 = por %p333, %p334
      %p337 = scmp.ne.s32.totalorder %s322, %s336
      %p338 = scmp.eq.s32.totalorder %s39, 0
      %p339 = por %p337, %p338
      %s341 = sadd.s32 %s340, 1
      %p344 = scmp.eq.s32.totalorder %s33, 1
      %p345 = scmp.ne.s32.totalorder %s340, %s342
      %p346 = scmp.eq.s32.totalorder %s33, 0
      %p347 = por %p345, %p346
      %p348 = scmp.ne.s32.totalorder %s340, %s342
      %p349 = scmp.eq.s32.totalorder %s38, 1
      %p350 = por %p348, %p349
      %p351 = scmp.ne.s32.totalorder %s342, %s343
      %p352 = scmp.eq.s32.totalorder %s38, 0
      %p353 = por %p351, %p352
      %p354 = scmp.ne.s32.totalorder %s342, %s343
      %p355 = scmp.eq.s32.totalorder %s39, 1
      %p356 = por %p354, %p355
      %p358 = scmp.ne.s32.totalorder %s343, %s357
      %p359 = scmp.eq.s32.totalorder %s39, 0
      %p360 = por %p358, %p359
      %s362 = sadd.s32 %s361, 1
      %p365 = scmp.eq.s32.totalorder %s33, 1
      %p366 = scmp.ne.s32.totalorder %s361, %s363
      %p367 = scmp.eq.s32.totalorder %s33, 0
      %p368 = por %p366, %p367
      %p369 = scmp.ne.s32.totalorder %s361, %s363
      %p370 = scmp.eq.s32.totalorder %s38, 1
      %p371 = por %p369, %p370
      %p372 = scmp.ne.s32.totalorder %s363, %s364
      %p373 = scmp.eq.s32.totalorder %s38, 0
      %p374 = por %p372, %p373
      %p375 = scmp.ne.s32.totalorder %s363, %s364
      %p376 = scmp.eq.s32.totalorder %s39, 1
      %p377 = por %p375, %p376
      %p379 = scmp.ne.s32.totalorder %s364, %s378
      %p380 = scmp.eq.s32.totalorder %s39, 0
      %p381 = por %p379, %p380
      %s383 = sadd.s32 %s382, 1
      %p386 = scmp.eq.s32.totalorder %s33, 1
      %p387 = scmp.ne.s32.totalorder %s382, %s384
      %p388 = scmp.eq.s32.totalorder %s33, 0
      %p389 = por %p387, %p388
      %p390 = scmp.ne.s32.totalorder %s382, %s384
      %p391 = scmp.eq.s32.totalorder %s38, 1
      %p392 = por %p390, %p391
      %p393 = scmp.ne.s32.totalorder %s384, %s385
      %p394 = scmp.eq.s32.totalorder %s38, 0
      %p395 = por %p393, %p394
      %p396 = scmp.ne.s32.totalorder %s384, %s385
      %p397 = scmp.eq.s32.totalorder %s39, 1
      %p398 = por %p396, %p397
      %p400 = scmp.ne.s32.totalorder %s385, %s399
      %p401 = scmp.eq.s32.totalorder %s39, 0
      %p402 = por %p400, %p401
      %s404 = sadd.s32 %s403, 1
      %p407 = scmp.eq.s32.totalorder %s33, 1
      %p408 = scmp.ne.s32.totalorder %s403, %s405
      %p409 = scmp.eq.s32.totalorder %s33, 0
      %p410 = por %p408, %p409
      %p411 = scmp.ne.s32.totalorder %s403, %s405
      %p412 = scmp.eq.s32.totalorder %s38, 1
      %p413 = por %p411, %p412
      %p414 = scmp.ne.s32.totalorder %s405, %s406
      %p415 = scmp.eq.s32.totalorder %s38, 0
      %p416 = por %p414, %p415
      %p417 = scmp.ne.s32.totalorder %s405, %s406
      %p418 = scmp.eq.s32.totalorder %s39, 1
      %p419 = por %p417, %p418
      %p421 = scmp.ne.s32.totalorder %s406, %s420
      %p422 = scmp.eq.s32.totalorder %s39, 0
      %p423 = por %p421, %p422
      %s425 = sadd.s32 %s424, 1
      %p428 = scmp.eq.s32.totalorder %s33, 1
      %p429 = scmp.ne.s32.totalorder %s424, %s426
      %p430 = scmp.eq.s32.totalorder %s33, 0
      %p431 = por %p429, %p430
      %p432 = scmp.ne.s32.totalorder %s424, %s426
      %p433 = scmp.eq.s32.totalorder %s38, 1
      %p434 = por %p432, %p433
      %p435 = scmp.ne.s32.totalorder %s426, %s427
      %p436 = scmp.eq.s32.totalorder %s38, 0
      %p437 = por %p435, %p436
      %p438 = scmp.ne.s32.totalorder %s426, %s427
      %p439 = scmp.eq.s32.totalorder %s39, 1
      %p440 = por %p438, %p439
      %p442 = scmp.ne.s32.totalorder %s427, %s441
      %p443 = scmp.eq.s32.totalorder %s39, 0
      %p444 = por %p442, %p443
      %s446 = sadd.s32 %s445, 1
      %p449 = scmp.eq.s32.totalorder %s33, 1
      %p450 = scmp.ne.s32.totalorder %s445, %s447
      %p451 = scmp.eq.s32.totalorder %s33, 0
      %p452 = por %p450, %p451
      %p453 = scmp.ne.s32.totalorder %s445, %s447
      %p454 = scmp.eq.s32.totalorder %s38, 1
      %p455 = por %p453, %p454
      %p456 = scmp.ne.s32.totalorder %s447, %s448
      %p457 = scmp.eq.s32.totalorder %s38, 0
      %p458 = por %p456, %p457
      %p459 = scmp.ne.s32.totalorder %s447, %s448
      %p460 = scmp.eq.s32.totalorder %s39, 1
      %p461 = por %p459, %p460
      %p463 = scmp.ne.s32.totalorder %s448, %s462
      %p464 = scmp.eq.s32.totalorder %s39, 0
      %p465 = por %p463, %p464
      %s467 = sadd.s32 %s466, 1
      %p470 = scmp.eq.s32.totalorder %s33, 1
      %p471 = scmp.ne.s32.totalorder %s466, %s468
      %p472 = scmp.eq.s32.totalorder %s33, 0
      %p473 = por %p471, %p472
      %p474 = scmp.ne.s32.totalorder %s466, %s468
      %p475 = scmp.eq.s32.totalorder %s38, 1
      %p476 = por %p474, %p475
      %p477 = scmp.ne.s32.totalorder %s468, %s469
      %p478 = scmp.eq.s32.totalorder %s38, 0
      %p479 = por %p477, %p478
      %p480 = scmp.ne.s32.totalorder %s468, %s469
      %p481 = scmp.eq.s32.totalorder %s39, 1
      %p482 = por %p480, %p481
      %p484 = scmp.ne.s32.totalorder %s469, %s483
      %p485 = scmp.eq.s32.totalorder %s39, 0
      %p486 = por %p484, %p485
      %s488 = sadd.s32 %s487, 1
      %p491 = scmp.eq.s32.totalorder %s33, 1
      %p492 = scmp.ne.s32.totalorder %s487, %s489
      %p493 = scmp.eq.s32.totalorder %s33, 0
      %p494 = por %p492, %p493
      %p495 = scmp.ne.s32.totalorder %s487, %s489
      %p496 = scmp.eq.s32.totalorder %s38, 1
      %p497 = por %p495, %p496
      %p498 = scmp.ne.s32.totalorder %s489, %s490
      %p499 = scmp.eq.s32.totalorder %s38, 0
      %p500 = por %p498, %p499
      %p501 = scmp.ne.s32.totalorder %s489, %s490
      %p502 = scmp.eq.s32.totalorder %s39, 1
      %p503 = por %p501, %p502
      %p505 = scmp.ne.s32.totalorder %s490, %s504
      %p506 = scmp.eq.s32.totalorder %s39, 0
      %p507 = por %p505, %p506
      %s509 = sadd.s32 %s508, 1
      %p512 = scmp.eq.s32.totalorder %s33, 1
      %p513 = scmp.ne.s32.totalorder %s508, %s510
      %p514 = scmp.eq.s32.totalorder %s33, 0
      %p515 = por %p513, %p514
      %p516 = scmp.ne.s32.totalorder %s508, %s510
      %p517 = scmp.eq.s32.totalorder %s38, 1
      %p518 = por %p516, %p517
      %p519 = scmp.ne.s32.totalorder %s510, %s511
      %p520 = scmp.eq.s32.totalorder %s38, 0
      %p521 = por %p519, %p520
      %p522 = scmp.ne.s32.totalorder %s510, %s511
      %p523 = scmp.eq.s32.totalorder %s39, 1
      %p524 = por %p522, %p523
      %p526 = scmp.ne.s32.totalorder %s511, %s525
      %p527 = scmp.eq.s32.totalorder %s39, 0
      %p528 = por %p526, %p527
      %s530 = sadd.s32 %s529, 1
      %p533 = scmp.eq.s32.totalorder %s33, 1
      %p534 = scmp.ne.s32.totalorder %s529, %s531
      %p535 = scmp.eq.s32.totalorder %s33, 0
      %p536 = por %p534, %p535
      %p537 = scmp.ne.s32.totalorder %s529, %s531
      %p538 = scmp.eq.s32.totalorder %s38, 1
      %p539 = por %p537, %p538
      %p540 = scmp.ne.s32.totalorder %s531, %s532
      %p541 = scmp.eq.s32.totalorder %s38, 0
      %p542 = por %p540, %p541
      %p543 = scmp.ne.s32.totalorder %s531, %s532
      %p544 = scmp.eq.s32.totalorder %s39, 1
      %p545 = por %p543, %p544
      %p547 = scmp.ne.s32.totalorder %s532, %s546
      %p548 = scmp.eq.s32.totalorder %s39, 0
      %p549 = por %p547, %p548
      %s550 = ssub.s32 %s33, %s40
      %p551 = scmp.eq.s32.totalorder %s550, 0
      %s553 = sadd.s32 %s552, 1
      %s554 = scalar_select %p551, %s552, %s553
      %p557 = pneg %p551
      %p558 = scmp.eq.s32.totalorder %s33, 1
      %p559 = por %p557, %p558
      %p560 = scmp.ne.s32.totalorder %s552, %s555
      %p561 = scmp.eq.s32.totalorder %s33, 0
      %p562 = por %p560, %p561
      %p563 = scmp.ne.s32.totalorder %s552, %s555
      %p564 = scmp.eq.s32.totalorder %s38, 1
      %p565 = por %p563, %p564
      %p566 = scmp.ne.s32.totalorder %s555, %s556
      %p567 = scmp.eq.s32.totalorder %s38, 0
      %p568 = por %p566, %p567
      %p569 = scmp.ne.s32.totalorder %s555, %s556
      %p570 = scmp.eq.s32.totalorder %s39, 1
      %p571 = por %p569, %p570
      %p573 = scmp.ne.s32.totalorder %s556, %s572
      %p574 = scmp.eq.s32.totalorder %s39, 0
      %p575 = por %p573, %p574
      %p576 = scmp.le.s32.totalorder 1, %s33
      %p577 = scmp.lt.s32.totalorder %s33, 3
      %p578 = pnand %p576, %p577
      %p579 = pneg %p578
      // Predicated region
      $region9: #{conv_embedding_pallas.1} parent=5 // pred_check
        _
      $region10: #{conv_embedding_pallas.1} parent=5 // pred_check_branch
        %581 = sbr.rel (%p578) target = $region12
      $region11: #{conv_embedding_pallas.1} parent=5 // pred_region
        %s582 = ssub.s32 %s33, 1
        // Predicated region
        $region13: #{conv_embedding_pallas.1} parent=11 // pred_check
          %p583 = pneg %p80
        $region14: #{conv_embedding_pallas.1} parent=11 // pred_check_branch
          %585 = sbr.rel (%p583) target = $region16
        $region15: #{conv_embedding_pallas.1} parent=11 // pred_region
          _
        $region16: #{conv_embedding_pallas.1} parent=11 // pred_fallthru
          _
        // Predicated region
        $region17: #{conv_embedding_pallas.1} parent=11 // pred_check
          %p586 = pneg %p101
        $region18: #{conv_embedding_pallas.1} parent=11 // pred_check_branch
          %588 = sbr.rel (%p586) target = $region20
        $region19: #{conv_embedding_pallas.1} parent=11 // pred_region
          _
        $region20: #{conv_embedding_pallas.1} parent=11 // pred_fallthru
          _
        // Predicated region
        $region21: #{conv_embedding_pallas.1} parent=11 // pred_check
          %p589 = pneg %p122
        $region22: #{conv_embedding_pallas.1} parent=11 // pred_check_branch
          %591 = sbr.rel (%p589) target = $region24
        $region23: #{conv_embedding_pallas.1} parent=11 // pred_region
          _
        $region24: #{conv_embedding_pallas.1} parent=11 // pred_fallthru
          _
        // Predicated region
        $region25: #{conv_embedding_pallas.1} parent=11 // pred_check
          %p592 = pneg %p143
        $region26: #{conv_embedding_pallas.1} parent=11 // pred_check_branch
          %594 = sbr.rel (%p592) target = $region28
        $region27: #{conv_embedding_pallas.1} parent=11 // pred_region
          _
        $region28: #{conv_embedding_pallas.1} parent=11 // pred_fallthru
          _
        // Predicated region
        $region29: #{conv_embedding_pallas.1} parent=11 // pred_check
          %p595 = pneg %p164
        $region30: #{conv_embedding_pallas.1} parent=11 // pred_check_branch
          %597 = sbr.rel (%p595) target = $region32
        $region31: #{conv_embedding_pallas.1} parent=11 // pred_region
          _
        $region32: #{conv_embedding_pallas.1} parent=11 // pred_fallthru
          _
        // Predicated region
        $region33: #{conv_embedding_pallas.1} parent=11 // pred_check
          %p598 = pneg %p185
        $region34: #{conv_embedding_pallas.1} parent=11 // pred_check_branch
          %600 = sbr.rel (%p598) target = $region36
        $region35: #{conv_embedding_pallas.1} parent=11 // pred_region
          _
        $region36: #{conv_embedding_pallas.1} parent=11 // pred_fallthru
          _
        // Predicated region
        $region37: #{conv_embedding_pallas.1} parent=11 // pred_check
          %p601 = pneg %p206
        $region38: #{conv_embedding_pallas.1} parent=11 // pred_check_branch
          %603 = sbr.rel (%p601) target = $region40
        $region39: #{conv_embedding_pallas.1} parent=11 // pred_region
          _
        $region40: #{conv_embedding_pallas.1} parent=11 // pred_fallthru
          _
        // Predicated region
        $region41: #{conv_embedding_pallas.1} parent=11 // pred_check
          %p604 = pneg %p227
        $region42: #{conv_embedding_pallas.1} parent=11 // pred_check_branch
          %606 = sbr.rel (%p604) target = $region44
        $region43: #{conv_embedding_pallas.1} parent=11 // pred_region
          _
        $region44: #{conv_embedding_pallas.1} parent=11 // pred_fallthru
          _
        // Predicated region
        $region45: #{conv_embedding_pallas.1} parent=11 // pred_check
          %p607 = pneg %p248
        $region46: #{conv_embedding_pallas.1} parent=11 // pred_check_branch
          %609 = sbr.rel (%p607) target = $region48
        $region47: #{conv_embedding_pallas.1} parent=11 // pred_region
          _
        $region48: #{conv_embedding_pallas.1} parent=11 // pred_fallthru
          _
        // Predicated region
        $region49: #{conv_embedding_pallas.1} parent=11 // pred_check
          %p610 = pneg %p269
        $region50: #{conv_embedding_pallas.1} parent=11 // pred_check_branch
          %612 = sbr.rel (%p610) target = $region52
        $region51: #{conv_embedding_pallas.1} parent=11 // pred_region
          _
        $region52: #{conv_embedding_pallas.1} parent=11 // pred_fallthru
          _
        // Predicated region
        $region53: #{conv_embedding_pallas.1} parent=11 // pred_check
          %p613 = pneg %p290
        $region54: #{conv_embedding_pallas.1} parent=11 // pred_check_branch
          %615 = sbr.rel (%p613) target = $region56
        $region55: #{conv_embedding_pallas.1} parent=11 // pred_region
          _
        $region56: #{conv_embedding_pallas.1} parent=11 // pred_fallthru
          _
        // Predicated region
        $region57: #{conv_embedding_pallas.1} parent=11 // pred_check
          %p616 = pneg %p311
        $region58: #{conv_embedding_pallas.1} parent=11 // pred_check_branch
          %618 = sbr.rel (%p616) target = $region60
        $region59: #{conv_embedding_pallas.1} parent=11 // pred_region
          _
        $region60: #{conv_embedding_pallas.1} parent=11 // pred_fallthru
          _
        // Predicated region
        $region61: #{conv_embedding_pallas.1} parent=11 // pred_check
          %p619 = pneg %p332
        $region62: #{conv_embedding_pallas.1} parent=11 // pred_check_branch
          %621 = sbr.rel (%p619) target = $region64
        $region63: #{conv_embedding_pallas.1} parent=11 // pred_region
          _
        $region64: #{conv_embedding_pallas.1} parent=11 // pred_fallthru
          _
        // Predicated region
        $region65: #{conv_embedding_pallas.1} parent=11 // pred_check
          %p622 = pneg %p353
        $region66: #{conv_embedding_pallas.1} parent=11 // pred_check_branch
          %624 = sbr.rel (%p622) target = $region68
        $region67: #{conv_embedding_pallas.1} parent=11 // pred_region
          _
        $region68: #{conv_embedding_pallas.1} parent=11 // pred_fallthru
          _
        // Predicated region
        $region69: #{conv_embedding_pallas.1} parent=11 // pred_check
          %p625 = pneg %p374
        $region70: #{conv_embedding_pallas.1} parent=11 // pred_check_branch
          %627 = sbr.rel (%p625) target = $region72
        $region71: #{conv_embedding_pallas.1} parent=11 // pred_region
          _
        $region72: #{conv_embedding_pallas.1} parent=11 // pred_fallthru
          _
        // Predicated region
        $region73: #{conv_embedding_pallas.1} parent=11 // pred_check
          %p628 = pneg %p395
        $region74: #{conv_embedding_pallas.1} parent=11 // pred_check_branch
          %630 = sbr.rel (%p628) target = $region76
        $region75: #{conv_embedding_pallas.1} parent=11 // pred_region
          _
        $region76: #{conv_embedding_pallas.1} parent=11 // pred_fallthru
          _
        // Predicated region
        $region77: #{conv_embedding_pallas.1} parent=11 // pred_check
          %p631 = pneg %p416
        $region78: #{conv_embedding_pallas.1} parent=11 // pred_check_branch
          %633 = sbr.rel (%p631) target = $region80
        $region79: #{conv_embedding_pallas.1} parent=11 // pred_region
          _
        $region80: #{conv_embedding_pallas.1} parent=11 // pred_fallthru
          _
        // Predicated region
        $region81: #{conv_embedding_pallas.1} parent=11 // pred_check
          %p634 = pneg %p437
        $region82: #{conv_embedding_pallas.1} parent=11 // pred_check_branch
          %636 = sbr.rel (%p634) target = $region84
        $region83: #{conv_embedding_pallas.1} parent=11 // pred_region
          _
        $region84: #{conv_embedding_pallas.1} parent=11 // pred_fallthru
          _
        // Predicated region
        $region85: #{conv_embedding_pallas.1} parent=11 // pred_check
          %p637 = pneg %p458
        $region86: #{conv_embedding_pallas.1} parent=11 // pred_check_branch
          %639 = sbr.rel (%p637) target = $region88
        $region87: #{conv_embedding_pallas.1} parent=11 // pred_region
          _
        $region88: #{conv_embedding_pallas.1} parent=11 // pred_fallthru
          _
        // Predicated region
        $region89: #{conv_embedding_pallas.1} parent=11 // pred_check
          %p640 = pneg %p479
        $region90: #{conv_embedding_pallas.1} parent=11 // pred_check_branch
          %642 = sbr.rel (%p640) target = $region92
        $region91: #{conv_embedding_pallas.1} parent=11 // pred_region
          _
        $region92: #{conv_embedding_pallas.1} parent=11 // pred_fallthru
          _
        // Predicated region
        $region93: #{conv_embedding_pallas.1} parent=11 // pred_check
          %p643 = pneg %p500
        $region94: #{conv_embedding_pallas.1} parent=11 // pred_check_branch
          %645 = sbr.rel (%p643) target = $region96
        $region95: #{conv_embedding_pallas.1} parent=11 // pred_region
          _
        $region96: #{conv_embedding_pallas.1} parent=11 // pred_fallthru
          _
        // Predicated region
        $region97: #{conv_embedding_pallas.1} parent=11 // pred_check
          %p646 = pneg %p521
        $region98: #{conv_embedding_pallas.1} parent=11 // pred_check_branch
          %648 = sbr.rel (%p646) target = $region100
        $region99: #{conv_embedding_pallas.1} parent=11 // pred_region
          _
        $region100: #{conv_embedding_pallas.1} parent=11 // pred_fallthru
          _
        // Predicated region
        $region101: #{conv_embedding_pallas.1} parent=11 // pred_check
          %p649 = pneg %p542
        $region102: #{conv_embedding_pallas.1} parent=11 // pred_check_branch
          %651 = sbr.rel (%p649) target = $region104
        $region103: #{conv_embedding_pallas.1} parent=11 // pred_region
          _
        $region104: #{conv_embedding_pallas.1} parent=11 // pred_fallthru
          _
      $region12: #{conv_embedding_pallas.1} parent=5 // pred_fallthru
        _
      %p652 = scmp.lt.s32.totalorder %s33, 2
      // Predicated region
      $region105: #{conv_embedding_pallas.1} parent=5 // pred_check
        %p653 = pneg %p652
      $region106: #{conv_embedding_pallas.1} parent=5 // pred_check_branch
        %655 = sbr.rel (%p653) target = $region108
      $region107: #{conv_embedding_pallas.1} parent=5 // pred_region
        // Predicated region
        $region109: #{conv_embedding_pallas.1} parent=107 // pred_check
          %p656 = pneg %p53
        $region110: #{conv_embedding_pallas.1} parent=107 // pred_check_branch
          %658 = sbr.rel (%p656) target = $region112
        $region111: #{conv_embedding_pallas.1} parent=107 // pred_region
          %p659 = scmp.lt.s32.totalorder %s33, 1
          %s660 = scalar_select %p659, %s33, 1
          %s661 = smul.addr %s660, 4
          %s662 = scalar_lea.vmem %s0, %s661
        $region112: #{conv_embedding_pallas.1} parent=107 // pred_fallthru
          _
      $region108: #{conv_embedding_pallas.1} parent=5 // pred_fallthru
        _
      %p663 = scmp.le.s32.totalorder 1, %s33
      %p664 = scmp.lt.s32.totalorder %s33, 3
      %p665 = pnand %p663, %p664
      %p666 = pneg %p665
      // Predicated region
      $region113: #{conv_embedding_pallas.1} parent=5 // pred_check
        _
      $region114: #{conv_embedding_pallas.1} parent=5 // pred_check_branch
        %668 = sbr.rel (%p665) target = $region116
      $region115: #{conv_embedding_pallas.1} parent=5 // pred_region
        %s669 = ssub.s32 %s33, 1
        %p670 = scmp.lt.s32.totalorder %s38, 1
        %s671 = scalar_select %p670, %s38, 1
        %s672 = smul.addr %s671, 4
        %s673 = scalar_lea.vmem %s0, %s672
        %p674 = pneg %p59
        %p675 = pneg %p56
        %p676 = pneg %p80
        %p677 = pneg %p77
        %p678 = pneg %p101
        %p679 = pneg %p98
        %p680 = pneg %p122
        %p681 = pneg %p119
        %p682 = pneg %p143
        %p683 = pneg %p140
        %p684 = pneg %p164
        %p685 = pneg %p161
        %p686 = pneg %p185
        %p687 = pneg %p182
        %p688 = pneg %p206
        %p689 = pneg %p203
        %p690 = pneg %p227
        %p691 = pneg %p224
        %p692 = pneg %p248
        %p693 = pneg %p245
        %p694 = pneg %p269
        %p695 = pneg %p266
        %p696 = pneg %p290
        %p697 = pneg %p287
        %p698 = pneg %p311
        %p699 = pneg %p308
        %p700 = pneg %p332
        %p701 = pneg %p329
        %p702 = pneg %p353
        %p703 = pneg %p350
        %p704 = pneg %p374
        %p705 = pneg %p371
        %p706 = pneg %p395
        %p707 = pneg %p392
        %p708 = pneg %p416
        %p709 = pneg %p413
        %p710 = pneg %p437
        %p711 = pneg %p434
        %p712 = pneg %p458
        %p713 = pneg %p455
        %p714 = pneg %p479
        %p715 = pneg %p476
        %p716 = pneg %p500
        %p717 = pneg %p497
        %p718 = pneg %p521
        %p719 = pneg %p518
        %p720 = pneg %p542
        %p721 = pneg %p539
        %p722 = pneg %p568
        %p723 = pneg %p565
        %s724 = sand.u32 %s555, 1
        %s725 = scalar_lea.sflag [#allocation3], %s724
        %s726 = sand.u32 %s555, 1
        %s727 = smul.addr %s726, 8
        %s728 = scalar_lea.vmem [#allocation2], %s727
        %p729 = scmp.lt.s32.totalorder %s38, 1
        %s730 = scalar_select %p729, %s38, 1
        %s731 = smul.addr %s730, 4
        %s732 = scalar_lea.vmem %s0, %s731
        %v733 = vld [vmem:[%s732] sm:$0xf]
        %v734 = vld [vmem:[%s3] sm:$0xff]
        %v735 = vld [vmem:[%s1] sm:$0xff]
        %v736 = vld [vmem:[%s1 + $0x8] sm:$0xff]
        %vm737 = vcmask 130048
        %v739 = vsel %vm737, %v733, 0
        %741 = vmatprep.subr.mxu0 0.0
        %742 = vmatpush1.msra.mxu0 %v735
        %743 = vmatprep.subr.mxu0 0.0
        %744 = vmatpush1.msra.mxu0 %v736
        %745 = vmatprep.subr.mxu0 0.0
        %746 = vmatpush1.msra.mxu0 0.0
        %747 = vmatprep.subr.mxu0 0.0
        %748 = vmatpush1.msra.mxu0 0.0
        %749 = vmatprep.subr.mxu0 0.0
        %750 = vmatpush1.msra.mxu0 0.0
        %751 = vmatprep.subr.mxu0 0.0
        %752 = vmatpush1.msra.mxu0 0.0
        %753 = vmatprep.subr.mxu0 0.0
        %754 = vmatpush1.msra.mxu0 0.0
        %755 = vmatprep.subr.mxu0 0.0
        %756 = vmatpush1.msra.mxu0 0.0
        %757 = vmatprep.subr.mxu0 0.0
        %758 = vmatpush1.msra.mxu0 0.0
        %759 = vmatprep.subr.mxu0 0.0
        %760 = vmatpush1.msra.mxu0 0.0
        %761 = vmatprep.subr.mxu0 0.0
        %762 = vmatpush1.msra.mxu0 0.0
        %763 = vmatprep.subr.mxu0 0.0
        %764 = vmatpush1.msra.mxu0 0.0
        %765 = vmatprep.subr.mxu0 0.0
        %766 = vmatpush1.msra.mxu0 0.0
        %767 = vmatprep.subr.mxu0 0.0
        %768 = vmatpush1.msra.mxu0 0.0
        %769 = vmatprep.subr.mxu0 0.0
        %770 = vmatpush1.msra.mxu0 0.0
        %771 = vmatprep.subr.mxu0 0.0
        %772 = vmatpush1.msra.mxu0 0.0
        %773 = vmatprep.subr.mxu0 0.0
        %774 = vmatpush1.msra.mxu0 0.0
        %775 = vmatprep.subr.mxu0 0.0
        %776 = vmatpush1.msra.mxu0 0.0
        %777 = vmatprep.subr.mxu0 0.0
        %778 = vmatpush1.msra.mxu0 0.0
        %779 = vmatprep.subr.mxu0 0.0
        %780 = vmatpush1.msra.mxu0 0.0
        %781 = vmatprep.subr.mxu0 0.0
        %782 = vmatpush1.msra.mxu0 0.0
        %783 = vmatprep.subr.mxu0 0.0
        %784 = vmatpush1.msra.mxu0 0.0
        %785 = vmatprep.subr.mxu0 0.0
        %786 = vmatpush1.msra.mxu0 0.0
        %787 = vmatprep.subr.mxu0 0.0
        %788 = vmatpush1.msra.mxu0 0.0
        %789 = vmatprep.subr.mxu0 0.0
        %790 = vmatpush1.msra.mxu0 0.0
        %791 = vmatprep.subr.mxu0 0.0
        %792 = vmatpush1.msra.mxu0 0.0
        %793 = vmatprep.subr.mxu0 0.0
        %794 = vmatpush1.msra.mxu0 0.0
        %795 = vmatprep.subr.mxu0 0.0
        %796 = vmatpush1.msra.mxu0 0.0
        %797 = vmatprep.subr.mxu0 0.0
        %798 = vmatpush1.msra.mxu0 0.0
        %799 = vmatprep.subr.mxu0 0.0
        %800 = vmatpush1.msra.mxu0 0.0
        %801 = vmatprep.subr.mxu0 0.0
        %802 = vmatpush1.msra.mxu0 0.0
        %803 = vmatprep.subr.mxu0 0.0
        %804 = vmatpush1.msra.mxu0 0.0
        %805 = vmatprep.mubr.f32.mxu0 0.0
        %806 = vmatmul.mubr.f32.gmra.mrb[0].mxu0 %v739
        %v807 = vpop.f32.mrb[0].mxu0
        %v808 = vadd.f32 0.0, %v807
        %v809 = vpop.f32.mrb[0].mxu0
        %810 = vdwg.mxu0
        %v811 = vld [vmem:[%s2] sm:$0xff]
        %vm812 = vcmask 31744
        %v814 = vsel %vm812, %v811, 0
        %vm816 = vcmask 1043456
        %v818 = vsel %vm816, %v808, 0
        %820 = vmatprep.subr.mxu0 0.0
        %821 = vmatpush1.msra.mxu0 %v818
        %822 = vmatprep.subr.mxu0 0.0
        %823 = vmatpush1.msra.mxu0 0.0
        %824 = vmatprep.subr.mxu0 0.0
        %825 = vmatpush1.msra.mxu0 0.0
        %826 = vmatprep.subr.mxu0 0.0
        %827 = vmatpush1.msra.mxu0 0.0
        %828 = vmatprep.subr.mxu0 0.0
        %829 = vmatpush1.msra.mxu0 0.0
        %830 = vmatprep.subr.mxu0 0.0
        %831 = vmatpush1.msra.mxu0 0.0
        %832 = vmatprep.subr.mxu0 0.0
        %833 = vmatpush1.msra.mxu0 0.0
        %834 = vmatprep.subr.mxu0 0.0
        %835 = vmatpush1.msra.mxu0 0.0
        %836 = vmatprep.subr.mxu0 0.0
        %837 = vmatpush1.msra.mxu0 0.0
        %838 = vmatprep.subr.mxu0 0.0
        %839 = vmatpush1.msra.mxu0 0.0
        %840 = vmatprep.subr.mxu0 0.0
        %841 = vmatpush1.msra.mxu0 0.0
        %842 = vmatprep.subr.mxu0 0.0
        %843 = vmatpush1.msra.mxu0 0.0
        %844 = vmatprep.subr.mxu0 0.0
        %845 = vmatpush1.msra.mxu0 0.0
        %846 = vmatprep.subr.mxu0 0.0
        %847 = vmatpush1.msra.mxu0 0.0
        %848 = vmatprep.subr.mxu0 0.0
        %849 = vmatpush1.msra.mxu0 0.0
        %850 = vmatprep.subr.mxu0 0.0
        %851 = vmatpush1.msra.mxu0 0.0
        %852 = vmatprep.subr.mxu0 0.0
        %853 = vmatpush1.msra.mxu0 0.0
        %854 = vmatprep.subr.mxu0 0.0
        %855 = vmatpush1.msra.mxu0 0.0
        %856 = vmatprep.subr.mxu0 0.0
        %857 = vmatpush1.msra.mxu0 0.0
        %858 = vmatprep.subr.mxu0 0.0
        %859 = vmatpush1.msra.mxu0 0.0
        %860 = vmatprep.subr.mxu0 0.0
        %861 = vmatpush1.msra.mxu0 0.0
        %862 = vmatprep.subr.mxu0 0.0
        %863 = vmatpush1.msra.mxu0 0.0
        %864 = vmatprep.subr.mxu0 0.0
        %865 = vmatpush1.msra.mxu0 0.0
        %866 = vmatprep.subr.mxu0 0.0
        %867 = vmatpush1.msra.mxu0 0.0
        %868 = vmatprep.subr.mxu0 0.0
        %869 = vmatpush1.msra.mxu0 0.0
        %870 = vmatprep.subr.mxu0 0.0
        %871 = vmatpush1.msra.mxu0 0.0
        %872 = vmatprep.subr.mxu0 0.0
        %873 = vmatpush1.msra.mxu0 0.0
        %874 = vmatprep.subr.mxu0 0.0
        %875 = vmatpush1.msra.mxu0 0.0
        %876 = vmatprep.subr.mxu0 0.0
        %877 = vmatpush1.msra.mxu0 0.0
        %878 = vmatprep.subr.mxu0 0.0
        %879 = vmatpush1.msra.mxu0 0.0
        %880 = vmatprep.subr.mxu0 0.0
        %881 = vmatpush1.msra.mxu0 0.0
        %882 = vmatprep.subr.mxu0 0.0
        %883 = vmatpush1.msra.mxu0 0.0
        %884 = vmatprep.mubr.f32.mxu0 0.0
        %885 = vmatmul.mubr.f32.gmra.mrb[0].mxu0 %v814
        %v886 = vpop.f32.mrb[0].mxu0
        %v887 = vadd.f32 0.0, %v886
        %v888 = vpop.f32.mrb[0].mxu0
        %889 = vdwg.mxu0
        %891 = vset.pattern.permute.xlu0 0
        %892 = vperm.xlu0 %891, %v734
        %v893 = vpop.permute.xlu0 %892
        %v895 = vadd.f32 %v893, %v887
        %s896 = scalar_lea.vmem %s1, 16
        %v897 = vld [vmem:[%s896] sm:$0xff]
        %v898 = vld [vmem:[%s896 + $0x8] sm:$0xff]
        %899 = vmatprep.subr.mxu0 0.0
        %900 = vmatpush1.msra.mxu0 %v897
        %901 = vmatprep.subr.mxu0 0.0
        %902 = vmatpush1.msra.mxu0 %v898
        %903 = vmatprep.subr.mxu0 0.0
        %904 = vmatpush1.msra.mxu0 0.0
        %905 = vmatprep.subr.mxu0 0.0
        %906 = vmatpush1.msra.mxu0 0.0
        %907 = vmatprep.subr.mxu0 0.0
        %908 = vmatpush1.msra.mxu0 0.0
        %909 = vmatprep.subr.mxu0 0.0
        %910 = vmatpush1.msra.mxu0 0.0
        %911 = vmatprep.subr.mxu0 0.0
        %912 = vmatpush1.msra.mxu0 0.0
        %913 = vmatprep.subr.mxu0 0.0
        %914 = vmatpush1.msra.mxu0 0.0
        %915 = vmatprep.subr.mxu0 0.0
        %916 = vmatpush1.msra.mxu0 0.0
        %917 = vmatprep.subr.mxu0 0.0
        %918 = vmatpush1.msra.mxu0 0.0
        %919 = vmatprep.subr.mxu0 0.0
        %920 = vmatpush1.msra.mxu0 0.0
        %921 = vmatprep.subr.mxu0 0.0
        %922 = vmatpush1.msra.mxu0 0.0
        %923 = vmatprep.subr.mxu0 0.0
        %924 = vmatpush1.msra.mxu0 0.0
        %925 = vmatprep.subr.mxu0 0.0
        %926 = vmatpush1.msra.mxu0 0.0
        %927 = vmatprep.subr.mxu0 0.0
        %928 = vmatpush1.msra.mxu0 0.0
        %929 = vmatprep.subr.mxu0 0.0
        %930 = vmatpush1.msra.mxu0 0.0
        %931 = vmatprep.subr.mxu0 0.0
        %932 = vmatpush1.msra.mxu0 0.0
        %933 = vmatprep.subr.mxu0 0.0
        %934 = vmatpush1.msra.mxu0 0.0
        %935 = vmatprep.subr.mxu0 0.0
        %936 = vmatpush1.msra.mxu0 0.0
        %937 = vmatprep.subr.mxu0 0.0
        %938 = vmatpush1.msra.mxu0 0.0
        %939 = vmatprep.subr.mxu0 0.0
        %940 = vmatpush1.msra.mxu0 0.0
        %941 = vmatprep.subr.mxu0 0.0
        %942 = vmatpush1.msra.mxu0 0.0
        %943 = vmatprep.subr.mxu0 0.0
        %944 = vmatpush1.msra.mxu0 0.0
        %945 = vmatprep.subr.mxu0 0.0
        %946 = vmatpush1.msra.mxu0 0.0
        %947 = vmatprep.subr.mxu0 0.0
        %948 = vmatpush1.msra.mxu0 0.0
        %949 = vmatprep.subr.mxu0 0.0
        %950 = vmatpush1.msra.mxu0 0.0
        %951 = vmatprep.subr.mxu0 0.0
        %952 = vmatpush1.msra.mxu0 0.0
        %953 = vmatprep.subr.mxu0 0.0
        %954 = vmatpush1.msra.mxu0 0.0
        %955 = vmatprep.subr.mxu0 0.0
        %956 = vmatpush1.msra.mxu0 0.0
        %957 = vmatprep.subr.mxu0 0.0
        %958 = vmatpush1.msra.mxu0 0.0
        %959 = vmatprep.subr.mxu0 0.0
        %960 = vmatpush1.msra.mxu0 0.0
        %961 = vmatprep.subr.mxu0 0.0
        %962 = vmatpush1.msra.mxu0 0.0
        %963 = vmatprep.mubr.f32.mxu0 0.0
        %964 = vmatmul.mubr.f32.gmra.mrb[0].mxu0 %v739
        %v965 = vpop.f32.mrb[0].mxu0
        %v966 = vadd.f32 0.0, %v965
        %v967 = vpop.f32.mrb[0].mxu0
        %968 = vdwg.mxu0
        %s969 = scalar_lea.vmem %s2, 8
        %v970 = vld [vmem:[%s969] sm:$0xff]
        %v972 = vsel %vm812, %v970, 0
        %v975 = vsel %vm816, %v966, 0
        %977 = vmatprep.subr.mxu0 0.0
        %978 = vmatpush1.msra.mxu0 %v975
        %979 = vmatprep.subr.mxu0 0.0
        %980 = vmatpush1.msra.mxu0 0.0
        %981 = vmatprep.subr.mxu0 0.0
        %982 = vmatpush1.msra.mxu0 0.0
        %983 = vmatprep.subr.mxu0 0.0
        %984 = vmatpush1.msra.mxu0 0.0
        %985 = vmatprep.subr.mxu0 0.0
        %986 = vmatpush1.msra.mxu0 0.0
        %987 = vmatprep.subr.mxu0 0.0
        %988 = vmatpush1.msra.mxu0 0.0
        %989 = vmatprep.subr.mxu0 0.0
        %990 = vmatpush1.msra.mxu0 0.0
        %991 = vmatprep.subr.mxu0 0.0
        %992 = vmatpush1.msra.mxu0 0.0
        %993 = vmatprep.subr.mxu0 0.0
        %994 = vmatpush1.msra.mxu0 0.0
        %995 = vmatprep.subr.mxu0 0.0
        %996 = vmatpush1.msra.mxu0 0.0
        %997 = vmatprep.subr.mxu0 0.0
        %998 = vmatpush1.msra.mxu0 0.0
        %999 = vmatprep.subr.mxu0 0.0
        %1000 = vmatpush1.msra.mxu0 0.0
        %1001 = vmatprep.subr.mxu0 0.0
        %1002 = vmatpush1.msra.mxu0 0.0
        %1003 = vmatprep.subr.mxu0 0.0
        %1004 = vmatpush1.msra.mxu0 0.0
        %1005 = vmatprep.subr.mxu0 0.0
        %1006 = vmatpush1.msra.mxu0 0.0
        %1007 = vmatprep.subr.mxu0 0.0
        %1008 = vmatpush1.msra.mxu0 0.0
        %1009 = vmatprep.subr.mxu0 0.0
        %1010 = vmatpush1.msra.mxu0 0.0
        %1011 = vmatprep.subr.mxu0 0.0
        %1012 = vmatpush1.msra.mxu0 0.0
        %1013 = vmatprep.subr.mxu0 0.0
        %1014 = vmatpush1.msra.mxu0 0.0
        %1015 = vmatprep.subr.mxu0 0.0
        %1016 = vmatpush1.msra.mxu0 0.0
        %1017 = vmatprep.subr.mxu0 0.0
        %1018 = vmatpush1.msra.mxu0 0.0
        %1019 = vmatprep.subr.mxu0 0.0
        %1020 = vmatpush1.msra.mxu0 0.0
        %1021 = vmatprep.subr.mxu0 0.0
        %1022 = vmatpush1.msra.mxu0 0.0
        %1023 = vmatprep.subr.mxu0 0.0
        %1024 = vmatpush1.msra.mxu0 0.0
        %1025 = vmatprep.subr.mxu0 0.0
        %1026 = vmatpush1.msra.mxu0 0.0
        %1027 = vmatprep.subr.mxu0 0.0
        %1028 = vmatpush1.msra.mxu0 0.0
        %1029 = vmatprep.subr.mxu0 0.0
        %1030 = vmatpush1.msra.mxu0 0.0
        %1031 = vmatprep.subr.mxu0 0.0
        %1032 = vmatpush1.msra.mxu0 0.0
        %1033 = vmatprep.subr.mxu0 0.0
        %1034 = vmatpush1.msra.mxu0 0.0
        %1035 = vmatprep.subr.mxu0 0.0
        %1036 = vmatpush1.msra.mxu0 0.0
        %1037 = vmatprep.subr.mxu0 0.0
        %1038 = vmatpush1.msra.mxu0 0.0
        %1039 = vmatprep.subr.mxu0 0.0
        %1040 = vmatpush1.msra.mxu0 0.0
        %1041 = vmatprep.mubr.f32.mxu0 0.0
        %1042 = vmatmul.mubr.f32.gmra.mrb[0].mxu0 %v972
        %v1043 = vpop.f32.mrb[0].mxu0
        %v1044 = vadd.f32 0.0, %v1043
        %v1045 = vpop.f32.mrb[0].mxu0
        %1046 = vdwg.mxu0
        %v1047 = vadd.f32 %v895, %v1044
        %s1048 = scalar_lea.vmem %s1, 32
        %v1049 = vld [vmem:[%s1048] sm:$0xff]
        %v1050 = vld [vmem:[%s1048 + $0x8] sm:$0xff]
        %1051 = vmatprep.subr.mxu0 0.0
        %1052 = vmatpush1.msra.mxu0 %v1049
        %1053 = vmatprep.subr.mxu0 0.0
        %1054 = vmatpush1.msra.mxu0 %v1050
        %1055 = vmatprep.subr.mxu0 0.0
        %1056 = vmatpush1.msra.mxu0 0.0
        %1057 = vmatprep.subr.mxu0 0.0
        %1058 = vmatpush1.msra.mxu0 0.0
        %1059 = vmatprep.subr.mxu0 0.0
        %1060 = vmatpush1.msra.mxu0 0.0
        %1061 = vmatprep.subr.mxu0 0.0
        %1062 = vmatpush1.msra.mxu0 0.0
        %1063 = vmatprep.subr.mxu0 0.0
        %1064 = vmatpush1.msra.mxu0 0.0
        %1065 = vmatprep.subr.mxu0 0.0
        %1066 = vmatpush1.msra.mxu0 0.0
        %1067 = vmatprep.subr.mxu0 0.0
        %1068 = vmatpush1.msra.mxu0 0.0
        %1069 = vmatprep.subr.mxu0 0.0
        %1070 = vmatpush1.msra.mxu0 0.0
        %1071 = vmatprep.subr.mxu0 0.0
        %1072 = vmatpush1.msra.mxu0 0.0
        %1073 = vmatprep.subr.mxu0 0.0
        %1074 = vmatpush1.msra.mxu0 0.0
        %1075 = vmatprep.subr.mxu0 0.0
        %1076 = vmatpush1.msra.mxu0 0.0
        %1077 = vmatprep.subr.mxu0 0.0
        %1078 = vmatpush1.msra.mxu0 0.0
        %1079 = vmatprep.subr.mxu0 0.0
        %1080 = vmatpush1.msra.mxu0 0.0
        %1081 = vmatprep.subr.mxu0 0.0
        %1082 = vmatpush1.msra.mxu0 0.0
        %1083 = vmatprep.subr.mxu0 0.0
        %1084 = vmatpush1.msra.mxu0 0.0
        %1085 = vmatprep.subr.mxu0 0.0
        %1086 = vmatpush1.msra.mxu0 0.0
        %1087 = vmatprep.subr.mxu0 0.0
        %1088 = vmatpush1.msra.mxu0 0.0
        %1089 = vmatprep.subr.mxu0 0.0
        %1090 = vmatpush1.msra.mxu0 0.0
        %1091 = vmatprep.subr.mxu0 0.0
        %1092 = vmatpush1.msra.mxu0 0.0
        %1093 = vmatprep.subr.mxu0 0.0
        %1094 = vmatpush1.msra.mxu0 0.0
        %1095 = vmatprep.subr.mxu0 0.0
        %1096 = vmatpush1.msra.mxu0 0.0
        %1097 = vmatprep.subr.mxu0 0.0
        %1098 = vmatpush1.msra.mxu0 0.0
        %1099 = vmatprep.subr.mxu0 0.0
        %1100 = vmatpush1.msra.mxu0 0.0
        %1101 = vmatprep.subr.mxu0 0.0
        %1102 = vmatpush1.msra.mxu0 0.0
        %1103 = vmatprep.subr.mxu0 0.0
        %1104 = vmatpush1.msra.mxu0 0.0
        %1105 = vmatprep.subr.mxu0 0.0
        %1106 = vmatpush1.msra.mxu0 0.0
        %1107 = vmatprep.subr.mxu0 0.0
        %1108 = vmatpush1.msra.mxu0 0.0
        %1109 = vmatprep.subr.mxu0 0.0
        %1110 = vmatpush1.msra.mxu0 0.0
        %1111 = vmatprep.subr.mxu0 0.0
        %1112 = vmatpush1.msra.mxu0 0.0
        %1113 = vmatprep.subr.mxu0 0.0
        %1114 = vmatpush1.msra.mxu0 0.0
        %1115 = vmatprep.mubr.f32.mxu0 0.0
        %1116 = vmatmul.mubr.f32.gmra.mrb[0].mxu0 %v739
        %v1117 = vpop.f32.mrb[0].mxu0
        %v1118 = vadd.f32 0.0, %v1117
        %v1119 = vpop.f32.mrb[0].mxu0
        %1120 = vdwg.mxu0
        %s1121 = scalar_lea.vmem %s2, 16
        %v1122 = vld [vmem:[%s1121] sm:$0xff]
        %v1124 = vsel %vm812, %v1122, 0
        %v1127 = vsel %vm816, %v1118, 0
        %1129 = vmatprep.subr.mxu0 0.0
        %1130 = vmatpush1.msra.mxu0 %v1127
        %1131 = vmatprep.subr.mxu0 0.0
        %1132 = vmatpush1.msra.mxu0 0.0
        %1133 = vmatprep.subr.mxu0 0.0
        %1134 = vmatpush1.msra.mxu0 0.0
        %1135 = vmatprep.subr.mxu0 0.0
        %1136 = vmatpush1.msra.mxu0 0.0
        %1137 = vmatprep.subr.mxu0 0.0
        %1138 = vmatpush1.msra.mxu0 0.0
        %1139 = vmatprep.subr.mxu0 0.0
        %1140 = vmatpush1.msra.mxu0 0.0
        %1141 = vmatprep.subr.mxu0 0.0
        %1142 = vmatpush1.msra.mxu0 0.0
        %1143 = vmatprep.subr.mxu0 0.0
        %1144 = vmatpush1.msra.mxu0 0.0
        %1145 = vmatprep.subr.mxu0 0.0
        %1146 = vmatpush1.msra.mxu0 0.0
        %1147 = vmatprep.subr.mxu0 0.0
        %1148 = vmatpush1.msra.mxu0 0.0
        %1149 = vmatprep.subr.mxu0 0.0
        %1150 = vmatpush1.msra.mxu0 0.0
        %1151 = vmatprep.subr.mxu0 0.0
        %1152 = vmatpush1.msra.mxu0 0.0
        %1153 = vmatprep.subr.mxu0 0.0
        %1154 = vmatpush1.msra.mxu0 0.0
        %1155 = vmatprep.subr.mxu0 0.0
        %1156 = vmatpush1.msra.mxu0 0.0
        %1157 = vmatprep.subr.mxu0 0.0
        %1158 = vmatpush1.msra.mxu0 0.0
        %1159 = vmatprep.subr.mxu0 0.0
        %1160 = vmatpush1.msra.mxu0 0.0
        %1161 = vmatprep.subr.mxu0 0.0
        %1162 = vmatpush1.msra.mxu0 0.0
        %1163 = vmatprep.subr.mxu0 0.0
        %1164 = vmatpush1.msra.mxu0 0.0
        %1165 = vmatprep.subr.mxu0 0.0
        %1166 = vmatpush1.msra.mxu0 0.0
        %1167 = vmatprep.subr.mxu0 0.0
        %1168 = vmatpush1.msra.mxu0 0.0
        %1169 = vmatprep.subr.mxu0 0.0
        %1170 = vmatpush1.msra.mxu0 0.0
        %1171 = vmatprep.subr.mxu0 0.0
        %1172 = vmatpush1.msra.mxu0 0.0
        %1173 = vmatprep.subr.mxu0 0.0
        %1174 = vmatpush1.msra.mxu0 0.0
        %1175 = vmatprep.subr.mxu0 0.0
        %1176 = vmatpush1.msra.mxu0 0.0
        %1177 = vmatprep.subr.mxu0 0.0
        %1178 = vmatpush1.msra.mxu0 0.0
        %1179 = vmatprep.subr.mxu0 0.0
        %1180 = vmatpush1.msra.mxu0 0.0
        %1181 = vmatprep.subr.mxu0 0.0
        %1182 = vmatpush1.msra.mxu0 0.0
        %1183 = vmatprep.subr.mxu0 0.0
        %1184 = vmatpush1.msra.mxu0 0.0
        %1185 = vmatprep.subr.mxu0 0.0
        %1186 = vmatpush1.msra.mxu0 0.0
        %1187 = vmatprep.subr.mxu0 0.0
        %1188 = vmatpush1.msra.mxu0 0.0
        %1189 = vmatprep.subr.mxu0 0.0
        %1190 = vmatpush1.msra.mxu0 0.0
        %1191 = vmatprep.subr.mxu0 0.0
        %1192 = vmatpush1.msra.mxu0 0.0
        %1193 = vmatprep.mubr.f32.mxu0 0.0
        %1194 = vmatmul.mubr.f32.gmra.mrb[0].mxu0 %v1124
        %v1195 = vpop.f32.mrb[0].mxu0
        %v1196 = vadd.f32 0.0, %v1195
        %v1197 = vpop.f32.mrb[0].mxu0
        %1198 = vdwg.mxu0
        %v1199 = vadd.f32 %v1047, %v1196
        %v1200 = vxor.u32 %v1199, 2147483648
        %v1201 = vmul.f32 %v1200, 1.442695
        %v1202 = vpow.pop %v1201
        %v1203 = vadd.f32 %v1202, 1.0
        %v1204 = vrcp.pop %v1203
        %v1205 = vmul.f32 1.0, %v1204
        %v1206 = vmul.f32 %v1199, %v1205
        %v1207 = vld [vmem:[%s4] sm:$0xff]
        %vm1208 = vcmask 64512
        %v1210 = vsel %vm1208, %v1206, 0
        %1212 = vmatprep.subr.mxu0 0.0
        %1213 = vmatpush1.msra.mxu0 %v1207
        %1214 = vmatprep.subr.mxu0 0.0
        %1215 = vmatpush1.msra.mxu0 0.0
        %1216 = vmatprep.subr.mxu0 0.0
        %1217 = vmatpush1.msra.mxu0 0.0
        %1218 = vmatprep.subr.mxu0 0.0
        %1219 = vmatpush1.msra.mxu0 0.0
        %1220 = vmatprep.subr.mxu0 0.0
        %1221 = vmatpush1.msra.mxu0 0.0
        %1222 = vmatprep.subr.mxu0 0.0
        %1223 = vmatpush1.msra.mxu0 0.0
        %1224 = vmatprep.subr.mxu0 0.0
        %1225 = vmatpush1.msra.mxu0 0.0
        %1226 = vmatprep.subr.mxu0 0.0
        %1227 = vmatpush1.msra.mxu0 0.0
        %1228 = vmatprep.subr.mxu0 0.0
        %1229 = vmatpush1.msra.mxu0 0.0
        %1230 = vmatprep.subr.mxu0 0.0
        %1231 = vmatpush1.msra.mxu0 0.0
        %1232 = vmatprep.subr.mxu0 0.0
        %1233 = vmatpush1.msra.mxu0 0.0
        %1234 = vmatprep.subr.mxu0 0.0
        %1235 = vmatpush1.msra.mxu0 0.0
        %1236 = vmatprep.subr.mxu0 0.0
        %1237 = vmatpush1.msra.mxu0 0.0
        %1238 = vmatprep.subr.mxu0 0.0
        %1239 = vmatpush1.msra.mxu0 0.0
        %1240 = vmatprep.subr.mxu0 0.0
        %1241 = vmatpush1.msra.mxu0 0.0
        %1242 = vmatprep.subr.mxu0 0.0
        %1243 = vmatpush1.msra.mxu0 0.0
        %1244 = vmatprep.subr.mxu0 0.0
        %1245 = vmatpush1.msra.mxu0 0.0
        %1246 = vmatprep.subr.mxu0 0.0
        %1247 = vmatpush1.msra.mxu0 0.0
        %1248 = vmatprep.subr.mxu0 0.0
        %1249 = vmatpush1.msra.mxu0 0.0
        %1250 = vmatprep.subr.mxu0 0.0
        %1251 = vmatpush1.msra.mxu0 0.0
        %1252 = vmatprep.subr.mxu0 0.0
        %1253 = vmatpush1.msra.mxu0 0.0
        %1254 = vmatprep.subr.mxu0 0.0
        %1255 = vmatpush1.msra.mxu0 0.0
        %1256 = vmatprep.subr.mxu0 0.0
        %1257 = vmatpush1.msra.mxu0 0.0
        %1258 = vmatprep.subr.mxu0 0.0
        %1259 = vmatpush1.msra.mxu0 0.0
        %1260 = vmatprep.subr.mxu0 0.0
        %1261 = vmatpush1.msra.mxu0 0.0
        %1262 = vmatprep.subr.mxu0 0.0
        %1263 = vmatpush1.msra.mxu0 0.0
        %1264 = vmatprep.subr.mxu0 0.0
        %1265 = vmatpush1.msra.mxu0 0.0
        %1266 = vmatprep.subr.mxu0 0.0
        %1267 = vmatpush1.msra.mxu0 0.0
        %1268 = vmatprep.subr.mxu0 0.0
        %1269 = vmatpush1.msra.mxu0 0.0
        %1270 = vmatprep.subr.mxu0 0.0
        %1271 = vmatpush1.msra.mxu0 0.0
        %1272 = vmatprep.subr.mxu0 0.0
        %1273 = vmatpush1.msra.mxu0 0.0
        %1274 = vmatprep.subr.mxu0 0.0
        %1275 = vmatpush1.msra.mxu0 0.0
        %1276 = vmatprep.mubr.f32.mxu0 0.0
        %1277 = vmatmul.mubr.f32.gmra.mrb[0].mxu0 %v1210
        %v1278 = vpop.f32.mrb[0].mxu0
        %v1279 = vadd.f32 0.0, %v1278
        %v1280 = vpop.f32.mrb[0].mxu0
        %1281 = vdwg.mxu0
        %v1282 = vld [vmem:[%s6] sm:$0xff]
        %v1283 = vld [vmem:[%s7] sm:$0xff]
        %v1285 = vsel %vm1208, %v1282, 0
        %1287 = vmatprep.subr.mxu0 0.0
        %1288 = vmatpush1.msra.mxu0 %v1279
        %1289 = vmatprep.subr.mxu0 0.0
        %1290 = vmatpush1.msra.mxu0 0.0
        %1291 = vmatprep.subr.mxu0 0.0
        %1292 = vmatpush1.msra.mxu0 0.0
        %1293 = vmatprep.subr.mxu0 0.0
        %1294 = vmatpush1.msra.mxu0 0.0
        %1295 = vmatprep.subr.mxu0 0.0
        %1296 = vmatpush1.msra.mxu0 0.0
        %1297 = vmatprep.subr.mxu0 0.0
        %1298 = vmatpush1.msra.mxu0 0.0
        %1299 = vmatprep.subr.mxu0 0.0
        %1300 = vmatpush1.msra.mxu0 0.0
        %1301 = vmatprep.subr.mxu0 0.0
        %1302 = vmatpush1.msra.mxu0 0.0
        %1303 = vmatprep.subr.mxu0 0.0
        %1304 = vmatpush1.msra.mxu0 0.0
        %1305 = vmatprep.subr.mxu0 0.0
        %1306 = vmatpush1.msra.mxu0 0.0
        %1307 = vmatprep.subr.mxu0 0.0
        %1308 = vmatpush1.msra.mxu0 0.0
        %1309 = vmatprep.subr.mxu0 0.0
        %1310 = vmatpush1.msra.mxu0 0.0
        %1311 = vmatprep.subr.mxu0 0.0
        %1312 = vmatpush1.msra.mxu0 0.0
        %1313 = vmatprep.subr.mxu0 0.0
        %1314 = vmatpush1.msra.mxu0 0.0
        %1315 = vmatprep.subr.mxu0 0.0
        %1316 = vmatpush1.msra.mxu0 0.0
        %1317 = vmatprep.subr.mxu0 0.0
        %1318 = vmatpush1.msra.mxu0 0.0
        %1319 = vmatprep.subr.mxu0 0.0
        %1320 = vmatpush1.msra.mxu0 0.0
        %1321 = vmatprep.subr.mxu0 0.0
        %1322 = vmatpush1.msra.mxu0 0.0
        %1323 = vmatprep.subr.mxu0 0.0
        %1324 = vmatpush1.msra.mxu0 0.0
        %1325 = vmatprep.subr.mxu0 0.0
        %1326 = vmatpush1.msra.mxu0 0.0
        %1327 = vmatprep.subr.mxu0 0.0
        %1328 = vmatpush1.msra.mxu0 0.0
        %1329 = vmatprep.subr.mxu0 0.0
        %1330 = vmatpush1.msra.mxu0 0.0
        %1331 = vmatprep.subr.mxu0 0.0
        %1332 = vmatpush1.msra.mxu0 0.0
        %1333 = vmatprep.subr.mxu0 0.0
        %1334 = vmatpush1.msra.mxu0 0.0
        %1335 = vmatprep.subr.mxu0 0.0
        %1336 = vmatpush1.msra.mxu0 0.0
        %1337 = vmatprep.subr.mxu0 0.0
        %1338 = vmatpush1.msra.mxu0 0.0
        %1339 = vmatprep.subr.mxu0 0.0
        %1340 = vmatpush1.msra.mxu0 0.0
        %1341 = vmatprep.subr.mxu0 0.0
        %1342 = vmatpush1.msra.mxu0 0.0
        %1343 = vmatprep.subr.mxu0 0.0
        %1344 = vmatpush1.msra.mxu0 0.0
        %1345 = vmatprep.subr.mxu0 0.0
        %1346 = vmatpush1.msra.mxu0 0.0
        %1347 = vmatprep.subr.mxu0 0.0
        %1348 = vmatpush1.msra.mxu0 0.0
        %1349 = vmatprep.subr.mxu0 0.0
        %1350 = vmatpush1.msra.mxu0 0.0
        %1351 = vmatprep.mubr.f32.mxu0 0.0
        %1352 = vmatmul.mubr.f32.gmra.mrb[0].mxu0 %v1285
        %v1353 = vpop.f32.mrb[0].mxu0
        %v1354 = vadd.f32 %v1283, %v1353
        %v1355 = vpop.f32.mrb[0].mxu0
        %1356 = vdwg.mxu0
        %v1357 = vxor.u32 %v1354, 2147483648
        %v1358 = vmul.f32 %v1357, 1.442695
        %v1359 = vpow.pop %v1358
        %v1360 = vadd.f32 %v1359, 1.0
        %v1361 = vrcp.pop %v1360
        %v1362 = vmul.f32 1.0, %v1361
        %v1363 = vmul.f32 %v1354, %v1362
        %v1364 = vld [vmem:[%s8] sm:$0xff]
        %v1365 = vld [vmem:[%s9] sm:$0xff]
        %v1367 = vsel %vm1208, %v1364, 0
        %1369 = vmatprep.subr.mxu0 0.0
        %1370 = vmatpush1.msra.mxu0 %v1363
        %1371 = vmatprep.subr.mxu0 0.0
        %1372 = vmatpush1.msra.mxu0 0.0
        %1373 = vmatprep.subr.mxu0 0.0
        %1374 = vmatpush1.msra.mxu0 0.0
        %1375 = vmatprep.subr.mxu0 0.0
        %1376 = vmatpush1.msra.mxu0 0.0
        %1377 = vmatprep.subr.mxu0 0.0
        %1378 = vmatpush1.msra.mxu0 0.0
        %1379 = vmatprep.subr.mxu0 0.0
        %1380 = vmatpush1.msra.mxu0 0.0
        %1381 = vmatprep.subr.mxu0 0.0
        %1382 = vmatpush1.msra.mxu0 0.0
        %1383 = vmatprep.subr.mxu0 0.0
        %1384 = vmatpush1.msra.mxu0 0.0
        %1385 = vmatprep.subr.mxu0 0.0
        %1386 = vmatpush1.msra.mxu0 0.0
        %1387 = vmatprep.subr.mxu0 0.0
        %1388 = vmatpush1.msra.mxu0 0.0
        %1389 = vmatprep.subr.mxu0 0.0
        %1390 = vmatpush1.msra.mxu0 0.0
        %1391 = vmatprep.subr.mxu0 0.0
        %1392 = vmatpush1.msra.mxu0 0.0
        %1393 = vmatprep.subr.mxu0 0.0
        %1394 = vmatpush1.msra.mxu0 0.0
        %1395 = vmatprep.subr.mxu0 0.0
        %1396 = vmatpush1.msra.mxu0 0.0
        %1397 = vmatprep.subr.mxu0 0.0
        %1398 = vmatpush1.msra.mxu0 0.0
        %1399 = vmatprep.subr.mxu0 0.0
        %1400 = vmatpush1.msra.mxu0 0.0
        %1401 = vmatprep.subr.mxu0 0.0
        %1402 = vmatpush1.msra.mxu0 0.0
        %1403 = vmatprep.subr.mxu0 0.0
        %1404 = vmatpush1.msra.mxu0 0.0
        %1405 = vmatprep.subr.mxu0 0.0
        %1406 = vmatpush1.msra.mxu0 0.0
        %1407 = vmatprep.subr.mxu0 0.0
        %1408 = vmatpush1.msra.mxu0 0.0
        %1409 = vmatprep.subr.mxu0 0.0
        %1410 = vmatpush1.msra.mxu0 0.0
        %1411 = vmatprep.subr.mxu0 0.0
        %1412 = vmatpush1.msra.mxu0 0.0
        %1413 = vmatprep.subr.mxu0 0.0
        %1414 = vmatpush1.msra.mxu0 0.0
        %1415 = vmatprep.subr.mxu0 0.0
        %1416 = vmatpush1.msra.mxu0 0.0
        %1417 = vmatprep.subr.mxu0 0.0
        %1418 = vmatpush1.msra.mxu0 0.0
        %1419 = vmatprep.subr.mxu0 0.0
        %1420 = vmatpush1.msra.mxu0 0.0
        %1421 = vmatprep.subr.mxu0 0.0
        %1422 = vmatpush1.msra.mxu0 0.0
        %1423 = vmatprep.subr.mxu0 0.0
        %1424 = vmatpush1.msra.mxu0 0.0
        %1425 = vmatprep.subr.mxu0 0.0
        %1426 = vmatpush1.msra.mxu0 0.0
        %1427 = vmatprep.subr.mxu0 0.0
        %1428 = vmatpush1.msra.mxu0 0.0
        %1429 = vmatprep.subr.mxu0 0.0
        %1430 = vmatpush1.msra.mxu0 0.0
        %1431 = vmatprep.subr.mxu0 0.0
        %1432 = vmatpush1.msra.mxu0 0.0
        %1433 = vmatprep.mubr.f32.mxu0 0.0
        %1434 = vmatmul.mubr.f32.gmra.mrb[0].mxu0 %v1367
        %v1435 = vpop.f32.mrb[0].mxu0
        %v1436 = vadd.f32 %v1365, %v1435
        %v1437 = vpop.f32.mrb[0].mxu0
        %1438 = vdwg.mxu0
        %v1439 = vxor.u32 %v1436, 2147483648
        %v1440 = vmul.f32 %v1439, 1.442695
        %v1441 = vpow.pop %v1440
        %v1442 = vadd.f32 %v1441, 1.0
        %v1443 = vrcp.pop %v1442
        %v1444 = vmul.f32 1.0, %v1443
        %v1445 = vld [vmem:[%s5] sm:$0x1]
        %vm1446 = vcmask 7168
        %v1448 = vsel %vm1446, %v1444, 0
        %vm1450 = vcmask 1040384
        %v1452 = vsel %vm1450, %v1445, 0
        %1454 = vmatprep.subr.mxu0 0.0
        %1455 = vmatpush1.msra.mxu0 %v1452
        %1456 = vmatprep.subr.mxu0 0.0
        %1457 = vmatpush1.msra.mxu0 0.0
        %1458 = vmatprep.subr.mxu0 0.0
        %1459 = vmatpush1.msra.mxu0 0.0
        %1460 = vmatprep.subr.mxu0 0.0
        %1461 = vmatpush1.msra.mxu0 0.0
        %1462 = vmatprep.subr.mxu0 0.0
        %1463 = vmatpush1.msra.mxu0 0.0
        %1464 = vmatprep.subr.mxu0 0.0
        %1465 = vmatpush1.msra.mxu0 0.0
        %1466 = vmatprep.subr.mxu0 0.0
        %1467 = vmatpush1.msra.mxu0 0.0
        %1468 = vmatprep.subr.mxu0 0.0
        %1469 = vmatpush1.msra.mxu0 0.0
        %1470 = vmatprep.subr.mxu0 0.0
        %1471 = vmatpush1.msra.mxu0 0.0
        %1472 = vmatprep.subr.mxu0 0.0
        %1473 = vmatpush1.msra.mxu0 0.0
        %1474 = vmatprep.subr.mxu0 0.0
        %1475 = vmatpush1.msra.mxu0 0.0
        %1476 = vmatprep.subr.mxu0 0.0
        %1477 = vmatpush1.msra.mxu0 0.0
        %1478 = vmatprep.subr.mxu0 0.0
        %1479 = vmatpush1.msra.mxu0 0.0
        %1480 = vmatprep.subr.mxu0 0.0
        %1481 = vmatpush1.msra.mxu0 0.0
        %1482 = vmatprep.subr.mxu0 0.0
        %1483 = vmatpush1.msra.mxu0 0.0
        %1484 = vmatprep.subr.mxu0 0.0
        %1485 = vmatpush1.msra.mxu0 0.0
        %1486 = vmatprep.subr.mxu0 0.0
        %1487 = vmatpush1.msra.mxu0 0.0
        %1488 = vmatprep.subr.mxu0 0.0
        %1489 = vmatpush1.msra.mxu0 0.0
        %1490 = vmatprep.subr.mxu0 0.0
        %1491 = vmatpush1.msra.mxu0 0.0
        %1492 = vmatprep.subr.mxu0 0.0
        %1493 = vmatpush1.msra.mxu0 0.0
        %1494 = vmatprep.subr.mxu0 0.0
        %1495 = vmatpush1.msra.mxu0 0.0
        %1496 = vmatprep.subr.mxu0 0.0
        %1497 = vmatpush1.msra.mxu0 0.0
        %1498 = vmatprep.subr.mxu0 0.0
        %1499 = vmatpush1.msra.mxu0 0.0
        %1500 = vmatprep.subr.mxu0 0.0
        %1501 = vmatpush1.msra.mxu0 0.0
        %1502 = vmatprep.subr.mxu0 0.0
        %1503 = vmatpush1.msra.mxu0 0.0
        %1504 = vmatprep.subr.mxu0 0.0
        %1505 = vmatpush1.msra.mxu0 0.0
        %1506 = vmatprep.subr.mxu0 0.0
        %1507 = vmatpush1.msra.mxu0 0.0
        %1508 = vmatprep.subr.mxu0 0.0
        %1509 = vmatpush1.msra.mxu0 0.0
        %1510 = vmatprep.subr.mxu0 0.0
        %1511 = vmatpush1.msra.mxu0 0.0
        %1512 = vmatprep.subr.mxu0 0.0
        %1513 = vmatpush1.msra.mxu0 0.0
        %1514 = vmatprep.subr.mxu0 0.0
        %1515 = vmatpush1.msra.mxu0 0.0
        %1516 = vmatprep.subr.mxu0 0.0
        %1517 = vmatpush1.msra.mxu0 0.0
        %1518 = vmatprep.mubr.f32.mxu0 0.0
        %1519 = vmatmul.mubr.f32.gmra.mrb[0].mxu0 %v1448
        %v1520 = vpop.f32.mrb[0].mxu0
        %v1521 = vadd.f32 0.0, %v1520
        %v1522 = vpop.f32.mrb[0].mxu0
        %1523 = vdwg.mxu0
        %v1524 = vmul.f32 %v1206, %v1521
        %v1525 = vld [vmem:[%s10] sm:$0xff]
        %v1526 = vld [vmem:[%s11] sm:$0xff]
        %1528 = vset.pattern.permute.xlu0 0
        %1529 = vperm.xlu0 %1528, %v1526
        %v1530 = vpop.permute.xlu0 %1529
        %v1533 = vsel %vm1208, %v1525, 0
        %1535 = vmatprep.subr.mxu0 0.0
        %1536 = vmatpush1.msra.mxu0 %v1524
        %1537 = vmatprep.subr.mxu0 0.0
        %1538 = vmatpush1.msra.mxu0 0.0
        %1539 = vmatprep.subr.mxu0 0.0
        %1540 = vmatpush1.msra.mxu0 0.0
        %1541 = vmatprep.subr.mxu0 0.0
        %1542 = vmatpush1.msra.mxu0 0.0
        %1543 = vmatprep.subr.mxu0 0.0
        %1544 = vmatpush1.msra.mxu0 0.0
        %1545 = vmatprep.subr.mxu0 0.0
        %1546 = vmatpush1.msra.mxu0 0.0
        %1547 = vmatprep.subr.mxu0 0.0
        %1548 = vmatpush1.msra.mxu0 0.0
        %1549 = vmatprep.subr.mxu0 0.0
        %1550 = vmatpush1.msra.mxu0 0.0
        %1551 = vmatprep.subr.mxu0 0.0
        %1552 = vmatpush1.msra.mxu0 0.0
        %1553 = vmatprep.subr.mxu0 0.0
        %1554 = vmatpush1.msra.mxu0 0.0
        %1555 = vmatprep.subr.mxu0 0.0
        %1556 = vmatpush1.msra.mxu0 0.0
        %1557 = vmatprep.subr.mxu0 0.0
        %1558 = vmatpush1.msra.mxu0 0.0
        %1559 = vmatprep.subr.mxu0 0.0
        %1560 = vmatpush1.msra.mxu0 0.0
        %1561 = vmatprep.subr.mxu0 0.0
        %1562 = vmatpush1.msra.mxu0 0.0
        %1563 = vmatprep.subr.mxu0 0.0
        %1564 = vmatpush1.msra.mxu0 0.0
        %1565 = vmatprep.subr.mxu0 0.0
        %1566 = vmatpush1.msra.mxu0 0.0
        %1567 = vmatprep.subr.mxu0 0.0
        %1568 = vmatpush1.msra.mxu0 0.0
        %1569 = vmatprep.subr.mxu0 0.0
        %1570 = vmatpush1.msra.mxu0 0.0
        %1571 = vmatprep.subr.mxu0 0.0
        %1572 = vmatpush1.msra.mxu0 0.0
        %1573 = vmatprep.subr.mxu0 0.0
        %1574 = vmatpush1.msra.mxu0 0.0
        %1575 = vmatprep.subr.mxu0 0.0
        %1576 = vmatpush1.msra.mxu0 0.0
        %1577 = vmatprep.subr.mxu0 0.0
        %1578 = vmatpush1.msra.mxu0 0.0
        %1579 = vmatprep.subr.mxu0 0.0
        %1580 = vmatpush1.msra.mxu0 0.0
        %1581 = vmatprep.subr.mxu0 0.0
        %1582 = vmatpush1.msra.mxu0 0.0
        %1583 = vmatprep.subr.mxu0 0.0
        %1584 = vmatpush1.msra.mxu0 0.0
        %1585 = vmatprep.subr.mxu0 0.0
        %1586 = vmatpush1.msra.mxu0 0.0
        %1587 = vmatprep.subr.mxu0 0.0
        %1588 = vmatpush1.msra.mxu0 0.0
        %1589 = vmatprep.subr.mxu0 0.0
        %1590 = vmatpush1.msra.mxu0 0.0
        %1591 = vmatprep.subr.mxu0 0.0
        %1592 = vmatpush1.msra.mxu0 0.0
        %1593 = vmatprep.subr.mxu0 0.0
        %1594 = vmatpush1.msra.mxu0 0.0
        %1595 = vmatprep.subr.mxu0 0.0
        %1596 = vmatpush1.msra.mxu0 0.0
        %1597 = vmatprep.subr.mxu0 0.0
        %1598 = vmatpush1.msra.mxu0 0.0
        %1599 = vmatprep.mubr.f32.mxu0 0.0
        %1600 = vmatmul.mubr.f32.gmra.mrb[0].mxu0 %v1533
        %v1601 = vpop.f32.mrb[0].mxu0
        %v1602 = vadd.f32 %v1530, %v1601
        %v1603 = vpop.f32.mrb[0].mxu0
        %1604 = vdwg.mxu0
        %v1605 = vld [vmem:[%s12] sm:$0xff]
        %v1607 = vsel %vm1208, %v1602, 0
        %1609 = vmatprep.subr.mxu0 0.0
        %1610 = vmatpush1.msra.mxu0 %v1605
        %1611 = vmatprep.subr.mxu0 0.0
        %1612 = vmatpush1.msra.mxu0 0.0
        %1613 = vmatprep.subr.mxu0 0.0
        %1614 = vmatpush1.msra.mxu0 0.0
        %1615 = vmatprep.subr.mxu0 0.0
        %1616 = vmatpush1.msra.mxu0 0.0
        %1617 = vmatprep.subr.mxu0 0.0
        %1618 = vmatpush1.msra.mxu0 0.0
        %1619 = vmatprep.subr.mxu0 0.0
        %1620 = vmatpush1.msra.mxu0 0.0
        %1621 = vmatprep.subr.mxu0 0.0
        %1622 = vmatpush1.msra.mxu0 0.0
        %1623 = vmatprep.subr.mxu0 0.0
        %1624 = vmatpush1.msra.mxu0 0.0
        %1625 = vmatprep.subr.mxu0 0.0
        %1626 = vmatpush1.msra.mxu0 0.0
        %1627 = vmatprep.subr.mxu0 0.0
        %1628 = vmatpush1.msra.mxu0 0.0
        %1629 = vmatprep.subr.mxu0 0.0
        %1630 = vmatpush1.msra.mxu0 0.0
        %1631 = vmatprep.subr.mxu0 0.0
        %1632 = vmatpush1.msra.mxu0 0.0
        %1633 = vmatprep.subr.mxu0 0.0
        %1634 = vmatpush1.msra.mxu0 0.0
        %1635 = vmatprep.subr.mxu0 0.0
        %1636 = vmatpush1.msra.mxu0 0.0
        %1637 = vmatprep.subr.mxu0 0.0
        %1638 = vmatpush1.msra.mxu0 0.0
        %1639 = vmatprep.subr.mxu0 0.0
        %1640 = vmatpush1.msra.mxu0 0.0
        %1641 = vmatprep.subr.mxu0 0.0
        %1642 = vmatpush1.msra.mxu0 0.0
        %1643 = vmatprep.subr.mxu0 0.0
        %1644 = vmatpush1.msra.mxu0 0.0
        %1645 = vmatprep.subr.mxu0 0.0
        %1646 = vmatpush1.msra.mxu0 0.0
        %1647 = vmatprep.subr.mxu0 0.0
        %1648 = vmatpush1.msra.mxu0 0.0
        %1649 = vmatprep.subr.mxu0 0.0
        %1650 = vmatpush1.msra.mxu0 0.0
        %1651 = vmatprep.subr.mxu0 0.0
        %1652 = vmatpush1.msra.mxu0 0.0
        %1653 = vmatprep.subr.mxu0 0.0
        %1654 = vmatpush1.msra.mxu0 0.0
        %1655 = vmatprep.subr.mxu0 0.0
        %1656 = vmatpush1.msra.mxu0 0.0
        %1657 = vmatprep.subr.mxu0 0.0
        %1658 = vmatpush1.msra.mxu0 0.0
        %1659 = vmatprep.subr.mxu0 0.0
        %1660 = vmatpush1.msra.mxu0 0.0
        %1661 = vmatprep.subr.mxu0 0.0
        %1662 = vmatpush1.msra.mxu0 0.0
        %1663 = vmatprep.subr.mxu0 0.0
        %1664 = vmatpush1.msra.mxu0 0.0
        %1665 = vmatprep.subr.mxu0 0.0
        %1666 = vmatpush1.msra.mxu0 0.0
        %1667 = vmatprep.subr.mxu0 0.0
        %1668 = vmatpush1.msra.mxu0 0.0
        %1669 = vmatprep.subr.mxu0 0.0
        %1670 = vmatpush1.msra.mxu0 0.0
        %1671 = vmatprep.subr.mxu0 0.0
        %1672 = vmatpush1.msra.mxu0 0.0
        %1673 = vmatprep.mubr.f32.mxu0 0.0
        %1674 = vmatmul.mubr.f32.gmra.mrb[0].mxu0 %v1607
        %v1675 = vpop.f32.mrb[0].mxu0
        %v1676 = vadd.f32 0.0, %v1675
        %v1677 = vpop.f32.mrb[0].mxu0
        %1678 = vdwg.mxu0
        %s1679 = scalar_lea.vmem %s12, 8
        %v1680 = vld [vmem:[%s1679] sm:$0xff]
        %1681 = vmatprep.subr.mxu0 0.0
        %1682 = vmatpush1.msra.mxu0 %v1680
        %1683 = vmatprep.subr.mxu0 0.0
        %1684 = vmatpush1.msra.mxu0 0.0
        %1685 = vmatprep.subr.mxu0 0.0
        %1686 = vmatpush1.msra.mxu0 0.0
        %1687 = vmatprep.subr.mxu0 0.0
        %1688 = vmatpush1.msra.mxu0 0.0
        %1689 = vmatprep.subr.mxu0 0.0
        %1690 = vmatpush1.msra.mxu0 0.0
        %1691 = vmatprep.subr.mxu0 0.0
        %1692 = vmatpush1.msra.mxu0 0.0
        %1693 = vmatprep.subr.mxu0 0.0
        %1694 = vmatpush1.msra.mxu0 0.0
        %1695 = vmatprep.subr.mxu0 0.0
        %1696 = vmatpush1.msra.mxu0 0.0
        %1697 = vmatprep.subr.mxu0 0.0
        %1698 = vmatpush1.msra.mxu0 0.0
        %1699 = vmatprep.subr.mxu0 0.0
        %1700 = vmatpush1.msra.mxu0 0.0
        %1701 = vmatprep.subr.mxu0 0.0
        %1702 = vmatpush1.msra.mxu0 0.0
        %1703 = vmatprep.subr.mxu0 0.0
        %1704 = vmatpush1.msra.mxu0 0.0
        %1705 = vmatprep.subr.mxu0 0.0
        %1706 = vmatpush1.msra.mxu0 0.0
        %1707 = vmatprep.subr.mxu0 0.0
        %1708 = vmatpush1.msra.mxu0 0.0
        %1709 = vmatprep.subr.mxu0 0.0
        %1710 = vmatpush1.msra.mxu0 0.0
        %1711 = vmatprep.subr.mxu0 0.0
        %1712 = vmatpush1.msra.mxu0 0.0
        %1713 = vmatprep.subr.mxu0 0.0
        %1714 = vmatpush1.msra.mxu0 0.0
        %1715 = vmatprep.subr.mxu0 0.0
        %1716 = vmatpush1.msra.mxu0 0.0
        %1717 = vmatprep.subr.mxu0 0.0
        %1718 = vmatpush1.msra.mxu0 0.0
        %1719 = vmatprep.subr.mxu0 0.0
        %1720 = vmatpush1.msra.mxu0 0.0
        %1721 = vmatprep.subr.mxu0 0.0
        %1722 = vmatpush1.msra.mxu0 0.0
        %1723 = vmatprep.subr.mxu0 0.0
        %1724 = vmatpush1.msra.mxu0 0.0
        %1725 = vmatprep.subr.mxu0 0.0
        %1726 = vmatpush1.msra.mxu0 0.0
        %1727 = vmatprep.subr.mxu0 0.0
        %1728 = vmatpush1.msra.mxu0 0.0
        %1729 = vmatprep.subr.mxu0 0.0
        %1730 = vmatpush1.msra.mxu0 0.0
        %1731 = vmatprep.subr.mxu0 0.0
        %1732 = vmatpush1.msra.mxu0 0.0
        %1733 = vmatprep.subr.mxu0 0.0
        %1734 = vmatpush1.msra.mxu0 0.0
        %1735 = vmatprep.subr.mxu0 0.0
        %1736 = vmatpush1.msra.mxu0 0.0
        %1737 = vmatprep.subr.mxu0 0.0
        %1738 = vmatpush1.msra.mxu0 0.0
        %1739 = vmatprep.subr.mxu0 0.0
        %1740 = vmatpush1.msra.mxu0 0.0
        %1741 = vmatprep.subr.mxu0 0.0
        %1742 = vmatpush1.msra.mxu0 0.0
        %1743 = vmatprep.subr.mxu0 0.0
        %1744 = vmatpush1.msra.mxu0 0.0
        %1745 = vmatprep.mubr.f32.mxu0 0.0
        %1746 = vmatmul.mubr.f32.gmra.mrb[0].mxu0 %v1607
        %v1747 = vpop.f32.mrb[0].mxu0
        %v1748 = vadd.f32 0.0, %v1747
        %v1749 = vpop.f32.mrb[0].mxu0
        %1750 = vdwg.mxu0
        %v1751 = vld [vmem:[%s13] sm:$0xff]
        %v1752 = vld [vmem:[%s13 + $0x8] sm:$0xff]
        %s1753 = scalar_lea.vmem %s13, 16
        %v1754 = vld [vmem:[%s1753] sm:$0xff]
        %v1755 = vld [vmem:[%s1753 + $0x8] sm:$0xff]
        %v1757 = vsel %vm1208, %v1754, 0
        %v1760 = vsel %vm1208, %v1755, 0
        %1762 = vmatprep.subr.mxu0 0.0
        %1763 = vmatpush1.msra.mxu0 %v1602
        %1764 = vmatprep.subr.mxu0 0.0
        %1765 = vmatpush1.msra.mxu0 0.0
        %1766 = vmatprep.subr.mxu0 0.0
        %1767 = vmatpush1.msra.mxu0 0.0
        %1768 = vmatprep.subr.mxu0 0.0
        %1769 = vmatpush1.msra.mxu0 0.0
        %1770 = vmatprep.subr.mxu0 0.0
        %1771 = vmatpush1.msra.mxu0 0.0
        %1772 = vmatprep.subr.mxu0 0.0
        %1773 = vmatpush1.msra.mxu0 0.0
        %1774 = vmatprep.subr.mxu0 0.0
        %1775 = vmatpush1.msra.mxu0 0.0
        %1776 = vmatprep.subr.mxu0 0.0
        %1777 = vmatpush1.msra.mxu0 0.0
        %1778 = vmatprep.subr.mxu0 0.0
        %1779 = vmatpush1.msra.mxu0 0.0
        %1780 = vmatprep.subr.mxu0 0.0
        %1781 = vmatpush1.msra.mxu0 0.0
        %1782 = vmatprep.subr.mxu0 0.0
        %1783 = vmatpush1.msra.mxu0 0.0
        %1784 = vmatprep.subr.mxu0 0.0
        %1785 = vmatpush1.msra.mxu0 0.0
        %1786 = vmatprep.subr.mxu0 0.0
        %1787 = vmatpush1.msra.mxu0 0.0
        %1788 = vmatprep.subr.mxu0 0.0
        %1789 = vmatpush1.msra.mxu0 0.0
        %1790 = vmatprep.subr.mxu0 0.0
        %1791 = vmatpush1.msra.mxu0 0.0
        %1792 = vmatprep.subr.mxu0 0.0
        %1793 = vmatpush1.msra.mxu0 0.0
        %1794 = vmatprep.subr.mxu0 0.0
        %1795 = vmatpush1.msra.mxu0 0.0
        %1796 = vmatprep.subr.mxu0 0.0
        %1797 = vmatpush1.msra.mxu0 0.0
        %1798 = vmatprep.subr.mxu0 0.0
        %1799 = vmatpush1.msra.mxu0 0.0
        %1800 = vmatprep.subr.mxu0 0.0
        %1801 = vmatpush1.msra.mxu0 0.0
        %1802 = vmatprep.subr.mxu0 0.0
        %1803 = vmatpush1.msra.mxu0 0.0
        %1804 = vmatprep.subr.mxu0 0.0
        %1805 = vmatpush1.msra.mxu0 0.0
        %1806 = vmatprep.subr.mxu0 0.0
        %1807 = vmatpush1.msra.mxu0 0.0
        %1808 = vmatprep.subr.mxu0 0.0
        %1809 = vmatpush1.msra.mxu0 0.0
        %1810 = vmatprep.subr.mxu0 0.0
        %1811 = vmatpush1.msra.mxu0 0.0
        %1812 = vmatprep.subr.mxu0 0.0
        %1813 = vmatpush1.msra.mxu0 0.0
        %1814 = vmatprep.subr.mxu0 0.0
        %1815 = vmatpush1.msra.mxu0 0.0
        %1816 = vmatprep.subr.mxu0 0.0
        %1817 = vmatpush1.msra.mxu0 0.0
        %1818 = vmatprep.subr.mxu0 0.0
        %1819 = vmatpush1.msra.mxu0 0.0
        %1820 = vmatprep.subr.mxu0 0.0
        %1821 = vmatpush1.msra.mxu0 0.0
        %1822 = vmatprep.subr.mxu0 0.0
        %1823 = vmatpush1.msra.mxu0 0.0
        %1824 = vmatprep.subr.mxu0 0.0
        %1825 = vmatpush1.msra.mxu0 0.0
        %1826 = vmatprep.mubr.f32.mxu0 0.0
        %1827 = vmatmul.mubr.f32.gmra.mrb[0].mxu0 %v1757
        %v1828 = vpop.f32.mrb[0].mxu0
        %v1829 = vadd.f32 0.0, %v1828
        %v1830 = vpop.f32.mrb[0].mxu0
        %1831 = vmatprep.mubr.f32.mxu0 0.0
        %1832 = vmatmul.mubr.f32.gmra.mrb[0].mxu0 %v1760
        %v1833 = vpop.f32.mrb[0].mxu0
        %v1834 = vadd.f32 0.0, %v1833
        %v1835 = vpop.f32.mrb[0].mxu0
        %1836 = vdwg.mxu0
        %v1838 = vsel %vm1208, %v1751, 0
        %v1841 = vsel %vm1208, %v1752, 0
        %1843 = vmatprep.subr.mxu0 0.0
        %1844 = vmatpush1.msra.mxu0 %v1676
        %1845 = vmatprep.subr.mxu0 0.0
        %1846 = vmatpush1.msra.mxu0 0.0
        %1847 = vmatprep.subr.mxu0 0.0
        %1848 = vmatpush1.msra.mxu0 0.0
        %1849 = vmatprep.subr.mxu0 0.0
        %1850 = vmatpush1.msra.mxu0 0.0
        %1851 = vmatprep.subr.mxu0 0.0
        %1852 = vmatpush1.msra.mxu0 0.0
        %1853 = vmatprep.subr.mxu0 0.0
        %1854 = vmatpush1.msra.mxu0 0.0
        %1855 = vmatprep.subr.mxu0 0.0
        %1856 = vmatpush1.msra.mxu0 0.0
        %1857 = vmatprep.subr.mxu0 0.0
        %1858 = vmatpush1.msra.mxu0 0.0
        %1859 = vmatprep.subr.mxu0 0.0
        %1860 = vmatpush1.msra.mxu0 0.0
        %1861 = vmatprep.subr.mxu0 0.0
        %1862 = vmatpush1.msra.mxu0 0.0
        %1863 = vmatprep.subr.mxu0 0.0
        %1864 = vmatpush1.msra.mxu0 0.0
        %1865 = vmatprep.subr.mxu0 0.0
        %1866 = vmatpush1.msra.mxu0 0.0
        %1867 = vmatprep.subr.mxu0 0.0
        %1868 = vmatpush1.msra.mxu0 0.0
        %1869 = vmatprep.subr.mxu0 0.0
        %1870 = vmatpush1.msra.mxu0 0.0
        %1871 = vmatprep.subr.mxu0 0.0
        %1872 = vmatpush1.msra.mxu0 0.0
        %1873 = vmatprep.subr.mxu0 0.0
        %1874 = vmatpush1.msra.mxu0 0.0
        %1875 = vmatprep.subr.mxu0 0.0
        %1876 = vmatpush1.msra.mxu0 0.0
        %1877 = vmatprep.subr.mxu0 0.0
        %1878 = vmatpush1.msra.mxu0 0.0
        %1879 = vmatprep.subr.mxu0 0.0
        %1880 = vmatpush1.msra.mxu0 0.0
        %1881 = vmatprep.subr.mxu0 0.0
        %1882 = vmatpush1.msra.mxu0 0.0
        %1883 = vmatprep.subr.mxu0 0.0
        %1884 = vmatpush1.msra.mxu0 0.0
        %1885 = vmatprep.subr.mxu0 0.0
        %1886 = vmatpush1.msra.mxu0 0.0
        %1887 = vmatprep.subr.mxu0 0.0
        %1888 = vmatpush1.msra.mxu0 0.0
        %1889 = vmatprep.subr.mxu0 0.0
        %1890 = vmatpush1.msra.mxu0 0.0
        %1891 = vmatprep.subr.mxu0 0.0
        %1892 = vmatpush1.msra.mxu0 0.0
        %1893 = vmatprep.subr.mxu0 0.0
        %1894 = vmatpush1.msra.mxu0 0.0
        %1895 = vmatprep.subr.mxu0 0.0
        %1896 = vmatpush1.msra.mxu0 0.0
        %1897 = vmatprep.subr.mxu0 0.0
        %1898 = vmatpush1.msra.mxu0 0.0
        %1899 = vmatprep.subr.mxu0 0.0
        %1900 = vmatpush1.msra.mxu0 0.0
        %1901 = vmatprep.subr.mxu0 0.0
        %1902 = vmatpush1.msra.mxu0 0.0
        %1903 = vmatprep.subr.mxu0 0.0
        %1904 = vmatpush1.msra.mxu0 0.0
        %1905 = vmatprep.subr.mxu0 0.0
        %1906 = vmatpush1.msra.mxu0 0.0
        %1907 = vmatprep.mubr.f32.mxu0 0.0
        %1908 = vmatmul.mubr.f32.gmra.mrb[0].mxu0 %v1838
        %v1909 = vpop.f32.mrb[0].mxu0
        %v1910 = vadd.f32 %v1829, %v1909
        %v1911 = vpop.f32.mrb[0].mxu0
        %1912 = vmatprep.mubr.f32.mxu0 0.0
        %1913 = vmatmul.mubr.f32.gmra.mrb[0].mxu0 %v1841
        %v1914 = vpop.f32.mrb[0].mxu0
        %v1915 = vadd.f32 %v1834, %v1914
        %v1916 = vpop.f32.mrb[0].mxu0
        %1917 = vdwg.mxu0
        %s1918 = scalar_lea.vmem %s13, 32
        %v1919 = vld [vmem:[%s1918] sm:$0xff]
        %v1920 = vld [vmem:[%s1918 + $0x8] sm:$0xff]
        %v1922 = vsel %vm1208, %v1919, 0
        %v1925 = vsel %vm1208, %v1920, 0
        %1927 = vmatprep.subr.mxu0 0.0
        %1928 = vmatpush1.msra.mxu0 %v1748
        %1929 = vmatprep.subr.mxu0 0.0
        %1930 = vmatpush1.msra.mxu0 0.0
        %1931 = vmatprep.subr.mxu0 0.0
        %1932 = vmatpush1.msra.mxu0 0.0
        %1933 = vmatprep.subr.mxu0 0.0
        %1934 = vmatpush1.msra.mxu0 0.0
        %1935 = vmatprep.subr.mxu0 0.0
        %1936 = vmatpush1.msra.mxu0 0.0
        %1937 = vmatprep.subr.mxu0 0.0
        %1938 = vmatpush1.msra.mxu0 0.0
        %1939 = vmatprep.subr.mxu0 0.0
        %1940 = vmatpush1.msra.mxu0 0.0
        %1941 = vmatprep.subr.mxu0 0.0
        %1942 = vmatpush1.msra.mxu0 0.0
        %1943 = vmatprep.subr.mxu0 0.0
        %1944 = vmatpush1.msra.mxu0 0.0
        %1945 = vmatprep.subr.mxu0 0.0
        %1946 = vmatpush1.msra.mxu0 0.0
        %1947 = vmatprep.subr.mxu0 0.0
        %1948 = vmatpush1.msra.mxu0 0.0
        %1949 = vmatprep.subr.mxu0 0.0
        %1950 = vmatpush1.msra.mxu0 0.0
        %1951 = vmatprep.subr.mxu0 0.0
        %1952 = vmatpush1.msra.mxu0 0.0
        %1953 = vmatprep.subr.mxu0 0.0
        %1954 = vmatpush1.msra.mxu0 0.0
        %1955 = vmatprep.subr.mxu0 0.0
        %1956 = vmatpush1.msra.mxu0 0.0
        %1957 = vmatprep.subr.mxu0 0.0
        %1958 = vmatpush1.msra.mxu0 0.0
        %1959 = vmatprep.subr.mxu0 0.0
        %1960 = vmatpush1.msra.mxu0 0.0
        %1961 = vmatprep.subr.mxu0 0.0
        %1962 = vmatpush1.msra.mxu0 0.0
        %1963 = vmatprep.subr.mxu0 0.0
        %1964 = vmatpush1.msra.mxu0 0.0
        %1965 = vmatprep.subr.mxu0 0.0
        %1966 = vmatpush1.msra.mxu0 0.0
        %1967 = vmatprep.subr.mxu0 0.0
        %1968 = vmatpush1.msra.mxu0 0.0
        %1969 = vmatprep.subr.mxu0 0.0
        %1970 = vmatpush1.msra.mxu0 0.0
        %1971 = vmatprep.subr.mxu0 0.0
        %1972 = vmatpush1.msra.mxu0 0.0
        %1973 = vmatprep.subr.mxu0 0.0
        %1974 = vmatpush1.msra.mxu0 0.0
        %1975 = vmatprep.subr.mxu0 0.0
        %1976 = vmatpush1.msra.mxu0 0.0
        %1977 = vmatprep.subr.mxu0 0.0
        %1978 = vmatpush1.msra.mxu0 0.0
        %1979 = vmatprep.subr.mxu0 0.0
        %1980 = vmatpush1.msra.mxu0 0.0
        %1981 = vmatprep.subr.mxu0 0.0
        %1982 = vmatpush1.msra.mxu0 0.0
        %1983 = vmatprep.subr.mxu0 0.0
        %1984 = vmatpush1.msra.mxu0 0.0
        %1985 = vmatprep.subr.mxu0 0.0
        %1986 = vmatpush1.msra.mxu0 0.0
        %1987 = vmatprep.subr.mxu0 0.0
        %1988 = vmatpush1.msra.mxu0 0.0
        %1989 = vmatprep.subr.mxu0 0.0
        %1990 = vmatpush1.msra.mxu0 0.0
        %1991 = vmatprep.mubr.f32.mxu0 0.0
        %1992 = vmatmul.mubr.f32.gmra.mrb[0].mxu0 %v1922
        %v1993 = vpop.f32.mrb[0].mxu0
        %v1994 = vadd.f32 0.0, %v1993
        %v1995 = vpop.f32.mrb[0].mxu0
        %1996 = vmatprep.mubr.f32.mxu0 0.0
        %1997 = vmatmul.mubr.f32.gmra.mrb[0].mxu0 %v1925
        %v1998 = vpop.f32.mrb[0].mxu0
        %v1999 = vadd.f32 0.0, %v1998
        %v2000 = vpop.f32.mrb[0].mxu0
        %2001 = vdwg.mxu0
        %v2002 = vadd.f32 %v1910, %v1994
        %v2003 = vadd.f32 %v1915, %v1999
        %v2004 = vld [vmem:[%s14] sm:$0xff]
        %v2005 = vld [vmem:[%s14 + $0x8] sm:$0xff]
        %2007 = vset.pattern.permute.xlu0 0
        %2008 = vperm.xlu0 %2007, %v2004
        %v2009 = vpop.permute.xlu0 %2008
        %2012 = vset.pattern.permute.xlu0 0
        %2013 = vperm.xlu0 %2012, %v2005
        %v2014 = vpop.permute.xlu0 %2013
        %v2016 = vadd.f32 %v2002, %v2009
        %v2017 = vadd.f32 %v2003, %v2014
        %v2018 = vxor.u32 %v2016, 2147483648
        %v2019 = vxor.u32 %v2017, 2147483648
        %v2020 = vmul.f32 %v2018, 1.442695
        %v2021 = vpow.pop %v2020
        %v2022 = vmul.f32 %v2019, 1.442695
        %v2023 = vpow.pop %v2022
        %v2024 = vadd.f32 %v2021, 1.0
        %v2025 = vadd.f32 %v2023, 1.0
        %v2026 = vrcp.pop %v2024
        %v2027 = vmul.f32 1.0, %v2026
        %v2028 = vrcp.pop %v2025
        %v2029 = vmul.f32 1.0, %v2028
        %v2030 = vmul.f32 %v2016, %v2027
        %v2031 = vmul.f32 %v2017, %v2029
        %v2033 = vsel %vm1208, %v2030, 0
        %v2036 = vsel %vm1208, %v2031, 0
        %2038 = vmatprep.subr.mxu0 0.0
        %2039 = vmatpush1.msra.mxu0 %v1207
        %2040 = vmatprep.subr.mxu0 0.0
        %2041 = vmatpush1.msra.mxu0 0.0
        %2042 = vmatprep.subr.mxu0 0.0
        %2043 = vmatpush1.msra.mxu0 0.0
        %2044 = vmatprep.subr.mxu0 0.0
        %2045 = vmatpush1.msra.mxu0 0.0
        %2046 = vmatprep.subr.mxu0 0.0
        %2047 = vmatpush1.msra.mxu0 0.0
        %2048 = vmatprep.subr.mxu0 0.0
        %2049 = vmatpush1.msra.mxu0 0.0
        %2050 = vmatprep.subr.mxu0 0.0
        %2051 = vmatpush1.msra.mxu0 0.0
        %2052 = vmatprep.subr.mxu0 0.0
        %2053 = vmatpush1.msra.mxu0 0.0
        %2054 = vmatprep.subr.mxu0 0.0
        %2055 = vmatpush1.msra.mxu0 0.0
        %2056 = vmatprep.subr.mxu0 0.0
        %2057 = vmatpush1.msra.mxu0 0.0
        %2058 = vmatprep.subr.mxu0 0.0
        %2059 = vmatpush1.msra.mxu0 0.0
        %2060 = vmatprep.subr.mxu0 0.0
        %2061 = vmatpush1.msra.mxu0 0.0
        %2062 = vmatprep.subr.mxu0 0.0
        %2063 = vmatpush1.msra.mxu0 0.0
        %2064 = vmatprep.subr.mxu0 0.0
        %2065 = vmatpush1.msra.mxu0 0.0
        %2066 = vmatprep.subr.mxu0 0.0
        %2067 = vmatpush1.msra.mxu0 0.0
        %2068 = vmatprep.subr.mxu0 0.0
        %2069 = vmatpush1.msra.mxu0 0.0
        %2070 = vmatprep.subr.mxu0 0.0
        %2071 = vmatpush1.msra.mxu0 0.0
        %2072 = vmatprep.subr.mxu0 0.0
        %2073 = vmatpush1.msra.mxu0 0.0
        %2074 = vmatprep.subr.mxu0 0.0
        %2075 = vmatpush1.msra.mxu0 0.0
        %2076 = vmatprep.subr.mxu0 0.0
        %2077 = vmatpush1.msra.mxu0 0.0
        %2078 = vmatprep.subr.mxu0 0.0
        %2079 = vmatpush1.msra.mxu0 0.0
        %2080 = vmatprep.subr.mxu0 0.0
        %2081 = vmatpush1.msra.mxu0 0.0
        %2082 = vmatprep.subr.mxu0 0.0
        %2083 = vmatpush1.msra.mxu0 0.0
        %2084 = vmatprep.subr.mxu0 0.0
        %2085 = vmatpush1.msra.mxu0 0.0
        %2086 = vmatprep.subr.mxu0 0.0
        %2087 = vmatpush1.msra.mxu0 0.0
        %2088 = vmatprep.subr.mxu0 0.0
        %2089 = vmatpush1.msra.mxu0 0.0
        %2090 = vmatprep.subr.mxu0 0.0
        %2091 = vmatpush1.msra.mxu0 0.0
        %2092 = vmatprep.subr.mxu0 0.0
        %2093 = vmatpush1.msra.mxu0 0.0
        %2094 = vmatprep.subr.mxu0 0.0
        %2095 = vmatpush1.msra.mxu0 0.0
        %2096 = vmatprep.subr.mxu0 0.0
        %2097 = vmatpush1.msra.mxu0 0.0
        %2098 = vmatprep.subr.mxu0 0.0
        %2099 = vmatpush1.msra.mxu0 0.0
        %2100 = vmatprep.subr.mxu0 0.0
        %2101 = vmatpush1.msra.mxu0 0.0
        %2102 = vmatprep.mubr.f32.mxu0 0.0
        %2103 = vmatmul.mubr.f32.gmra.mrb[0].mxu0 %v2033
        %v2104 = vpop.f32.mrb[0].mxu0
        %v2105 = vadd.f32 0.0, %v2104
        %v2106 = vpop.f32.mrb[0].mxu0
        %2107 = vmatprep.mubr.f32.mxu0 0.0
        %2108 = vmatmul.mubr.f32.gmra.mrb[0].mxu0 %v2036
        %v2109 = vpop.f32.mrb[0].mxu0
        %v2110 = vadd.f32 0.0, %v2109
        %v2111 = vpop.f32.mrb[0].mxu0
        %2112 = vdwg.mxu0
        %v2113 = vld [vmem:[%s15] sm:$0xff]
        %v2114 = vld [vmem:[%s16] sm:$0xff]
        %v2116 = vsel %vm737, %v2113, 0
        %2118 = vmatprep.subr.mxu0 0.0
        %2119 = vmatpush1.msra.mxu0 %v2105
        %2120 = vmatprep.subr.mxu0 0.0
        %2121 = vmatpush1.msra.mxu0 %v2110
        %2122 = vmatprep.subr.mxu0 0.0
        %2123 = vmatpush1.msra.mxu0 0.0
        %2124 = vmatprep.subr.mxu0 0.0
        %2125 = vmatpush1.msra.mxu0 0.0
        %2126 = vmatprep.subr.mxu0 0.0
        %2127 = vmatpush1.msra.mxu0 0.0
        %2128 = vmatprep.subr.mxu0 0.0
        %2129 = vmatpush1.msra.mxu0 0.0
        %2130 = vmatprep.subr.mxu0 0.0
        %2131 = vmatpush1.msra.mxu0 0.0
        %2132 = vmatprep.subr.mxu0 0.0
        %2133 = vmatpush1.msra.mxu0 0.0
        %2134 = vmatprep.subr.mxu0 0.0
        %2135 = vmatpush1.msra.mxu0 0.0
        %2136 = vmatprep.subr.mxu0 0.0
        %2137 = vmatpush1.msra.mxu0 0.0
        %2138 = vmatprep.subr.mxu0 0.0
        %2139 = vmatpush1.msra.mxu0 0.0
        %2140 = vmatprep.subr.mxu0 0.0
        %2141 = vmatpush1.msra.mxu0 0.0
        %2142 = vmatprep.subr.mxu0 0.0
        %2143 = vmatpush1.msra.mxu0 0.0
        %2144 = vmatprep.subr.mxu0 0.0
        %2145 = vmatpush1.msra.mxu0 0.0
        %2146 = vmatprep.subr.mxu0 0.0
        %2147 = vmatpush1.msra.mxu0 0.0
        %2148 = vmatprep.subr.mxu0 0.0
        %2149 = vmatpush1.msra.mxu0 0.0
        %2150 = vmatprep.subr.mxu0 0.0
        %2151 = vmatpush1.msra.mxu0 0.0
        %2152 = vmatprep.subr.mxu0 0.0
        %2153 = vmatpush1.msra.mxu0 0.0
        %2154 = vmatprep.subr.mxu0 0.0
        %2155 = vmatpush1.msra.mxu0 0.0
        %2156 = vmatprep.subr.mxu0 0.0
        %2157 = vmatpush1.msra.mxu0 0.0
        %2158 = vmatprep.subr.mxu0 0.0
        %2159 = vmatpush1.msra.mxu0 0.0
        %2160 = vmatprep.subr.mxu0 0.0
        %2161 = vmatpush1.msra.mxu0 0.0
        %2162 = vmatprep.subr.mxu0 0.0
        %2163 = vmatpush1.msra.mxu0 0.0
        %2164 = vmatprep.subr.mxu0 0.0
        %2165 = vmatpush1.msra.mxu0 0.0
        %2166 = vmatprep.subr.mxu0 0.0
        %2167 = vmatpush1.msra.mxu0 0.0
        %2168 = vmatprep.subr.mxu0 0.0
        %2169 = vmatpush1.msra.mxu0 0.0
        %2170 = vmatprep.subr.mxu0 0.0
        %2171 = vmatpush1.msra.mxu0 0.0
        %2172 = vmatprep.subr.mxu0 0.0
        %2173 = vmatpush1.msra.mxu0 0.0
        %2174 = vmatprep.subr.mxu0 0.0
        %2175 = vmatpush1.msra.mxu0 0.0
        %2176 = vmatprep.subr.mxu0 0.0
        %2177 = vmatpush1.msra.mxu0 0.0
        %2178 = vmatprep.subr.mxu0 0.0
        %2179 = vmatpush1.msra.mxu0 0.0
        %2180 = vmatprep.subr.mxu0 0.0
        %2181 = vmatpush1.msra.mxu0 0.0
        %2182 = vmatprep.mubr.f32.mxu0 0.0
        %2183 = vmatmul.mubr.f32.gmra.mrb[0].mxu0 %v2116
        %v2184 = vpop.f32.mrb[0].mxu0
        %v2185 = vadd.f32 %v2114, %v2184
        %v2186 = vpop.f32.mrb[0].mxu0
        %2187 = vdwg.mxu0
        %v2188 = vxor.u32 %v2185, 2147483648
        %v2189 = vmul.f32 %v2188, 1.442695
        %v2190 = vpow.pop %v2189
        %v2191 = vadd.f32 %v2190, 1.0
        %v2192 = vrcp.pop %v2191
        %v2193 = vmul.f32 1.0, %v2192
        %v2194 = vmul.f32 %v2185, %v2193
        %v2195 = vld [vmem:[%s17] sm:$0xff]
        %v2196 = vld [vmem:[%s17 + $0x8] sm:$0xff]
        %v2197 = vld [vmem:[%s18] sm:$0xff]
        %v2198 = vld [vmem:[%s18 + $0x8] sm:$0xff]
        %v2200 = vsel %vm1208, %v2195, 0
        %v2203 = vsel %vm1208, %v2196, 0
        %2205 = vmatprep.subr.mxu0 0.0
        %2206 = vmatpush1.msra.mxu0 %v2194
        %2207 = vmatprep.subr.mxu0 0.0
        %2208 = vmatpush1.msra.mxu0 0.0
        %2209 = vmatprep.subr.mxu0 0.0
        %2210 = vmatpush1.msra.mxu0 0.0
        %2211 = vmatprep.subr.mxu0 0.0
        %2212 = vmatpush1.msra.mxu0 0.0
        %2213 = vmatprep.subr.mxu0 0.0
        %2214 = vmatpush1.msra.mxu0 0.0
        %2215 = vmatprep.subr.mxu0 0.0
        %2216 = vmatpush1.msra.mxu0 0.0
        %2217 = vmatprep.subr.mxu0 0.0
        %2218 = vmatpush1.msra.mxu0 0.0
        %2219 = vmatprep.subr.mxu0 0.0
        %2220 = vmatpush1.msra.mxu0 0.0
        %2221 = vmatprep.subr.mxu0 0.0
        %2222 = vmatpush1.msra.mxu0 0.0
        %2223 = vmatprep.subr.mxu0 0.0
        %2224 = vmatpush1.msra.mxu0 0.0
        %2225 = vmatprep.subr.mxu0 0.0
        %2226 = vmatpush1.msra.mxu0 0.0
        %2227 = vmatprep.subr.mxu0 0.0
        %2228 = vmatpush1.msra.mxu0 0.0
        %2229 = vmatprep.subr.mxu0 0.0
        %2230 = vmatpush1.msra.mxu0 0.0
        %2231 = vmatprep.subr.mxu0 0.0
        %2232 = vmatpush1.msra.mxu0 0.0
        %2233 = vmatprep.subr.mxu0 0.0
        %2234 = vmatpush1.msra.mxu0 0.0
        %2235 = vmatprep.subr.mxu0 0.0
        %2236 = vmatpush1.msra.mxu0 0.0
        %2237 = vmatprep.subr.mxu0 0.0
        %2238 = vmatpush1.msra.mxu0 0.0
        %2239 = vmatprep.subr.mxu0 0.0
        %2240 = vmatpush1.msra.mxu0 0.0
        %2241 = vmatprep.subr.mxu0 0.0
        %2242 = vmatpush1.msra.mxu0 0.0
        %2243 = vmatprep.subr.mxu0 0.0
        %2244 = vmatpush1.msra.mxu0 0.0
        %2245 = vmatprep.subr.mxu0 0.0
        %2246 = vmatpush1.msra.mxu0 0.0
        %2247 = vmatprep.subr.mxu0 0.0
        %2248 = vmatpush1.msra.mxu0 0.0
        %2249 = vmatprep.subr.mxu0 0.0
        %2250 = vmatpush1.msra.mxu0 0.0
        %2251 = vmatprep.subr.mxu0 0.0
        %2252 = vmatpush1.msra.mxu0 0.0
        %2253 = vmatprep.subr.mxu0 0.0
        %2254 = vmatpush1.msra.mxu0 0.0
        %2255 = vmatprep.subr.mxu0 0.0
        %2256 = vmatpush1.msra.mxu0 0.0
        %2257 = vmatprep.subr.mxu0 0.0
        %2258 = vmatpush1.msra.mxu0 0.0
        %2259 = vmatprep.subr.mxu0 0.0
        %2260 = vmatpush1.msra.mxu0 0.0
        %2261 = vmatprep.subr.mxu0 0.0
        %2262 = vmatpush1.msra.mxu0 0.0
        %2263 = vmatprep.subr.mxu0 0.0
        %2264 = vmatpush1.msra.mxu0 0.0
        %2265 = vmatprep.subr.mxu0 0.0
        %2266 = vmatpush1.msra.mxu0 0.0
        %2267 = vmatprep.subr.mxu0 0.0
        %2268 = vmatpush1.msra.mxu0 0.0
        %2269 = vmatprep.mubr.f32.mxu0 0.0
        %2270 = vmatmul.mubr.f32.gmra.mrb[0].mxu0 %v2200
        %v2271 = vpop.f32.mrb[0].mxu0
        %v2272 = vadd.f32 %v2197, %v2271
        %v2273 = vpop.f32.mrb[0].mxu0
        %2274 = vmatprep.mubr.f32.mxu0 0.0
        %2275 = vmatmul.mubr.f32.gmra.mrb[0].mxu0 %v2203
        %v2276 = vpop.f32.mrb[0].mxu0
        %v2277 = vadd.f32 %v2198, %v2276
        %v2278 = vpop.f32.mrb[0].mxu0
        %2279 = vdwg.mxu0
        %v2280 = vxor.u32 %v2272, 2147483648
        %v2281 = vxor.u32 %v2277, 2147483648
        %v2282 = vmul.f32 %v2280, 1.442695
        %v2283 = vpow.pop %v2282
        %v2284 = vmul.f32 %v2281, 1.442695
        %v2285 = vpow.pop %v2284
        %v2286 = vadd.f32 %v2283, 1.0
        %v2287 = vadd.f32 %v2285, 1.0
        %v2288 = vrcp.pop %v2286
        %v2289 = vmul.f32 1.0, %v2288
        %v2290 = vrcp.pop %v2287
        %v2291 = vmul.f32 1.0, %v2290
        %v2293 = vsel %vm1446, %v2289, 0
        %v2296 = vsel %vm1446, %v2291, 0
        %2298 = vmatprep.subr.mxu0 0.0
        %2299 = vmatpush1.msra.mxu0 %v1452
        %2300 = vmatprep.subr.mxu0 0.0
        %2301 = vmatpush1.msra.mxu0 0.0
        %2302 = vmatprep.subr.mxu0 0.0
        %2303 = vmatpush1.msra.mxu0 0.0
        %2304 = vmatprep.subr.mxu0 0.0
        %2305 = vmatpush1.msra.mxu0 0.0
        %2306 = vmatprep.subr.mxu0 0.0
        %2307 = vmatpush1.msra.mxu0 0.0
        %2308 = vmatprep.subr.mxu0 0.0
        %2309 = vmatpush1.msra.mxu0 0.0
        %2310 = vmatprep.subr.mxu0 0.0
        %2311 = vmatpush1.msra.mxu0 0.0
        %2312 = vmatprep.subr.mxu0 0.0
        %2313 = vmatpush1.msra.mxu0 0.0
        %2314 = vmatprep.subr.mxu0 0.0
        %2315 = vmatpush1.msra.mxu0 0.0
        %2316 = vmatprep.subr.mxu0 0.0
        %2317 = vmatpush1.msra.mxu0 0.0
        %2318 = vmatprep.subr.mxu0 0.0
        %2319 = vmatpush1.msra.mxu0 0.0
        %2320 = vmatprep.subr.mxu0 0.0
        %2321 = vmatpush1.msra.mxu0 0.0
        %2322 = vmatprep.subr.mxu0 0.0
        %2323 = vmatpush1.msra.mxu0 0.0
        %2324 = vmatprep.subr.mxu0 0.0
        %2325 = vmatpush1.msra.mxu0 0.0
        %2326 = vmatprep.subr.mxu0 0.0
        %2327 = vmatpush1.msra.mxu0 0.0
        %2328 = vmatprep.subr.mxu0 0.0
        %2329 = vmatpush1.msra.mxu0 0.0
        %2330 = vmatprep.subr.mxu0 0.0
        %2331 = vmatpush1.msra.mxu0 0.0
        %2332 = vmatprep.subr.mxu0 0.0
        %2333 = vmatpush1.msra.mxu0 0.0
        %2334 = vmatprep.subr.mxu0 0.0
        %2335 = vmatpush1.msra.mxu0 0.0
        %2336 = vmatprep.subr.mxu0 0.0
        %2337 = vmatpush1.msra.mxu0 0.0
        %2338 = vmatprep.subr.mxu0 0.0
        %2339 = vmatpush1.msra.mxu0 0.0
        %2340 = vmatprep.subr.mxu0 0.0
        %2341 = vmatpush1.msra.mxu0 0.0
        %2342 = vmatprep.subr.mxu0 0.0
        %2343 = vmatpush1.msra.mxu0 0.0
        %2344 = vmatprep.subr.mxu0 0.0
        %2345 = vmatpush1.msra.mxu0 0.0
        %2346 = vmatprep.subr.mxu0 0.0
        %2347 = vmatpush1.msra.mxu0 0.0
        %2348 = vmatprep.subr.mxu0 0.0
        %2349 = vmatpush1.msra.mxu0 0.0
        %2350 = vmatprep.subr.mxu0 0.0
        %2351 = vmatpush1.msra.mxu0 0.0
        %2352 = vmatprep.subr.mxu0 0.0
        %2353 = vmatpush1.msra.mxu0 0.0
        %2354 = vmatprep.subr.mxu0 0.0
        %2355 = vmatpush1.msra.mxu0 0.0
        %2356 = vmatprep.subr.mxu0 0.0
        %2357 = vmatpush1.msra.mxu0 0.0
        %2358 = vmatprep.subr.mxu0 0.0
        %2359 = vmatpush1.msra.mxu0 0.0
        %2360 = vmatprep.subr.mxu0 0.0
        %2361 = vmatpush1.msra.mxu0 0.0
        %2362 = vmatprep.mubr.f32.mxu0 0.0
        %2363 = vmatmul.mubr.f32.gmra.mrb[0].mxu0 %v2293
        %v2364 = vpop.f32.mrb[0].mxu0
        %v2365 = vadd.f32 0.0, %v2364
        %v2366 = vpop.f32.mrb[0].mxu0
        %2367 = vmatprep.mubr.f32.mxu0 0.0
        %2368 = vmatmul.mubr.f32.gmra.mrb[0].mxu0 %v2296
        %v2369 = vpop.f32.mrb[0].mxu0
        %v2370 = vadd.f32 0.0, %v2369
        %v2371 = vpop.f32.mrb[0].mxu0
        %2372 = vdwg.mxu0
        %v2373 = vmul.f32 %v2030, %v2365
        %v2374 = vmul.f32 %v2031, %v2370
        %v2375 = vld [vmem:[%s19] sm:$0xff]
        %v2376 = vld [vmem:[%s20] sm:$0xff]
        %2378 = vset.pattern.permute.xlu0 0
        %2379 = vperm.xlu0 %2378, %v2376
        %v2380 = vpop.permute.xlu0 %2379
        %v2383 = vsel %vm737, %v2375, 0
        %2385 = vmatprep.subr.mxu0 0.0
        %2386 = vmatpush1.msra.mxu0 %v2373
        %2387 = vmatprep.subr.mxu0 0.0
        %2388 = vmatpush1.msra.mxu0 %v2374
        %2389 = vmatprep.subr.mxu0 0.0
        %2390 = vmatpush1.msra.mxu0 0.0
        %2391 = vmatprep.subr.mxu0 0.0
        %2392 = vmatpush1.msra.mxu0 0.0
        %2393 = vmatprep.subr.mxu0 0.0
        %2394 = vmatpush1.msra.mxu0 0.0
        %2395 = vmatprep.subr.mxu0 0.0
        %2396 = vmatpush1.msra.mxu0 0.0
        %2397 = vmatprep.subr.mxu0 0.0
        %2398 = vmatpush1.msra.mxu0 0.0
        %2399 = vmatprep.subr.mxu0 0.0
        %2400 = vmatpush1.msra.mxu0 0.0
        %2401 = vmatprep.subr.mxu0 0.0
        %2402 = vmatpush1.msra.mxu0 0.0
        %2403 = vmatprep.subr.mxu0 0.0
        %2404 = vmatpush1.msra.mxu0 0.0
        %2405 = vmatprep.subr.mxu0 0.0
        %2406 = vmatpush1.msra.mxu0 0.0
        %2407 = vmatprep.subr.mxu0 0.0
        %2408 = vmatpush1.msra.mxu0 0.0
        %2409 = vmatprep.subr.mxu0 0.0
        %2410 = vmatpush1.msra.mxu0 0.0
        %2411 = vmatprep.subr.mxu0 0.0
        %2412 = vmatpush1.msra.mxu0 0.0
        %2413 = vmatprep.subr.mxu0 0.0
        %2414 = vmatpush1.msra.mxu0 0.0
        %2415 = vmatprep.subr.mxu0 0.0
        %2416 = vmatpush1.msra.mxu0 0.0
        %2417 = vmatprep.subr.mxu0 0.0
        %2418 = vmatpush1.msra.mxu0 0.0
        %2419 = vmatprep.subr.mxu0 0.0
        %2420 = vmatpush1.msra.mxu0 0.0
        %2421 = vmatprep.subr.mxu0 0.0
        %2422 = vmatpush1.msra.mxu0 0.0
        %2423 = vmatprep.subr.mxu0 0.0
        %2424 = vmatpush1.msra.mxu0 0.0
        %2425 = vmatprep.subr.mxu0 0.0
        %2426 = vmatpush1.msra.mxu0 0.0
        %2427 = vmatprep.subr.mxu0 0.0
        %2428 = vmatpush1.msra.mxu0 0.0
        %2429 = vmatprep.subr.mxu0 0.0
        %2430 = vmatpush1.msra.mxu0 0.0
        %2431 = vmatprep.subr.mxu0 0.0
        %2432 = vmatpush1.msra.mxu0 0.0
        %2433 = vmatprep.subr.mxu0 0.0
        %2434 = vmatpush1.msra.mxu0 0.0
        %2435 = vmatprep.subr.mxu0 0.0
        %2436 = vmatpush1.msra.mxu0 0.0
        %2437 = vmatprep.subr.mxu0 0.0
        %2438 = vmatpush1.msra.mxu0 0.0
        %2439 = vmatprep.subr.mxu0 0.0
        %2440 = vmatpush1.msra.mxu0 0.0
        %2441 = vmatprep.subr.mxu0 0.0
        %2442 = vmatpush1.msra.mxu0 0.0
        %2443 = vmatprep.subr.mxu0 0.0
        %2444 = vmatpush1.msra.mxu0 0.0
        %2445 = vmatprep.subr.mxu0 0.0
        %2446 = vmatpush1.msra.mxu0 0.0
        %2447 = vmatprep.subr.mxu0 0.0
        %2448 = vmatpush1.msra.mxu0 0.0
        %2449 = vmatprep.mubr.f32.mxu0 0.0
        %2450 = vmatmul.mubr.f32.gmra.mrb[0].mxu0 %v2383
        %v2451 = vpop.f32.mrb[0].mxu0
        %v2452 = vadd.f32 %v2380, %v2451
        %v2453 = vpop.f32.mrb[0].mxu0
        %2454 = vdwg.mxu0
        %v2455 = vadd.f32 %v2452, %v1602
        %v2456 = vld [vmem:[%s21] sm:$0xff]
        %v2458 = vsel %vm1208, %v2456, 0
        %2460 = vmatprep.subr.mxu0 0.0
        %2461 = vmatpush1.msra.mxu0 %v2455
        %2462 = vmatprep.subr.mxu0 0.0
        %2463 = vmatpush1.msra.mxu0 0.0
        %2464 = vmatprep.subr.mxu0 0.0
        %2465 = vmatpush1.msra.mxu0 0.0
        %2466 = vmatprep.subr.mxu0 0.0
        %2467 = vmatpush1.msra.mxu0 0.0
        %2468 = vmatprep.subr.mxu0 0.0
        %2469 = vmatpush1.msra.mxu0 0.0
        %2470 = vmatprep.subr.mxu0 0.0
        %2471 = vmatpush1.msra.mxu0 0.0
        %2472 = vmatprep.subr.mxu0 0.0
        %2473 = vmatpush1.msra.mxu0 0.0
        %2474 = vmatprep.subr.mxu0 0.0
        %2475 = vmatpush1.msra.mxu0 0.0
        %2476 = vmatprep.subr.mxu0 0.0
        %2477 = vmatpush1.msra.mxu0 0.0
        %2478 = vmatprep.subr.mxu0 0.0
        %2479 = vmatpush1.msra.mxu0 0.0
        %2480 = vmatprep.subr.mxu0 0.0
        %2481 = vmatpush1.msra.mxu0 0.0
        %2482 = vmatprep.subr.mxu0 0.0
        %2483 = vmatpush1.msra.mxu0 0.0
        %2484 = vmatprep.subr.mxu0 0.0
        %2485 = vmatpush1.msra.mxu0 0.0
        %2486 = vmatprep.subr.mxu0 0.0
        %2487 = vmatpush1.msra.mxu0 0.0
        %2488 = vmatprep.subr.mxu0 0.0
        %2489 = vmatpush1.msra.mxu0 0.0
        %2490 = vmatprep.subr.mxu0 0.0
        %2491 = vmatpush1.msra.mxu0 0.0
        %2492 = vmatprep.subr.mxu0 0.0
        %2493 = vmatpush1.msra.mxu0 0.0
        %2494 = vmatprep.subr.mxu0 0.0
        %2495 = vmatpush1.msra.mxu0 0.0
        %2496 = vmatprep.subr.mxu0 0.0
        %2497 = vmatpush1.msra.mxu0 0.0
        %2498 = vmatprep.subr.mxu0 0.0
        %2499 = vmatpush1.msra.mxu0 0.0
        %2500 = vmatprep.subr.mxu0 0.0
        %2501 = vmatpush1.msra.mxu0 0.0
        %2502 = vmatprep.subr.mxu0 0.0
        %2503 = vmatpush1.msra.mxu0 0.0
        %2504 = vmatprep.subr.mxu0 0.0
        %2505 = vmatpush1.msra.mxu0 0.0
        %2506 = vmatprep.subr.mxu0 0.0
        %2507 = vmatpush1.msra.mxu0 0.0
        %2508 = vmatprep.subr.mxu0 0.0
        %2509 = vmatpush1.msra.mxu0 0.0
        %2510 = vmatprep.subr.mxu0 0.0
        %2511 = vmatpush1.msra.mxu0 0.0
        %2512 = vmatprep.subr.mxu0 0.0
        %2513 = vmatpush1.msra.mxu0 0.0
        %2514 = vmatprep.subr.mxu0 0.0
        %2515 = vmatpush1.msra.mxu0 0.0
        %2516 = vmatprep.subr.mxu0 0.0
        %2517 = vmatpush1.msra.mxu0 0.0
        %2518 = vmatprep.subr.mxu0 0.0
        %2519 = vmatpush1.msra.mxu0 0.0
        %2520 = vmatprep.subr.mxu0 0.0
        %2521 = vmatpush1.msra.mxu0 0.0
        %2522 = vmatprep.subr.mxu0 0.0
        %2523 = vmatpush1.msra.mxu0 0.0
        %2524 = vmatprep.mubr.f32.mxu0 0.0
        %2525 = vmatmul.mubr.f32.gmra.mrb[0].mxu0 %v2458
        %v2526 = vpop.f32.mrb[0].mxu0
        %v2527 = vadd.f32 0.0, %v2526
        %v2528 = vpop.f32.mrb[0].mxu0
        %2529 = vdwg.mxu0
        %v2530 = vsel %vm1208, %v2527, 0.0
        %v2531 = vrot.slane %v2530, 4
        %v2532 = vadd.f32 %v2530, %v2531
        %v2533 = vrot.slane %v2532, 2
        %v2534 = vadd.f32 %v2532, %v2533
        %v2535 = vrot.slane %v2534, 1
        %v2536 = vadd.f32 %v2534, %v2535
        %v2537 = vrcp.pop 8.0
        %v2538 = vmul.f32 %v2536, %v2537
        %v2539 = vsub.f32 %v2527, %v2538
        %v2540 = vmul.f32 %v2539, %v2539
        %v2541 = vsel %vm1208, %v2540, 0.0
        %v2542 = vrot.slane %v2541, 4
        %v2543 = vadd.f32 %v2541, %v2542
        %v2544 = vrot.slane %v2543, 2
        %v2545 = vadd.f32 %v2543, %v2544
        %v2546 = vrot.slane %v2545, 1
        %v2547 = vadd.f32 %v2545, %v2546
        %v2548 = vmul.f32 %v2547, %v2537
        %v2549 = vadd.f32 %v2548, 1e-05
        %v2550 = vrsqrt.pop %v2549
        %v2551 = vmul.f32 %v2539, %v2550
        %v2552 = vld [vmem:[%s22] sm:$0xff]
        %2554 = vset.pattern.permute.xlu0 0
        %2555 = vperm.xlu0 %2554, %v2552
        %v2556 = vpop.permute.xlu0 %2555
        %v2558 = vmul.f32 %v2551, %v2556
        %v2559 = vld [vmem:[%s23] sm:$0xff]
        %2561 = vset.pattern.permute.xlu0 0
        %2562 = vperm.xlu0 %2561, %v2559
        %v2563 = vpop.permute.xlu0 %2562
        %v2565 = vadd.f32 %v2558, %v2563
        %2566 = vst.msk [vmem:[%s728] sm:$0xff] %vm1208, %v2565
        %s2567 = sand.u32 %s555, 1
        %s2568 = scalar_lea.sflag [#allocation3], %s2567
        %s2569 = sand.u32 %s555, 1
        %s2570 = smul.addr %s2569, 8
        %s2571 = scalar_lea.vmem [#allocation2], %s2570
        // Predicated region
        $region117: #{conv_embedding_pallas.1} parent=115 // pred_check
          %p2572 = pneg %p565
        $region118: #{conv_embedding_pallas.1} parent=115 // pred_check_branch
          %2574 = sbr.rel (%p2572) target = $region120
        $region119: #{conv_embedding_pallas.1} parent=115 // pred_region
          %s2576 = ssub.s32 128, 128
          %2577 = vsyncadd %s2568, %s2576
          %s2578 = smul.addr %s38, 128
          %s2579 = scalar_lea.hbm %s24, %s2578
          %s2581 = sshll.u32 %s2571, 4
          %s2582 = int_to_ptr.vmem [resolvable:$true] %s2581
          %2584 = dma.vmem_to_hbm [thread:$0]  %s2582, 128, %s2579, %s2568
        $region120: #{conv_embedding_pallas.1} parent=115 // pred_fallthru
          _
      $region116: #{conv_embedding_pallas.1} parent=5 // pred_fallthru
        _
      %p2585 = scmp.le.s32.totalorder 2, %s33
      // Predicated region
      $region121: #{conv_embedding_pallas.1} parent=5 // pred_check
        %p2586 = pneg %p2585
      $region122: #{conv_embedding_pallas.1} parent=5 // pred_check_branch
        %2588 = sbr.rel (%p2586) target = $region124
      $region123: #{conv_embedding_pallas.1} parent=5 // pred_region
        %s2589 = ssub.s32 %s33, 2
        // Predicated region
        $region125: #{conv_embedding_pallas.1} parent=123 // pred_check
          %p2590 = pneg %p571
        $region126: #{conv_embedding_pallas.1} parent=123 // pred_check_branch
          %2592 = sbr.rel (%p2590) target = $region128
        $region127: #{conv_embedding_pallas.1} parent=123 // pred_region
          %s2593 = sand.u32 %s556, 1
          %s2594 = scalar_lea.sflag [#allocation3], %s2593
          %s2595 = sand.u32 %s556, 1
          %s2596 = smul.addr %s2595, 8
          %s2597 = scalar_lea.vmem [#allocation2], %s2596
          %2598 = dma.done %s2594, 128
        $region128: #{conv_embedding_pallas.1} parent=123 // pred_fallthru
          _
      $region124: #{conv_embedding_pallas.1} parent=5 // pred_fallthru
        _
    $region6: #{conv_embedding_pallas.1} parent=1 // loop_footer
      %s37 = sadd.s32 1, %s33
    $region7: #{conv_embedding_pallas.1} parent=1 // loop_footer_branch
      %32 = sbr.rel target = $region3
    $region8: #{conv_embedding_pallas.1} parent=1 // loop_exit
      _
    %2599 = vsyncpa [#allocation3], 1
    %s2600 = scalar_lea.sflag [#allocation3], 1
    %2601 = vsyncpa %s2600, 1

</llo_original>
